<compile_context>
chip_gen: v7x
topology: tpu7x:2x2x1
jax: 0.10.0
libtpu: 0.0.40
codegen_flags: <defaults>
</compile_context>

<pallas_src>
import numpy as np
import jax
import jax.numpy as jnp
from jax.experimental import pallas as pl
from jax.experimental.pallas import tpu as pltpu


# ----------------------------- Pallas kernel ------------------------------- #

def duq_sim_kernel(
    s_ref, f_ref, tpe_i_ref, tpe_j_ref, vpe_ref,
    w1_ref, b1_ref, w2_ref, b2_ref, w3_ref, b3_ref,
    feat_ref, prob_ref, sims_ref,
    vfeat_sc, tw_sc, vw_sc,
):
    At, D = s_ref.shape
    Bt, F, _ = f_ref.shape
    M = tpe_i_ref.shape[1]
    N = vpe_ref.shape[0]
    bf16 = jnp.bfloat16
    f32 = jnp.float32

    def l2n(x):
        # rsqrt runs on the EUP; no epsilon (matches the reference semantics).
        return x * jax.lax.rsqrt(jnp.sum(x * x, axis=-1, keepdims=True))

    def sim(x_bf, y_bf):
        # [m, D] x [n, D] -> [m, n]: bf16 operands on the MXU, f32 accumulate.
        return jax.lax.dot_general(
            x_bf, y_bf, (((1,), (1,)), ((), ())), preferred_element_type=f32)

    def mlp_w(x2d_bf, lead, idx, keepdims):
        # Linear(D,2D)+ReLU -> Linear(2D,D)+ReLU on the MXU (bf16 operands,
        # f32 accumulate; h kept f32 for v5e-safe VPU work); final Linear(D,1)
        # as a VPU multiply + lane reduce instead of a near-empty matmul.
        h = jnp.dot(x2d_bf, w1_ref[idx], preferred_element_type=f32) + b1_ref[idx]
        h = jnp.maximum(h, 0.0)
        h = jnp.dot(h.astype(bf16), w2_ref[idx],
                    preferred_element_type=f32) + b2_ref[idx]
        h = jnp.maximum(h, 0.0)
        h = h.reshape(lead + (h.shape[-1],))
        return jnp.sum(h * w3_ref[idx], axis=-1, keepdims=keepdims) + b3_ref[idx]

    # ---- video-column-tile work: depends only on the j grid axis ----------- #
    # Computed once per video tile (i == 0) and cached in VMEM scratch so the
    # text-row grid axis does not replay the (dominant) MLP matmuls.
    @pl.when(pl.program_id(1) == 0)
    def _():
        f_bf = f_ref[...]                                          # [Bt, F, D] bf16 (raw)
        f_w = mlp_w(f_bf.reshape(Bt * F, D), (Bt, F), 0, True)     # [Bt, F, 1]
        v_feat = jnp.sum(f_bf.astype(f32) * f_w, axis=1)           # [Bt, D]
        vfeat_sc[...] = l2n(v_feat).astype(bf16)
        # t_prob_w rows are indexed by the *video* batch index in the reference
        # einsum (requires A == B); the j-indexed tpe tile supplies them.
        t_w = mlp_w(tpe_j_ref[...].reshape(Bt * M, D), (Bt, M), 1, False)  # [Bt, M]
        tw_sc[...] = t_w.T                                          # [M, Bt] tiny XLU transpose
        vw_sc[...] = mlp_w(vpe_ref[...].reshape(N * Bt, D), (N, Bt), 2, False)  # [N, Bt]

    # ---- feature similarities ---------------------------------------------- #
    feat = sim(s_ref[...], vfeat_sc[...])                           # [At, Bt]
    feat_ref[...] = feat

    # ---- probabilistic-embedding similarities, streamed over n-chunks ------ #
    t_flat = tpe_i_ref[...].reshape(At * M, D)       # rows (a, m), normalized bf16
    v_w = vw_sc[...]                                 # [N, Bt]

    NC = 2 if N % 2 == 0 else 1                      # 2*Bt = 256 lanes per chunk at Bt=128
    t2v_max = None                                   # running max over n, [At*M, Bt]
    v2t = jnp.zeros((At, Bt), f32)
    for c in range(N // NC):                         # static, small
        v_chunk = vpe_ref[c * NC:(c + 1) * NC].reshape(NC * Bt, D)   # [NC*Bt, D] bf16
        S = sim(t_flat, v_chunk)                                     # [At*M, NC*Bt] f32
        S_m = jnp.max(S.reshape(At, M, NC * Bt), axis=1)             # max over m, [At, NC*Bt]
        for k in range(NC):
            n = c * NC + k
            blk = S[:, k * Bt:(k + 1) * Bt]                          # contiguous lane block
            t2v_max = blk if t2v_max is None else jnp.maximum(t2v_max, blk)
            v2t = v2t + S_m[:, k * Bt:(k + 1) * Bt] * v_w[n:n + 1, :]

    # t2v: weight running max by t_prob_w[b, m] and sum over m
    t2v = jnp.sum(t2v_max.reshape(At, M, Bt) * tw_sc[...][None, :, :], axis=1)
    prob = 0.5 * (t2v + v2t)
    prob_ref[...] = prob
    sims_ref[...] = feat + prob


# ------------------------------- wrapper ----------------------------------- #

PREFIXES = ("f", "t", "v")   # f_feat_w, t_prob_w, v_prob_w


def pack_params(params):
    """Pack the 18 small parameter tensors into 5 VMEM slabs + 1 SMEM vector."""
    w1s = jnp.stack([params[p + "_w1"] for p in PREFIXES]).astype(jnp.bfloat16)
    w2s = jnp.stack([params[p + "_w2"] for p in PREFIXES]).astype(jnp.bfloat16)
    b1s = jnp.stack([params[p + "_b1"].reshape(1, -1) for p in PREFIXES])
    b2s = jnp.stack([params[p + "_b2"].reshape(1, -1) for p in PREFIXES])
    w3s = jnp.stack([params[p + "_w3"].reshape(1, -1) for p in PREFIXES])
    b3s = jnp.stack([params[p + "_b3"].reshape(()) for p in PREFIXES])
    return w1s, b1s, w2s, b2s, w3s, b3s


def duq_similarity(s_feat, f_feat, tpe, vpe, params):
    A, D = s_feat.shape
    B, F, _ = f_feat.shape
    M = tpe.shape[1]
    N = vpe.shape[1]
    # The reference einsum ('abm,bm->ab') aliases text/video batch indices.
    assert A == B, "DUQ similarity requires text batch == video batch"

    At = A if A <= 128 else 128
    Bt = B if B <= 128 else 128
    assert A % At == 0 and B % Bt == 0
    grid = (B // Bt, A // At)          # (j: video column tiles, i: text row tiles)

    bf16 = jnp.bfloat16

    def l2n(x):
        return x / jnp.linalg.norm(x, axis=-1, keepdims=True)

    # Hoist grid-invariant normalization + bf16 casts out of the kernel; every
    # large activation streams as bf16 (values hit the MXU as bf16 anyway).
    s_n = l2n(s_feat).astype(bf16)                              # [A, D]
    tpe_n = l2n(tpe).astype(bf16)                               # [A, M, D]
    vpe_tn = jnp.transpose(l2n(vpe).astype(bf16), (1, 0, 2))    # [N, B, D] (bf16 copy)
    f_bf = f_feat.astype(bf16)                                  # [B, F, D]

    w1s, b1s, w2s, b2s, w3s, b3s = pack_params(params)

    # Scoped-VMEM budget from the per-step footprint, capped under v7x's 64 MiB.
    NC = 2 if N % 2 == 0 else 1
    est = (
        2 * 2 * D * (At + At * M + Bt * F + Bt * M + N * Bt)          # bf16 input blocks x2
        + 2 * (3 * (2 * D * D) * 2 * 2 + 3 * 4 * D * 4)                # parameter slabs
        + 4 * (max(Bt * F, Bt * M, N * Bt) * 2 * D                     # MLP hidden (f32)
               + At * M * NC * Bt + At * M * Bt + 8 * At * Bt)          # S chunk / running max
        + 2 * 3 * At * Bt * 4                                           # outputs x2
        + Bt * D * 2 + (M + N) * Bt * 4                                 # scratch
    )
    vmem_limit = int(min(max(est * 3 // 2, 32 * 1024 * 1024), 56 * 1024 * 1024))

    def const_spec(shape, single_buffer):
        imap = lambda j, i: (0,) * len(shape)
        if single_buffer:
            # constant index_map -> never re-fetched; single buffer saves VMEM.
            return pl.BlockSpec(shape, imap, pipeline_mode=pl.Buffered(1))
        return pl.BlockSpec(shape, imap)

    def run(single_buffer_params):
        in_specs = [
            pl.BlockSpec((At, D), lambda j, i: (i, 0)),          # s_feat (normalized bf16)
            pl.BlockSpec((Bt, F, D), lambda j, i: (j, 0, 0)),    # f_feat column tile
            pl.BlockSpec((At, M, D), lambda j, i: (i, 0, 0)),    # tpe rows for contraction
            pl.BlockSpec((Bt, M, D), lambda j, i: (j, 0, 0)),    # tpe rows for t_prob_w (b-indexed)
            pl.BlockSpec((N, Bt, D), lambda j, i: (0, j, 0)),    # vpe^T column tile
            const_spec((3, D, 2 * D), single_buffer_params),     # w1 slab (bf16)
            const_spec((3, 1, 2 * D), single_buffer_params),     # b1 slab
            const_spec((3, 2 * D, D), single_buffer_params),     # w2 slab (bf16)
            const_spec((3, 1, D), single_buffer_params),         # b2 slab
            const_spec((3, 1, D), single_buffer_params),         # w3 rows (VPU reduce path)
            pl.BlockSpec(memory_space=pltpu.MemorySpace.SMEM),   # b3 scalars
        ]
        out_specs = (
            pl.BlockSpec((At, Bt), lambda j, i: (i, j)),
            pl.BlockSpec((At, Bt), lambda j, i: (i, j)),
            pl.BlockSpec((At, Bt), lambda j, i: (i, j)),
        )
        out_shape = (
            jax.ShapeDtypeStruct((A, B), jnp.float32),   # feat_sims
            jax.ShapeDtypeStruct((A, B), jnp.float32),   # prob_sims
            jax.ShapeDtypeStruct((A, B), jnp.float32),   # sims
        )
        return pl.pallas_call(
            duq_sim_kernel,
            out_shape=out_shape,
            grid=grid,
            in_specs=in_specs,
            out_specs=out_specs,
            scratch_shapes=[
                pltpu.VMEM((Bt, D), jnp.bfloat16),    # pooled + normalized v_feat
                pltpu.VMEM((M, Bt), jnp.float32),     # t_prob_w^T (per video tile)
                pltpu.VMEM((N, Bt), jnp.float32),     # v_prob_w  (per video tile)
            ],
            compiler_params=pltpu.CompilerParams(
                dimension_semantics=("parallel", "arbitrary"),
                vmem_limit_bytes=vmem_limit),
        )(s_n, f_bf, tpe_n, tpe_n, vpe_tn, w1s, b1s, w2s, b2s, w3s, b3s)

    single = hasattr(pl, "Buffered")
    try:
        feat_sims, prob_sims, sims = run(single)
    except Exception:
        if not single:
            raise
        # pipeline_mode=pl.Buffered(1) unsupported in this jax: default buffering.
        feat_sims, prob_sims, sims = run(False)
    return feat_sims, prob_sims, sims


# --------------------------- plain-JAX reference --------------------------- #

def reference(s_feat, f_feat, tpe, vpe, p):
    def mlp(x, pre):
        h = jax.nn.relu(x @ p[pre + "_w1"] + p[pre + "_b1"])
        h = jax.nn.relu(h @ p[pre + "_w2"] + p[pre + "_b2"])
        return h @ p[pre + "_w3"] + p[pre + "_b3"]

    def l2n(x):
        return x / jnp.linalg.norm(x, axis=-1, keepdims=True)

    fw = mlp(f_feat, "f").squeeze(-1)                    # [B, F]
    v_feat = jnp.einsum("afd,af->ad", f_feat, fw)
    s_n = l2n(l2n(s_feat))                               # module normalizes twice
    v_n = l2n(l2n(v_feat))
    feat_sims = s_n @ v_n.T

    t_n = l2n(tpe)
    vp_n = l2n(vpe)
    prob4 = jnp.einsum("amd,bnd->abmn", t_n, vp_n)
    t_w = mlp(t_n, "t").squeeze(-1)                      # [A, M]
    v_w = mlp(vp_n, "v").squeeze(-1)                     # [B, N]
    t2v = jnp.einsum("abm,bm->ab", prob4.max(axis=-1), t_w)
    v2t = jnp.einsum("abn,bn->ab", prob4.max(axis=-2), v_w)
    prob_sims = (t2v + v2t) / 2.0
    return feat_sims, prob_sims, feat_sims + prob_sims


# --------------------------------- main ------------------------------------ #

def make_mlp_params(key, d, prefix):
    # nn.Linear weights ~ N(0, 0.02), biases zero (DUQ.init_weights)
    k1, k2, k3 = jax.random.split(key, 3)
    return {
        f"{prefix}_w1": 0.02 * jax.random.normal(k1, (d, 2 * d), jnp.float32),
        f"{prefix}_b1": jnp.zeros((1, 2 * d), jnp.float32),
        f"{prefix}_w2": 0.02 * jax.random.normal(k2, (2 * d, d), jnp.float32),
        f"{prefix}_b2": jnp.zeros((1, d), jnp.float32),
        f"{prefix}_w3": 0.02 * jax.random.normal(k3, (d, 1), jnp.float32),
        f"{prefix}_b3": jnp.zeros((1, 1), jnp.float32),
    }


if __name__ == "__main__":
    B = 4       # batch (text batch == video batch, as the reference einsum requires)
    F = 8       # frames per video
    D = 128     # embed_dim (small stand-in for CLIP's 512)
    M = 8       # n_text_samples
    N = 8       # n_video_samples

    key = jax.random.PRNGKey(0)
    ks = jax.random.split(key, 8)

    s_feat = jax.random.normal(ks[0], (B, D), jnp.float32)     # CLIP text feat
    f_feat = jax.random.normal(ks[1], (B, F, D), jnp.float32)  # CLIP frame feats
    tpe = jax.random.normal(ks[2], (B, M, D), jnp.float32)     # text prob embeds
    vpe = jax.random.normal(ks[3], (B, N, D), jnp.float32)     # video prob embeds

    params = {}
    params.update(make_mlp_params(ks[4], D, "f"))   # f_feat_w
    params.update(make_mlp_params(ks[5], D, "t"))   # t_prob_w
    params.update(make_mlp_params(ks[6], D, "v"))   # v_prob_w

    feat_sims, prob_sims, sims = duq_similarity(s_feat, f_feat, tpe, vpe, params)
    jax.block_until_ready(sims)

    ref_feat, ref_prob, ref_sims = reference(s_feat, f_feat, tpe, vpe, params)
    # bf16 streamed activations + bf16 MXU operands (f32 accumulate) vs the
    # pure-f32 reference -> loosened tolerance; accumulation stays f32.
    tol = dict(rtol=3e-2, atol=3e-2)
    assert np.allclose(np.asarray(feat_sims), np.asarray(ref_feat), **tol)
    assert np.allclose(np.asarray(prob_sims), np.asarray(ref_prob), **tol)
    assert np.allclose(np.asarray(sims), np.asarray(ref_sims), **tol)

    print("KERNEL_OK")
</pallas_src>

<mosaic_0001>
module attributes {stable_mosaic.version = 11 : i64} {
  func.func @duq_sim_kernel(%arg0: i32, %arg1: i32, %arg2: memref<4x128xbf16, #tpu.memory_space<vmem>>, %arg3: memref<4x8x128xbf16, #tpu.memory_space<vmem>>, %arg4: memref<4x8x128xbf16, #tpu.memory_space<vmem>>, %arg5: memref<4x8x128xbf16, #tpu.memory_space<vmem>>, %arg6: memref<8x4x128xbf16, #tpu.memory_space<vmem>>, %arg7: memref<3x128x256xbf16, #tpu.memory_space<vmem>>, %arg8: memref<3x1x256xf32, #tpu.memory_space<vmem>>, %arg9: memref<3x256x128xbf16, #tpu.memory_space<vmem>>, %arg10: memref<3x1x128xf32, #tpu.memory_space<vmem>>, %arg11: memref<3x1x128xf32, #tpu.memory_space<vmem>>, %arg12: memref<3xf32, #tpu.memory_space<smem>>, %arg13: memref<4x4xf32, #tpu.memory_space<vmem>>, %arg14: memref<4x4xf32, #tpu.memory_space<vmem>>, %arg15: memref<4x4xf32, #tpu.memory_space<vmem>>, %arg16: memref<4x128xbf16, #tpu.memory_space<vmem>>, %arg17: memref<8x4xf32, #tpu.memory_space<vmem>>, %arg18: memref<8x4xf32, #tpu.memory_space<vmem>>) attributes {dimension_semantics = [#tpu.dimension_semantics<parallel>, #tpu.dimension_semantics<arbitrary>], iteration_bounds = array<i64: 1, 1>, scalar_prefetch = 0 : i64, scratch_operands = 3 : i64, tpu.core_type = #tpu.core_type<tc>, window_params = [{transform_indices = @transform_0, window_bounds = array<i64: 4, 128>}, {transform_indices = @transform_1, window_bounds = array<i64: 4, 8, 128>}, {transform_indices = @transform_2, window_bounds = array<i64: 4, 8, 128>}, {transform_indices = @transform_3, window_bounds = array<i64: 4, 8, 128>}, {transform_indices = @transform_4, window_bounds = array<i64: 8, 4, 128>}, {pipeline_mode = #tpu.pipeline_mode<synchronous>, transform_indices = @transform_5, window_bounds = array<i64: 3, 128, 256>}, {pipeline_mode = #tpu.pipeline_mode<synchronous>, transform_indices = @transform_6, window_bounds = array<i64: 3, 1, 256>}, {pipeline_mode = #tpu.pipeline_mode<synchronous>, transform_indices = @transform_7, window_bounds = array<i64: 3, 256, 128>}, {pipeline_mode = #tpu.pipeline_mode<synchronous>, transform_indices = @transform_8, window_bounds = array<i64: 3, 1, 128>}, {pipeline_mode = #tpu.pipeline_mode<synchronous>, transform_indices = @transform_9, window_bounds = array<i64: 3, 1, 128>}, {transform_indices = @transform_10, window_bounds = array<i64: 3>}, {transform_indices = @transform_11, window_bounds = array<i64: 4, 4>}, {transform_indices = @transform_12, window_bounds = array<i64: 4, 4>}, {transform_indices = @transform_13, window_bounds = array<i64: 4, 4>}]} {
    %c0_i32 = arith.constant 0 : i32
    %0 = arith.cmpi eq, %arg1, %c0_i32 : i32
    %1 = arith.extui %0 : i1 to i32
    %c0_i32_0 = arith.constant 0 : i32
    %2 = arith.cmpi ne, %1, %c0_i32_0 : i32
    scf.if %2 {
      %c0_37 = arith.constant 0 : index
      %c0_38 = arith.constant 0 : index
      %c0_39 = arith.constant 0 : index
      %98 = vector.load %arg3[%c0_37, %c0_38, %c0_39] : memref<4x8x128xbf16, #tpu.memory_space<vmem>>, vector<4x8x128xbf16>
      %99 = vector.shape_cast %98 : vector<4x8x128xbf16> to vector<32x128xbf16>
      %c0_40 = arith.constant 0 : index
      %c0_41 = arith.constant 0 : index
      %c0_42 = arith.constant 0 : index
      %100 = vector.load %arg7[%c0_40, %c0_41, %c0_42] : memref<3x128x256xbf16, #tpu.memory_space<vmem>>, vector<1x128x256xbf16>
      %101 = vector.shape_cast %100 : vector<1x128x256xbf16> to vector<128x256xbf16>
      %cst_43 = arith.constant dense<0.000000e+00> : vector<32x256xf32>
      %102 = tpu.matmul %99, %101, %cst_43 {dimension_numbers = #tpu.dot_dimension_numbers<[1], [0], [0], [1], [0, 0, 1, 1], [], []>} : vector<32x128xbf16>, vector<128x256xbf16>, vector<32x256xf32> -> vector<32x256xf32>
      %c0_44 = arith.constant 0 : index
      %c0_45 = arith.constant 0 : index
      %c0_46 = arith.constant 0 : index
      %103 = vector.load %arg8[%c0_44, %c0_45, %c0_46] : memref<3x1x256xf32, #tpu.memory_space<vmem>>, vector<1x1x256xf32>
      %104 = vector.shape_cast %103 : vector<1x1x256xf32> to vector<1x256xf32>
      %105 = vector.broadcast %104 : vector<1x256xf32> to vector<32x256xf32>
      %106 = arith.addf %102, %105 : vector<32x256xf32>
      %cst_47 = arith.constant 0.000000e+00 : f32
      %107 = vector.broadcast %cst_47 : f32 to vector<32x256xf32>
      %108 = arith.maximumf %106, %107 : vector<32x256xf32>
      %109 = arith.truncf %108 : vector<32x256xf32> to vector<32x256xbf16>
      %c0_48 = arith.constant 0 : index
      %c0_49 = arith.constant 0 : index
      %c0_50 = arith.constant 0 : index
      %110 = vector.load %arg9[%c0_48, %c0_49, %c0_50] : memref<3x256x128xbf16, #tpu.memory_space<vmem>>, vector<1x256x128xbf16>
      %111 = vector.shape_cast %110 : vector<1x256x128xbf16> to vector<256x128xbf16>
      %cst_51 = arith.constant dense<0.000000e+00> : vector<32x128xf32>
      %112 = tpu.matmul %109, %111, %cst_51 {dimension_numbers = #tpu.dot_dimension_numbers<[1], [0], [0], [1], [0, 0, 1, 1], [], []>} : vector<32x256xbf16>, vector<256x128xbf16>, vector<32x128xf32> -> vector<32x128xf32>
      %c0_52 = arith.constant 0 : index
      %c0_53 = arith.constant 0 : index
      %c0_54 = arith.constant 0 : index
      %113 = vector.load %arg10[%c0_52, %c0_53, %c0_54] : memref<3x1x128xf32, #tpu.memory_space<vmem>>, vector<1x1x128xf32>
      %114 = vector.shape_cast %113 : vector<1x1x128xf32> to vector<1x128xf32>
      %115 = vector.broadcast %114 : vector<1x128xf32> to vector<32x128xf32>
      %116 = arith.addf %112, %115 : vector<32x128xf32>
      %cst_55 = arith.constant 0.000000e+00 : f32
      %117 = vector.broadcast %cst_55 : f32 to vector<32x128xf32>
      %118 = arith.maximumf %116, %117 : vector<32x128xf32>
      %119 = vector.shape_cast %118 : vector<32x128xf32> to vector<4x8x128xf32>
      %c0_56 = arith.constant 0 : index
      %c0_57 = arith.constant 0 : index
      %c0_58 = arith.constant 0 : index
      %120 = vector.load %arg11[%c0_56, %c0_57, %c0_58] : memref<3x1x128xf32, #tpu.memory_space<vmem>>, vector<1x1x128xf32>
      %121 = vector.shape_cast %120 : vector<1x1x128xf32> to vector<1x128xf32>
      %122 = vector.shape_cast %121 : vector<1x128xf32> to vector<1x1x128xf32>
      %123 = vector.broadcast %122 : vector<1x1x128xf32> to vector<4x8x128xf32>
      %124 = arith.mulf %119, %123 : vector<4x8x128xf32>
      %cst_59 = arith.constant dense<0.000000e+00> : vector<4x8xf32>
      %125 = vector.multi_reduction <add>, %124, %cst_59 [2] : vector<4x8x128xf32> to vector<4x8xf32>
      %126 = vector.shape_cast %125 : vector<4x8xf32> to vector<4x8x1xf32>
      %c0_60 = arith.constant 0 : index
      %127 = memref.load %arg12[%c0_60] : memref<3xf32, #tpu.memory_space<smem>>
      %128 = vector.broadcast %127 : f32 to vector<4x8x1xf32>
      %129 = arith.addf %126, %128 : vector<4x8x1xf32>
      %130 = arith.extf %98 : vector<4x8x128xbf16> to vector<4x8x128xf32>
      %131 = vector.broadcast %129 : vector<4x8x1xf32> to vector<4x8x128xf32>
      %132 = arith.mulf %130, %131 : vector<4x8x128xf32>
      %cst_61 = arith.constant dense<0.000000e+00> : vector<4x128xf32>
      %133 = vector.multi_reduction <add>, %132, %cst_61 [1] : vector<4x8x128xf32> to vector<4x128xf32>
      %134 = arith.mulf %133, %133 : vector<4x128xf32>
      %cst_62 = arith.constant dense<0.000000e+00> : vector<4xf32>
      %135 = vector.multi_reduction <add>, %134, %cst_62 [1] : vector<4x128xf32> to vector<4xf32>
      %136 = vector.shape_cast %135 : vector<4xf32> to vector<4x1xf32>
      %137 = math.rsqrt %136 : vector<4x1xf32>
      %138 = vector.broadcast %137 : vector<4x1xf32> to vector<4x128xf32>
      %139 = arith.mulf %133, %138 : vector<4x128xf32>
      %140 = arith.truncf %139 : vector<4x128xf32> to vector<4x128xbf16>
      %c0_63 = arith.constant 0 : index
      %c0_64 = arith.constant 0 : index
      %141 = vector.load %arg16[%c0_63, %c0_64] : memref<4x128xbf16, #tpu.memory_space<vmem>>, vector<4x128xbf16>
      tpu.vector_store %arg16[%c0_63, %c0_64], %140 {strides = array<i32>} : memref<4x128xbf16, #tpu.memory_space<vmem>>, vector<4x128xbf16>,
      %c0_65 = arith.constant 0 : index
      %c0_66 = arith.constant 0 : index
      %c0_67 = arith.constant 0 : index
      %142 = vector.load %arg5[%c0_65, %c0_66, %c0_67] : memref<4x8x128xbf16, #tpu.memory_space<vmem>>, vector<4x8x128xbf16>
      %143 = vector.shape_cast %142 : vector<4x8x128xbf16> to vector<32x128xbf16>
      %c1 = arith.constant 1 : index
      %c0_68 = arith.constant 0 : index
      %c0_69 = arith.constant 0 : index
      %144 = vector.load %arg7[%c1, %c0_68, %c0_69] : memref<3x128x256xbf16, #tpu.memory_space<vmem>>, vector<1x128x256xbf16>
      %145 = vector.shape_cast %144 : vector<1x128x256xbf16> to vector<128x256xbf16>
      %cst_70 = arith.constant dense<0.000000e+00> : vector<32x256xf32>
      %146 = tpu.matmul %143, %145, %cst_70 {dimension_numbers = #tpu.dot_dimension_numbers<[1], [0], [0], [1], [0, 0, 1, 1], [], []>} : vector<32x128xbf16>, vector<128x256xbf16>, vector<32x256xf32> -> vector<32x256xf32>
      %c1_71 = arith.constant 1 : index
      %c0_72 = arith.constant 0 : index
      %c0_73 = arith.constant 0 : index
      %147 = vector.load %arg8[%c1_71, %c0_72, %c0_73] : memref<3x1x256xf32, #tpu.memory_space<vmem>>, vector<1x1x256xf32>
      %148 = vector.shape_cast %147 : vector<1x1x256xf32> to vector<1x256xf32>
      %149 = vector.broadcast %148 : vector<1x256xf32> to vector<32x256xf32>
      %150 = arith.addf %146, %149 : vector<32x256xf32>
      %cst_74 = arith.constant 0.000000e+00 : f32
      %151 = vector.broadcast %cst_74 : f32 to vector<32x256xf32>
      %152 = arith.maximumf %150, %151 : vector<32x256xf32>
      %153 = arith.truncf %152 : vector<32x256xf32> to vector<32x256xbf16>
      %c1_75 = arith.constant 1 : index
      %c0_76 = arith.constant 0 : index
      %c0_77 = arith.constant 0 : index
      %154 = vector.load %arg9[%c1_75, %c0_76, %c0_77] : memref<3x256x128xbf16, #tpu.memory_space<vmem>>, vector<1x256x128xbf16>
      %155 = vector.shape_cast %154 : vector<1x256x128xbf16> to vector<256x128xbf16>
      %cst_78 = arith.constant dense<0.000000e+00> : vector<32x128xf32>
      %156 = tpu.matmul %153, %155, %cst_78 {dimension_numbers = #tpu.dot_dimension_numbers<[1], [0], [0], [1], [0, 0, 1, 1], [], []>} : vector<32x256xbf16>, vector<256x128xbf16>, vector<32x128xf32> -> vector<32x128xf32>
      %c1_79 = arith.constant 1 : index
      %c0_80 = arith.constant 0 : index
      %c0_81 = arith.constant 0 : index
      %157 = vector.load %arg10[%c1_79, %c0_80, %c0_81] : memref<3x1x128xf32, #tpu.memory_space<vmem>>, vector<1x1x128xf32>
      %158 = vector.shape_cast %157 : vector<1x1x128xf32> to vector<1x128xf32>
      %159 = vector.broadcast %158 : vector<1x128xf32> to vector<32x128xf32>
      %160 = arith.addf %156, %159 : vector<32x128xf32>
      %cst_82 = arith.constant 0.000000e+00 : f32
      %161 = vector.broadcast %cst_82 : f32 to vector<32x128xf32>
      %162 = arith.maximumf %160, %161 : vector<32x128xf32>
      %163 = vector.shape_cast %162 : vector<32x128xf32> to vector<4x8x128xf32>
      %c1_83 = arith.constant 1 : index
      %c0_84 = arith.constant 0 : index
      %c0_85 = arith.constant 0 : index
      %164 = vector.load %arg11[%c1_83, %c0_84, %c0_85] : memref<3x1x128xf32, #tpu.memory_space<vmem>>, vector<1x1x128xf32>
      %165 = vector.shape_cast %164 : vector<1x1x128xf32> to vector<1x128xf32>
      %166 = vector.shape_cast %165 : vector<1x128xf32> to vector<1x1x128xf32>
      %167 = vector.broadcast %166 : vector<1x1x128xf32> to vector<4x8x128xf32>
      %168 = arith.mulf %163, %167 : vector<4x8x128xf32>
      %cst_86 = arith.constant dense<0.000000e+00> : vector<4x8xf32>
      %169 = vector.multi_reduction <add>, %168, %cst_86 [2] : vector<4x8x128xf32> to vector<4x8xf32>
      %c1_87 = arith.constant 1 : index
      %170 = memref.load %arg12[%c1_87] : memref<3xf32, #tpu.memory_space<smem>>
      %171 = vector.broadcast %170 : f32 to vector<4x8xf32>
      %172 = arith.addf %169, %171 : vector<4x8xf32>
      %173 = tpu.transpose %172, [1, 0] : vector<4x8xf32> -> vector<8x4xf32>
      %c0_88 = arith.constant 0 : index
      %c0_89 = arith.constant 0 : index
      %174 = vector.load %arg17[%c0_88, %c0_89] : memref<8x4xf32, #tpu.memory_space<vmem>>, vector<8x4xf32>
      tpu.vector_store %arg17[%c0_88, %c0_89], %173 {strides = array<i32>} : memref<8x4xf32, #tpu.memory_space<vmem>>, vector<8x4xf32>,
      %c0_90 = arith.constant 0 : index
      %c0_91 = arith.constant 0 : index
      %c0_92 = arith.constant 0 : index
      %175 = vector.load %arg6[%c0_90, %c0_91, %c0_92] : memref<8x4x128xbf16, #tpu.memory_space<vmem>>, vector<8x4x128xbf16>
      %176 = vector.shape_cast %175 : vector<8x4x128xbf16> to vector<32x128xbf16>
      %c2_93 = arith.constant 2 : index
      %c0_94 = arith.constant 0 : index
      %c0_95 = arith.constant 0 : index
      %177 = vector.load %arg7[%c2_93, %c0_94, %c0_95] : memref<3x128x256xbf16, #tpu.memory_space<vmem>>, vector<1x128x256xbf16>
      %178 = vector.shape_cast %177 : vector<1x128x256xbf16> to vector<128x256xbf16>
      %cst_96 = arith.constant dense<0.000000e+00> : vector<32x256xf32>
      %179 = tpu.matmul %176, %178, %cst_96 {dimension_numbers = #tpu.dot_dimension_numbers<[1], [0], [0], [1], [0, 0, 1, 1], [], []>} : vector<32x128xbf16>, vector<128x256xbf16>, vector<32x256xf32> -> vector<32x256xf32>
      %c2_97 = arith.constant 2 : index
      %c0_98 = arith.constant 0 : index
      %c0_99 = arith.constant 0 : index
      %180 = vector.load %arg8[%c2_97, %c0_98, %c0_99] : memref<3x1x256xf32, #tpu.memory_space<vmem>>, vector<1x1x256xf32>
      %181 = vector.shape_cast %180 : vector<1x1x256xf32> to vector<1x256xf32>
      %182 = vector.broadcast %181 : vector<1x256xf32> to vector<32x256xf32>
      %183 = arith.addf %179, %182 : vector<32x256xf32>
      %cst_100 = arith.constant 0.000000e+00 : f32
      %184 = vector.broadcast %cst_100 : f32 to vector<32x256xf32>
      %185 = arith.maximumf %183, %184 : vector<32x256xf32>
      %186 = arith.truncf %185 : vector<32x256xf32> to vector<32x256xbf16>
      %c2_101 = arith.constant 2 : index
      %c0_102 = arith.constant 0 : index
      %c0_103 = arith.constant 0 : index
      %187 = vector.load %arg9[%c2_101, %c0_102, %c0_103] : memref<3x256x128xbf16, #tpu.memory_space<vmem>>, vector<1x256x128xbf16>
      %188 = vector.shape_cast %187 : vector<1x256x128xbf16> to vector<256x128xbf16>
      %cst_104 = arith.constant dense<0.000000e+00> : vector<32x128xf32>
      %189 = tpu.matmul %186, %188, %cst_104 {dimension_numbers = #tpu.dot_dimension_numbers<[1], [0], [0], [1], [0, 0, 1, 1], [], []>} : vector<32x256xbf16>, vector<256x128xbf16>, vector<32x128xf32> -> vector<32x128xf32>
      %c2_105 = arith.constant 2 : index
      %c0_106 = arith.constant 0 : index
      %c0_107 = arith.constant 0 : index
      %190 = vector.load %arg10[%c2_105, %c0_106, %c0_107] : memref<3x1x128xf32, #tpu.memory_space<vmem>>, vector<1x1x128xf32>
      %191 = vector.shape_cast %190 : vector<1x1x128xf32> to vector<1x128xf32>
      %192 = vector.broadcast %191 : vector<1x128xf32> to vector<32x128xf32>
      %193 = arith.addf %189, %192 : vector<32x128xf32>
      %cst_108 = arith.constant 0.000000e+00 : f32
      %194 = vector.broadcast %cst_108 : f32 to vector<32x128xf32>
      %195 = arith.maximumf %193, %194 : vector<32x128xf32>
      %196 = vector.shape_cast %195 : vector<32x128xf32> to vector<8x4x128xf32>
      %c2_109 = arith.constant 2 : index
      %c0_110 = arith.constant 0 : index
      %c0_111 = arith.constant 0 : index
      %197 = vector.load %arg11[%c2_109, %c0_110, %c0_111] : memref<3x1x128xf32, #tpu.memory_space<vmem>>, vector<1x1x128xf32>
      %198 = vector.shape_cast %197 : vector<1x1x128xf32> to vector<1x128xf32>
      %199 = vector.shape_cast %198 : vector<1x128xf32> to vector<1x1x128xf32>
      %200 = vector.broadcast %199 : vector<1x1x128xf32> to vector<8x4x128xf32>
      %201 = arith.mulf %196, %200 : vector<8x4x128xf32>
      %cst_112 = arith.constant dense<0.000000e+00> : vector<8x4xf32>
      %202 = vector.multi_reduction <add>, %201, %cst_112 [2] : vector<8x4x128xf32> to vector<8x4xf32>
      %c2_113 = arith.constant 2 : index
      %203 = memref.load %arg12[%c2_113] : memref<3xf32, #tpu.memory_space<smem>>
      %204 = vector.broadcast %203 : f32 to vector<8x4xf32>
      %205 = arith.addf %202, %204 : vector<8x4xf32>
      %c0_114 = arith.constant 0 : index
      %c0_115 = arith.constant 0 : index
      %206 = vector.load %arg18[%c0_114, %c0_115] : memref<8x4xf32, #tpu.memory_space<vmem>>, vector<8x4xf32>
      tpu.vector_store %arg18[%c0_114, %c0_115], %205 {strides = array<i32>} : memref<8x4xf32, #tpu.memory_space<vmem>>, vector<8x4xf32>,
    } else {
    }
    %c0 = arith.constant 0 : index
    %c0_1 = arith.constant 0 : index
    %3 = vector.load %arg2[%c0, %c0_1] : memref<4x128xbf16, #tpu.memory_space<vmem>>, vector<4x128xbf16>
    %c0_2 = arith.constant 0 : index
    %c0_3 = arith.constant 0 : index
    %4 = vector.load %arg16[%c0_2, %c0_3] : memref<4x128xbf16, #tpu.memory_space<vmem>>, vector<4x128xbf16>
    %cst = arith.constant dense<0.000000e+00> : vector<4x4xf32>
    %5 = tpu.matmul %3, %4, %cst {dimension_numbers = #tpu.dot_dimension_numbers<[1], [1], [0], [0], [0, 0, 1, 0], [], []>} : vector<4x128xbf16>, vector<4x128xbf16>, vector<4x4xf32> -> vector<4x4xf32>
    %c0_4 = arith.constant 0 : index
    %c0_5 = arith.constant 0 : index
    %6 = vector.load %arg13[%c0_4, %c0_5] : memref<4x4xf32, #tpu.memory_space<vmem>>, vector<4x4xf32>
    tpu.vector_store %arg13[%c0_4, %c0_5], %5 {strides = array<i32>} : memref<4x4xf32, #tpu.memory_space<vmem>>, vector<4x4xf32>,
    %c0_6 = arith.constant 0 : index
    %c0_7 = arith.constant 0 : index
    %c0_8 = arith.constant 0 : index
    %7 = vector.load %arg4[%c0_6, %c0_7, %c0_8] : memref<4x8x128xbf16, #tpu.memory_space<vmem>>, vector<4x8x128xbf16>
    %8 = vector.shape_cast %7 : vector<4x8x128xbf16> to vector<32x128xbf16>
    %c0_9 = arith.constant 0 : index
    %c0_10 = arith.constant 0 : index
    %9 = vector.load %arg18[%c0_9, %c0_10] : memref<8x4xf32, #tpu.memory_space<vmem>>, vector<8x4xf32>
    %cst_11 = arith.constant 0.000000e+00 : f32
    %10 = vector.broadcast %cst_11 : f32 to vector<4x4xf32>
    %c0_12 = arith.constant 0 : index
    %c0_13 = arith.constant 0 : index
    %c0_14 = arith.constant 0 : index
    %11 = vector.load %arg6[%c0_12, %c0_13, %c0_14] : memref<8x4x128xbf16, #tpu.memory_space<vmem>>, vector<2x4x128xbf16>
    %12 = vector.shape_cast %11 : vector<2x4x128xbf16> to vector<8x128xbf16>
    %cst_15 = arith.constant dense<0.000000e+00> : vector<32x8xf32>
    %13 = tpu.matmul %8, %12, %cst_15 {dimension_numbers = #tpu.dot_dimension_numbers<[1], [1], [0], [0], [0, 0, 1, 0], [], []>} : vector<32x128xbf16>, vector<8x128xbf16>, vector<32x8xf32> -> vector<32x8xf32>
    %14 = vector.shape_cast %13 : vector<32x8xf32> to vector<4x8x8xf32>
    %cst_16 = arith.constant dense<0xFF800000> : vector<4x8xf32>
    %15 = vector.multi_reduction <maximumf>, %14, %cst_16 [1] : vector<4x8x8xf32> to vector<4x8xf32>
    %16 = vector.extract_strided_slice %13 {offsets = [0, 0], sizes = [32, 4], strides = [1, 1]} : vector<32x8xf32> to vector<32x4xf32>
    %17 = vector.extract_strided_slice %15 {offsets = [0, 0], sizes = [4, 4], strides = [1, 1]} : vector<4x8xf32> to vector<4x4xf32>
    %18 = vector.extract_strided_slice %9 {offsets = [0, 0], sizes = [1, 4], strides = [1, 1]} : vector<8x4xf32> to vector<1x4xf32>
    %19 = vector.broadcast %18 : vector<1x4xf32> to vector<4x4xf32>
    %20 = arith.mulf %17, %19 : vector<4x4xf32>
    %21 = arith.addf %10, %20 : vector<4x4xf32>
    %22 = vector.extract_strided_slice %13 {offsets = [0, 4], sizes = [32, 4], strides = [1, 1]} : vector<32x8xf32> to vector<32x4xf32>
    %23 = arith.maximumf %16, %22 : vector<32x4xf32>
    %24 = vector.extract_strided_slice %15 {offsets = [0, 4], sizes = [4, 4], strides = [1, 1]} : vector<4x8xf32> to vector<4x4xf32>
    %25 = vector.extract_strided_slice %9 {offsets = [1, 0], sizes = [1, 4], strides = [1, 1]} : vector<8x4xf32> to vector<1x4xf32>
    %26 = vector.broadcast %25 : vector<1x4xf32> to vector<4x4xf32>
    %27 = arith.mulf %24, %26 : vector<4x4xf32>
    %28 = arith.addf %21, %27 : vector<4x4xf32>
    %c2 = arith.constant 2 : index
    %c0_17 = arith.constant 0 : index
    %c0_18 = arith.constant 0 : index
    %29 = vector.load %arg6[%c2, %c0_17, %c0_18] : memref<8x4x128xbf16, #tpu.memory_space<vmem>>, vector<2x4x128xbf16>
    %30 = vector.shape_cast %29 : vector<2x4x128xbf16> to vector<8x128xbf16>
    %cst_19 = arith.constant dense<0.000000e+00> : vector<32x8xf32>
    %31 = tpu.matmul %8, %30, %cst_19 {dimension_numbers = #tpu.dot_dimension_numbers<[1], [1], [0], [0], [0, 0, 1, 0], [], []>} : vector<32x128xbf16>, vector<8x128xbf16>, vector<32x8xf32> -> vector<32x8xf32>
    %32 = vector.shape_cast %31 : vector<32x8xf32> to vector<4x8x8xf32>
    %cst_20 = arith.constant dense<0xFF800000> : vector<4x8xf32>
    %33 = vector.multi_reduction <maximumf>, %32, %cst_20 [1] : vector<4x8x8xf32> to vector<4x8xf32>
    %34 = vector.extract_strided_slice %31 {offsets = [0, 0], sizes = [32, 4], strides = [1, 1]} : vector<32x8xf32> to vector<32x4xf32>
    %35 = arith.maximumf %23, %34 : vector<32x4xf32>
    %36 = vector.extract_strided_slice %33 {offsets = [0, 0], sizes = [4, 4], strides = [1, 1]} : vector<4x8xf32> to vector<4x4xf32>
    %37 = vector.extract_strided_slice %9 {offsets = [2, 0], sizes = [1, 4], strides = [1, 1]} : vector<8x4xf32> to vector<1x4xf32>
    %38 = vector.broadcast %37 : vector<1x4xf32> to vector<4x4xf32>
    %39 = arith.mulf %36, %38 : vector<4x4xf32>
    %40 = arith.addf %28, %39 : vector<4x4xf32>
    %41 = vector.extract_strided_slice %31 {offsets = [0, 4], sizes = [32, 4], strides = [1, 1]} : vector<32x8xf32> to vector<32x4xf32>
    %42 = arith.maximumf %35, %41 : vector<32x4xf32>
    %43 = vector.extract_strided_slice %33 {offsets = [0, 4], sizes = [4, 4], strides = [1, 1]} : vector<4x8xf32> to vector<4x4xf32>
    %44 = vector.extract_strided_slice %9 {offsets = [3, 0], sizes = [1, 4], strides = [1, 1]} : vector<8x4xf32> to vector<1x4xf32>
    %45 = vector.broadcast %44 : vector<1x4xf32> to vector<4x4xf32>
    %46 = arith.mulf %43, %45 : vector<4x4xf32>
    %47 = arith.addf %40, %46 : vector<4x4xf32>
    %c4 = arith.constant 4 : index
    %c0_21 = arith.constant 0 : index
    %c0_22 = arith.constant 0 : index
    %48 = vector.load %arg6[%c4, %c0_21, %c0_22] : memref<8x4x128xbf16, #tpu.memory_space<vmem>>, vector<2x4x128xbf16>
    %49 = vector.shape_cast %48 : vector<2x4x128xbf16> to vector<8x128xbf16>
    %cst_23 = arith.constant dense<0.000000e+00> : vector<32x8xf32>
    %50 = tpu.matmul %8, %49, %cst_23 {dimension_numbers = #tpu.dot_dimension_numbers<[1], [1], [0], [0], [0, 0, 1, 0], [], []>} : vector<32x128xbf16>, vector<8x128xbf16>, vector<32x8xf32> -> vector<32x8xf32>
    %51 = vector.shape_cast %50 : vector<32x8xf32> to vector<4x8x8xf32>
    %cst_24 = arith.constant dense<0xFF800000> : vector<4x8xf32>
    %52 = vector.multi_reduction <maximumf>, %51, %cst_24 [1] : vector<4x8x8xf32> to vector<4x8xf32>
    %53 = vector.extract_strided_slice %50 {offsets = [0, 0], sizes = [32, 4], strides = [1, 1]} : vector<32x8xf32> to vector<32x4xf32>
    %54 = arith.maximumf %42, %53 : vector<32x4xf32>
    %55 = vector.extract_strided_slice %52 {offsets = [0, 0], sizes = [4, 4], strides = [1, 1]} : vector<4x8xf32> to vector<4x4xf32>
    %56 = vector.extract_strided_slice %9 {offsets = [4, 0], sizes = [1, 4], strides = [1, 1]} : vector<8x4xf32> to vector<1x4xf32>
    %57 = vector.broadcast %56 : vector<1x4xf32> to vector<4x4xf32>
    %58 = arith.mulf %55, %57 : vector<4x4xf32>
    %59 = arith.addf %47, %58 : vector<4x4xf32>
    %60 = vector.extract_strided_slice %50 {offsets = [0, 4], sizes = [32, 4], strides = [1, 1]} : vector<32x8xf32> to vector<32x4xf32>
    %61 = arith.maximumf %54, %60 : vector<32x4xf32>
    %62 = vector.extract_strided_slice %52 {offsets = [0, 4], sizes = [4, 4], strides = [1, 1]} : vector<4x8xf32> to vector<4x4xf32>
    %63 = vector.extract_strided_slice %9 {offsets = [5, 0], sizes = [1, 4], strides = [1, 1]} : vector<8x4xf32> to vector<1x4xf32>
    %64 = vector.broadcast %63 : vector<1x4xf32> to vector<4x4xf32>
    %65 = arith.mulf %62, %64 : vector<4x4xf32>
    %66 = arith.addf %59, %65 : vector<4x4xf32>
    %c6 = arith.constant 6 : index
    %c0_25 = arith.constant 0 : index
    %c0_26 = arith.constant 0 : index
    %67 = vector.load %arg6[%c6, %c0_25, %c0_26] : memref<8x4x128xbf16, #tpu.memory_space<vmem>>, vector<2x4x128xbf16>
    %68 = vector.shape_cast %67 : vector<2x4x128xbf16> to vector<8x128xbf16>
    %cst_27 = arith.constant dense<0.000000e+00> : vector<32x8xf32>
    %69 = tpu.matmul %8, %68, %cst_27 {dimension_numbers = #tpu.dot_dimension_numbers<[1], [1], [0], [0], [0, 0, 1, 0], [], []>} : vector<32x128xbf16>, vector<8x128xbf16>, vector<32x8xf32> -> vector<32x8xf32>
    %70 = vector.shape_cast %69 : vector<32x8xf32> to vector<4x8x8xf32>
    %cst_28 = arith.constant dense<0xFF800000> : vector<4x8xf32>
    %71 = vector.multi_reduction <maximumf>, %70, %cst_28 [1] : vector<4x8x8xf32> to vector<4x8xf32>
    %72 = vector.extract_strided_slice %69 {offsets = [0, 0], sizes = [32, 4], strides = [1, 1]} : vector<32x8xf32> to vector<32x4xf32>
    %73 = arith.maximumf %61, %72 : vector<32x4xf32>
    %74 = vector.extract_strided_slice %71 {offsets = [0, 0], sizes = [4, 4], strides = [1, 1]} : vector<4x8xf32> to vector<4x4xf32>
    %75 = vector.extract_strided_slice %9 {offsets = [6, 0], sizes = [1, 4], strides = [1, 1]} : vector<8x4xf32> to vector<1x4xf32>
    %76 = vector.broadcast %75 : vector<1x4xf32> to vector<4x4xf32>
    %77 = arith.mulf %74, %76 : vector<4x4xf32>
    %78 = arith.addf %66, %77 : vector<4x4xf32>
    %79 = vector.extract_strided_slice %69 {offsets = [0, 4], sizes = [32, 4], strides = [1, 1]} : vector<32x8xf32> to vector<32x4xf32>
    %80 = arith.maximumf %73, %79 : vector<32x4xf32>
    %81 = vector.extract_strided_slice %71 {offsets = [0, 4], sizes = [4, 4], strides = [1, 1]} : vector<4x8xf32> to vector<4x4xf32>
    %82 = vector.extract_strided_slice %9 {offsets = [7, 0], sizes = [1, 4], strides = [1, 1]} : vector<8x4xf32> to vector<1x4xf32>
    %83 = vector.broadcast %82 : vector<1x4xf32> to vector<4x4xf32>
    %84 = arith.mulf %81, %83 : vector<4x4xf32>
    %85 = arith.addf %78, %84 : vector<4x4xf32>
    %86 = vector.shape_cast %80 : vector<32x4xf32> to vector<4x8x4xf32>
    %c0_29 = arith.constant 0 : index
    %c0_30 = arith.constant 0 : index
    %87 = vector.load %arg17[%c0_29, %c0_30] : memref<8x4xf32, #tpu.memory_space<vmem>>, vector<8x4xf32>
    %88 = vector.shape_cast %87 : vector<8x4xf32> to vector<1x8x4xf32>
    %89 = vector.broadcast %88 : vector<1x8x4xf32> to vector<4x8x4xf32>
    %90 = arith.mulf %86, %89 : vector<4x8x4xf32>
    %cst_31 = arith.constant dense<0.000000e+00> : vector<4x4xf32>
    %91 = vector.multi_reduction <add>, %90, %cst_31 [1] : vector<4x8x4xf32> to vector<4x4xf32>
    %92 = arith.addf %91, %85 : vector<4x4xf32>
    %cst_32 = arith.constant 5.000000e-01 : f32
    %93 = vector.broadcast %cst_32 : f32 to vector<4x4xf32>
    %94 = arith.mulf %93, %92 : vector<4x4xf32>
    %c0_33 = arith.constant 0 : index
    %c0_34 = arith.constant 0 : index
    %95 = vector.load %arg14[%c0_33, %c0_34] : memref<4x4xf32, #tpu.memory_space<vmem>>, vector<4x4xf32>
    tpu.vector_store %arg14[%c0_33, %c0_34], %94 {strides = array<i32>} : memref<4x4xf32, #tpu.memory_space<vmem>>, vector<4x4xf32>,
    %96 = arith.addf %5, %94 : vector<4x4xf32>
    %c0_35 = arith.constant 0 : index
    %c0_36 = arith.constant 0 : index
    %97 = vector.load %arg15[%c0_35, %c0_36] : memref<4x4xf32, #tpu.memory_space<vmem>>, vector<4x4xf32>
    tpu.vector_store %arg15[%c0_35, %c0_36], %96 {strides = array<i32>} : memref<4x4xf32, #tpu.memory_space<vmem>>, vector<4x4xf32>,
    return
  }
  func.func @transform_0(%arg0: i32, %arg1: i32) -> (i32, i32) {
    %c0_i32 = arith.constant 0 : i32
    %c0_i32_0 = arith.constant 0 : i32
    return %arg1, %c0_i32 : i32, i32
  }
  func.func @transform_1(%arg0: i32, %arg1: i32) -> (i32, i32, i32) {
    %c0_i32 = arith.constant 0 : i32
    %c0_i32_0 = arith.constant 0 : i32
    %c0_i32_1 = arith.constant 0 : i32
    return %arg0, %c0_i32, %c0_i32_0 : i32, i32, i32
  }
  func.func @transform_2(%arg0: i32, %arg1: i32) -> (i32, i32, i32) {
    %c0_i32 = arith.constant 0 : i32
    %c0_i32_0 = arith.constant 0 : i32
    %c0_i32_1 = arith.constant 0 : i32
    return %arg1, %c0_i32, %c0_i32_0 : i32, i32, i32
  }
  func.func @transform_3(%arg0: i32, %arg1: i32) -> (i32, i32, i32) {
    %c0_i32 = arith.constant 0 : i32
    %c0_i32_0 = arith.constant 0 : i32
    %c0_i32_1 = arith.constant 0 : i32
    return %arg0, %c0_i32, %c0_i32_0 : i32, i32, i32
  }
  func.func @transform_4(%arg0: i32, %arg1: i32) -> (i32, i32, i32) {
    %c0_i32 = arith.constant 0 : i32
    %c0_i32_0 = arith.constant 0 : i32
    %c0_i32_1 = arith.constant 0 : i32
    return %c0_i32, %arg0, %c0_i32_0 : i32, i32, i32
  }
  func.func @transform_5(%arg0: i32, %arg1: i32) -> (i32, i32, i32) {
    %c0_i32 = arith.constant 0 : i32
    %c0_i32_0 = arith.constant 0 : i32
    %c0_i32_1 = arith.constant 0 : i32
    %c0_i32_2 = arith.constant 0 : i32
    return %c0_i32, %c0_i32_0, %c0_i32_1 : i32, i32, i32
  }
  func.func @transform_6(%arg0: i32, %arg1: i32) -> (i32, i32, i32) {
    %c0_i32 = arith.constant 0 : i32
    %c0_i32_0 = arith.constant 0 : i32
    %c0_i32_1 = arith.constant 0 : i32
    %c0_i32_2 = arith.constant 0 : i32
    return %c0_i32, %c0_i32_0, %c0_i32_1 : i32, i32, i32
  }
  func.func @transform_7(%arg0: i32, %arg1: i32) -> (i32, i32, i32) {
    %c0_i32 = arith.constant 0 : i32
    %c0_i32_0 = arith.constant 0 : i32
    %c0_i32_1 = arith.constant 0 : i32
    %c0_i32_2 = arith.constant 0 : i32
    return %c0_i32, %c0_i32_0, %c0_i32_1 : i32, i32, i32
  }
  func.func @transform_8(%arg0: i32, %arg1: i32) -> (i32, i32, i32) {
    %c0_i32 = arith.constant 0 : i32
    %c0_i32_0 = arith.constant 0 : i32
    %c0_i32_1 = arith.constant 0 : i32
    %c0_i32_2 = arith.constant 0 : i32
    return %c0_i32, %c0_i32_0, %c0_i32_1 : i32, i32, i32
  }
  func.func @transform_9(%arg0: i32, %arg1: i32) -> (i32, i32, i32) {
    %c0_i32 = arith.constant 0 : i32
    %c0_i32_0 = arith.constant 0 : i32
    %c0_i32_1 = arith.constant 0 : i32
    %c0_i32_2 = arith.constant 0 : i32
    return %c0_i32, %c0_i32_0, %c0_i32_1 : i32, i32, i32
  }
  func.func @transform_10(%arg0: i32, %arg1: i32) -> i32 {
    %c0_i32 = arith.constant 0 : i32
    %c0_i32_0 = arith.constant 0 : i32
    return %c0_i32 : i32
  }
  func.func @transform_11(%arg0: i32, %arg1: i32) -> (i32, i32) {
    %c0_i32 = arith.constant 0 : i32
    return %arg1, %arg0 : i32, i32
  }
  func.func @transform_12(%arg0: i32, %arg1: i32) -> (i32, i32) {
    %c0_i32 = arith.constant 0 : i32
    return %arg1, %arg0 : i32, i32
  }
  func.func @transform_13(%arg0: i32, %arg1: i32) -> (i32, i32) {
    %c0_i32 = arith.constant 0 : i32
    return %arg1, %arg0 : i32, i32
  }
}

module attributes {stable_mosaic.version = 11 : i64} {
  func.func @duq_sim_kernel(%arg0: i32, %arg1: i32, %arg2: memref<4x128xbf16, #tpu.memory_space<vmem>>, %arg3: memref<4x8x128xbf16, #tpu.memory_space<vmem>>, %arg4: memref<4x8x128xbf16, #tpu.memory_space<vmem>>, %arg5: memref<4x8x128xbf16, #tpu.memory_space<vmem>>, %arg6: memref<8x4x128xbf16, #tpu.memory_space<vmem>>, %arg7: memref<3x128x256xbf16, #tpu.memory_space<vmem>>, %arg8: memref<3x1x256xf32, #tpu.memory_space<vmem>>, %arg9: memref<3x256x128xbf16, #tpu.memory_space<vmem>>, %arg10: memref<3x1x128xf32, #tpu.memory_space<vmem>>, %arg11: memref<3x1x128xf32, #tpu.memory_space<vmem>>, %arg12: memref<3xf32, #tpu.memory_space<smem>>, %arg13: memref<4x4xf32, #tpu.memory_space<vmem>>, %arg14: memref<4x4xf32, #tpu.memory_space<vmem>>, %arg15: memref<4x4xf32, #tpu.memory_space<vmem>>, %arg16: memref<4x128xbf16, #tpu.memory_space<vmem>>, %arg17: memref<8x4xf32, #tpu.memory_space<vmem>>, %arg18: memref<8x4xf32, #tpu.memory_space<vmem>>) attributes {dimension_semantics = [#tpu.dimension_semantics<parallel>, #tpu.dimension_semantics<arbitrary>], iteration_bounds = array<i64: 1, 1>, scalar_prefetch = 0 : i64, scratch_operands = 3 : i64, tpu.core_type = #tpu.core_type<tc>, window_params = [{transform_indices = @transform_0, window_bounds = array<i64: 4, 128>}, {transform_indices = @transform_1, window_bounds = array<i64: 4, 8, 128>}, {transform_indices = @transform_2, window_bounds = array<i64: 4, 8, 128>}, {transform_indices = @transform_3, window_bounds = array<i64: 4, 8, 128>}, {transform_indices = @transform_4, window_bounds = array<i64: 8, 4, 128>}, {pipeline_mode = #tpu.pipeline_mode<synchronous>, transform_indices = @transform_5, window_bounds = array<i64: 3, 128, 256>}, {pipeline_mode = #tpu.pipeline_mode<synchronous>, transform_indices = @transform_6, window_bounds = array<i64: 3, 1, 256>}, {pipeline_mode = #tpu.pipeline_mode<synchronous>, transform_indices = @transform_7, window_bounds = array<i64: 3, 256, 128>}, {pipeline_mode = #tpu.pipeline_mode<synchronous>, transform_indices = @transform_8, window_bounds = array<i64: 3, 1, 128>}, {pipeline_mode = #tpu.pipeline_mode<synchronous>, transform_indices = @transform_9, window_bounds = array<i64: 3, 1, 128>}, {transform_indices = @transform_10, window_bounds = array<i64: 3>}, {transform_indices = @transform_11, window_bounds = array<i64: 4, 4>}, {transform_indices = @transform_12, window_bounds = array<i64: 4, 4>}, {transform_indices = @transform_13, window_bounds = array<i64: 4, 4>}]} {
    %c0_i32 = arith.constant 0 : i32
    %0 = arith.cmpi eq, %arg1, %c0_i32 : i32
    %1 = arith.extui %0 : i1 to i32
    %c0_i32_0 = arith.constant 0 : i32
    %2 = arith.cmpi ne, %1, %c0_i32_0 : i32
    scf.if %2 {
      %c0_37 = arith.constant 0 : index
      %c0_38 = arith.constant 0 : index
      %c0_39 = arith.constant 0 : index
      %98 = vector.load %arg3[%c0_37, %c0_38, %c0_39] : memref<4x8x128xbf16, #tpu.memory_space<vmem>>, vector<4x8x128xbf16>
      %99 = vector.shape_cast %98 : vector<4x8x128xbf16> to vector<32x128xbf16>
      %c0_40 = arith.constant 0 : index
      %c0_41 = arith.constant 0 : index
      %c0_42 = arith.constant 0 : index
      %100 = vector.load %arg7[%c0_40, %c0_41, %c0_42] : memref<3x128x256xbf16, #tpu.memory_space<vmem>>, vector<1x128x256xbf16>
      %101 = vector.shape_cast %100 : vector<1x128x256xbf16> to vector<128x256xbf16>
      %cst_43 = arith.constant dense<0.000000e+00> : vector<32x256xf32>
      %102 = tpu.matmul %99, %101, %cst_43 {dimension_numbers = #tpu.dot_dimension_numbers<[1], [0], [0], [1], [0, 0, 1, 1], [], []>} : vector<32x128xbf16>, vector<128x256xbf16>, vector<32x256xf32> -> vector<32x256xf32>
      %c0_44 = arith.constant 0 : index
      %c0_45 = arith.constant 0 : index
      %c0_46 = arith.constant 0 : index
      %103 = vector.load %arg8[%c0_44, %c0_45, %c0_46] : memref<3x1x256xf32, #tpu.memory_space<vmem>>, vector<1x1x256xf32>
      %104 = vector.shape_cast %103 : vector<1x1x256xf32> to vector<1x256xf32>
      %105 = vector.broadcast %104 : vector<1x256xf32> to vector<32x256xf32>
      %106 = arith.addf %102, %105 : vector<32x256xf32>
      %cst_47 = arith.constant 0.000000e+00 : f32
      %107 = vector.broadcast %cst_47 : f32 to vector<32x256xf32>
      %108 = arith.maximumf %106, %107 : vector<32x256xf32>
      %109 = arith.truncf %108 : vector<32x256xf32> to vector<32x256xbf16>
      %c0_48 = arith.constant 0 : index
      %c0_49 = arith.constant 0 : index
      %c0_50 = arith.constant 0 : index
      %110 = vector.load %arg9[%c0_48, %c0_49, %c0_50] : memref<3x256x128xbf16, #tpu.memory_space<vmem>>, vector<1x256x128xbf16>
      %111 = vector.shape_cast %110 : vector<1x256x128xbf16> to vector<256x128xbf16>
      %cst_51 = arith.constant dense<0.000000e+00> : vector<32x128xf32>
      %112 = tpu.matmul %109, %111, %cst_51 {dimension_numbers = #tpu.dot_dimension_numbers<[1], [0], [0], [1], [0, 0, 1, 1], [], []>} : vector<32x256xbf16>, vector<256x128xbf16>, vector<32x128xf32> -> vector<32x128xf32>
      %c0_52 = arith.constant 0 : index
      %c0_53 = arith.constant 0 : index
      %c0_54 = arith.constant 0 : index
      %113 = vector.load %arg10[%c0_52, %c0_53, %c0_54] : memref<3x1x128xf32, #tpu.memory_space<vmem>>, vector<1x1x128xf32>
      %114 = vector.shape_cast %113 : vector<1x1x128xf32> to vector<1x128xf32>
      %115 = vector.broadcast %114 : vector<1x128xf32> to vector<32x128xf32>
      %116 = arith.addf %112, %115 : vector<32x128xf32>
      %cst_55 = arith.constant 0.000000e+00 : f32
      %117 = vector.broadcast %cst_55 : f32 to vector<32x128xf32>
      %118 = arith.maximumf %116, %117 : vector<32x128xf32>
      %119 = vector.shape_cast %118 : vector<32x128xf32> to vector<4x8x128xf32>
      %c0_56 = arith.constant 0 : index
      %c0_57 = arith.constant 0 : index
      %c0_58 = arith.constant 0 : index
      %120 = vector.load %arg11[%c0_56, %c0_57, %c0_58] : memref<3x1x128xf32, #tpu.memory_space<vmem>>, vector<1x1x128xf32>
      %121 = vector.shape_cast %120 : vector<1x1x128xf32> to vector<1x128xf32>
      %122 = vector.shape_cast %121 : vector<1x128xf32> to vector<1x1x128xf32>
      %123 = vector.broadcast %122 : vector<1x1x128xf32> to vector<4x8x128xf32>
      %124 = arith.mulf %119, %123 : vector<4x8x128xf32>
      %cst_59 = arith.constant dense<0.000000e+00> : vector<4x8xf32>
      %125 = vector.multi_reduction <add>, %124, %cst_59 [2] : vector<4x8x128xf32> to vector<4x8xf32>
      %126 = vector.shape_cast %125 : vector<4x8xf32> to vector<4x8x1xf32>
      %c0_60 = arith.constant 0 : index
      %127 = memref.load %arg12[%c0_60] : memref<3xf32, #tpu.memory_space<smem>>
      %128 = vector.broadcast %127 : f32 to vector<4x8x1xf32>
      %129 = arith.addf %126, %128 : vector<4x8x1xf32>
      %130 = arith.extf %98 : vector<4x8x128xbf16> to vector<4x8x128xf32>
      %131 = vector.broadcast %129 : vector<4x8x1xf32> to vector<4x8x128xf32>
      %132 = arith.mulf %130, %131 : vector<4x8x128xf32>
      %cst_61 = arith.constant dense<0.000000e+00> : vector<4x128xf32>
      %133 = vector.multi_reduction <add>, %132, %cst_61 [1] : vector<4x8x128xf32> to vector<4x128xf32>
      %134 = arith.mulf %133, %133 : vector<4x128xf32>
      %cst_62 = arith.constant dense<0.000000e+00> : vector<4xf32>
      %135 = vector.multi_reduction <add>, %134, %cst_62 [1] : vector<4x128xf32> to vector<4xf32>
      %136 = vector.shape_cast %135 : vector<4xf32> to vector<4x1xf32>
      %137 = math.rsqrt %136 : vector<4x1xf32>
      %138 = vector.broadcast %137 : vector<4x1xf32> to vector<4x128xf32>
      %139 = arith.mulf %133, %138 : vector<4x128xf32>
      %140 = arith.truncf %139 : vector<4x128xf32> to vector<4x128xbf16>
      %c0_63 = arith.constant 0 : index
      %c0_64 = arith.constant 0 : index
      %141 = vector.load %arg16[%c0_63, %c0_64] : memref<4x128xbf16, #tpu.memory_space<vmem>>, vector<4x128xbf16>
      tpu.vector_store %arg16[%c0_63, %c0_64], %140 {strides = array<i32>} : memref<4x128xbf16, #tpu.memory_space<vmem>>, vector<4x128xbf16>,
      %c0_65 = arith.constant 0 : index
      %c0_66 = arith.constant 0 : index
      %c0_67 = arith.constant 0 : index
      %142 = vector.load %arg5[%c0_65, %c0_66, %c0_67] : memref<4x8x128xbf16, #tpu.memory_space<vmem>>, vector<4x8x128xbf16>
      %143 = vector.shape_cast %142 : vector<4x8x128xbf16> to vector<32x128xbf16>
      %c1 = arith.constant 1 : index
      %c0_68 = arith.constant 0 : index
      %c0_69 = arith.constant 0 : index
      %144 = vector.load %arg7[%c1, %c0_68, %c0_69] : memref<3x128x256xbf16, #tpu.memory_space<vmem>>, vector<1x128x256xbf16>
      %145 = vector.shape_cast %144 : vector<1x128x256xbf16> to vector<128x256xbf16>
      %cst_70 = arith.constant dense<0.000000e+00> : vector<32x256xf32>
      %146 = tpu.matmul %143, %145, %cst_70 {dimension_numbers = #tpu.dot_dimension_numbers<[1], [0], [0], [1], [0, 0, 1, 1], [], []>} : vector<32x128xbf16>, vector<128x256xbf16>, vector<32x256xf32> -> vector<32x256xf32>
      %c1_71 = arith.constant 1 : index
      %c0_72 = arith.constant 0 : index
      %c0_73 = arith.constant 0 : index
      %147 = vector.load %arg8[%c1_71, %c0_72, %c0_73] : memref<3x1x256xf32, #tpu.memory_space<vmem>>, vector<1x1x256xf32>
      %148 = vector.shape_cast %147 : vector<1x1x256xf32> to vector<1x256xf32>
      %149 = vector.broadcast %148 : vector<1x256xf32> to vector<32x256xf32>
      %150 = arith.addf %146, %149 : vector<32x256xf32>
      %cst_74 = arith.constant 0.000000e+00 : f32
      %151 = vector.broadcast %cst_74 : f32 to vector<32x256xf32>
      %152 = arith.maximumf %150, %151 : vector<32x256xf32>
      %153 = arith.truncf %152 : vector<32x256xf32> to vector<32x256xbf16>
      %c1_75 = arith.constant 1 : index
      %c0_76 = arith.constant 0 : index
      %c0_77 = arith.constant 0 : index
      %154 = vector.load %arg9[%c1_75, %c0_76, %c0_77] : memref<3x256x128xbf16, #tpu.memory_space<vmem>>, vector<1x256x128xbf16>
      %155 = vector.shape_cast %154 : vector<1x256x128xbf16> to vector<256x128xbf16>
      %cst_78 = arith.constant dense<0.000000e+00> : vector<32x128xf32>
      %156 = tpu.matmul %153, %155, %cst_78 {dimension_numbers = #tpu.dot_dimension_numbers<[1], [0], [0], [1], [0, 0, 1, 1], [], []>} : vector<32x256xbf16>, vector<256x128xbf16>, vector<32x128xf32> -> vector<32x128xf32>
      %c1_79 = arith.constant 1 : index
      %c0_80 = arith.constant 0 : index
      %c0_81 = arith.constant 0 : index
      %157 = vector.load %arg10[%c1_79, %c0_80, %c0_81] : memref<3x1x128xf32, #tpu.memory_space<vmem>>, vector<1x1x128xf32>
      %158 = vector.shape_cast %157 : vector<1x1x128xf32> to vector<1x128xf32>
      %159 = vector.broadcast %158 : vector<1x128xf32> to vector<32x128xf32>
      %160 = arith.addf %156, %159 : vector<32x128xf32>
      %cst_82 = arith.constant 0.000000e+00 : f32
      %161 = vector.broadcast %cst_82 : f32 to vector<32x128xf32>
      %162 = arith.maximumf %160, %161 : vector<32x128xf32>
      %163 = vector.shape_cast %162 : vector<32x128xf32> to vector<4x8x128xf32>
      %c1_83 = arith.constant 1 : index
      %c0_84 = arith.constant 0 : index
      %c0_85 = arith.constant 0 : index
      %164 = vector.load %arg11[%c1_83, %c0_84, %c0_85] : memref<3x1x128xf32, #tpu.memory_space<vmem>>, vector<1x1x128xf32>
      %165 = vector.shape_cast %164 : vector<1x1x128xf32> to vector<1x128xf32>
      %166 = vector.shape_cast %165 : vector<1x128xf32> to vector<1x1x128xf32>
      %167 = vector.broadcast %166 : vector<1x1x128xf32> to vector<4x8x128xf32>
      %168 = arith.mulf %163, %167 : vector<4x8x128xf32>
      %cst_86 = arith.constant dense<0.000000e+00> : vector<4x8xf32>
      %169 = vector.multi_reduction <add>, %168, %cst_86 [2] : vector<4x8x128xf32> to vector<4x8xf32>
      %c1_87 = arith.constant 1 : index
      %170 = memref.load %arg12[%c1_87] : memref<3xf32, #tpu.memory_space<smem>>
      %171 = vector.broadcast %170 : f32 to vector<4x8xf32>
      %172 = arith.addf %169, %171 : vector<4x8xf32>
      %173 = tpu.transpose %172, [1, 0] : vector<4x8xf32> -> vector<8x4xf32>
      %c0_88 = arith.constant 0 : index
      %c0_89 = arith.constant 0 : index
      %174 = vector.load %arg17[%c0_88, %c0_89] : memref<8x4xf32, #tpu.memory_space<vmem>>, vector<8x4xf32>
      tpu.vector_store %arg17[%c0_88, %c0_89], %173 {strides = array<i32>} : memref<8x4xf32, #tpu.memory_space<vmem>>, vector<8x4xf32>,
      %c0_90 = arith.constant 0 : index
      %c0_91 = arith.constant 0 : index
      %c0_92 = arith.constant 0 : index
      %175 = vector.load %arg6[%c0_90, %c0_91, %c0_92] : memref<8x4x128xbf16, #tpu.memory_space<vmem>>, vector<8x4x128xbf16>
      %176 = vector.shape_cast %175 : vector<8x4x128xbf16> to vector<32x128xbf16>
      %c2_93 = arith.constant 2 : index
      %c0_94 = arith.constant 0 : index
      %c0_95 = arith.constant 0 : index
      %177 = vector.load %arg7[%c2_93, %c0_94, %c0_95] : memref<3x128x256xbf16, #tpu.memory_space<vmem>>, vector<1x128x256xbf16>
      %178 = vector.shape_cast %177 : vector<1x128x256xbf16> to vector<128x256xbf16>
      %cst_96 = arith.constant dense<0.000000e+00> : vector<32x256xf32>
      %179 = tpu.matmul %176, %178, %cst_96 {dimension_numbers = #tpu.dot_dimension_numbers<[1], [0], [0], [1], [0, 0, 1, 1], [], []>} : vector<32x128xbf16>, vector<128x256xbf16>, vector<32x256xf32> -> vector<32x256xf32>
      %c2_97 = arith.constant 2 : index
      %c0_98 = arith.constant 0 : index
      %c0_99 = arith.constant 0 : index
      %180 = vector.load %arg8[%c2_97, %c0_98, %c0_99] : memref<3x1x256xf32, #tpu.memory_space<vmem>>, vector<1x1x256xf32>
      %181 = vector.shape_cast %180 : vector<1x1x256xf32> to vector<1x256xf32>
      %182 = vector.broadcast %181 : vector<1x256xf32> to vector<32x256xf32>
      %183 = arith.addf %179, %182 : vector<32x256xf32>
      %cst_100 = arith.constant 0.000000e+00 : f32
      %184 = vector.broadcast %cst_100 : f32 to vector<32x256xf32>
      %185 = arith.maximumf %183, %184 : vector<32x256xf32>
      %186 = arith.truncf %185 : vector<32x256xf32> to vector<32x256xbf16>
      %c2_101 = arith.constant 2 : index
      %c0_102 = arith.constant 0 : index
      %c0_103 = arith.constant 0 : index
      %187 = vector.load %arg9[%c2_101, %c0_102, %c0_103] : memref<3x256x128xbf16, #tpu.memory_space<vmem>>, vector<1x256x128xbf16>
      %188 = vector.shape_cast %187 : vector<1x256x128xbf16> to vector<256x128xbf16>
      %cst_104 = arith.constant dense<0.000000e+00> : vector<32x128xf32>
      %189 = tpu.matmul %186, %188, %cst_104 {dimension_numbers = #tpu.dot_dimension_numbers<[1], [0], [0], [1], [0, 0, 1, 1], [], []>} : vector<32x256xbf16>, vector<256x128xbf16>, vector<32x128xf32> -> vector<32x128xf32>
      %c2_105 = arith.constant 2 : index
      %c0_106 = arith.constant 0 : index
      %c0_107 = arith.constant 0 : index
      %190 = vector.load %arg10[%c2_105, %c0_106, %c0_107] : memref<3x1x128xf32, #tpu.memory_space<vmem>>, vector<1x1x128xf32>
      %191 = vector.shape_cast %190 : vector<1x1x128xf32> to vector<1x128xf32>
      %192 = vector.broadcast %191 : vector<1x128xf32> to vector<32x128xf32>
      %193 = arith.addf %189, %192 : vector<32x128xf32>
      %cst_108 = arith.constant 0.000000e+00 : f32
      %194 = vector.broadcast %cst_108 : f32 to vector<32x128xf32>
      %195 = arith.maximumf %193, %194 : vector<32x128xf32>
      %196 = vector.shape_cast %195 : vector<32x128xf32> to vector<8x4x128xf32>
      %c2_109 = arith.constant 2 : index
      %c0_110 = arith.constant 0 : index
      %c0_111 = arith.constant 0 : index
      %197 = vector.load %arg11[%c2_109, %c0_110, %c0_111] : memref<3x1x128xf32, #tpu.memory_space<vmem>>, vector<1x1x128xf32>
      %198 = vector.shape_cast %197 : vector<1x1x128xf32> to vector<1x128xf32>
      %199 = vector.shape_cast %198 : vector<1x128xf32> to vector<1x1x128xf32>
      %200 = vector.broadcast %199 : vector<1x1x128xf32> to vector<8x4x128xf32>
      %201 = arith.mulf %196, %200 : vector<8x4x128xf32>
      %cst_112 = arith.constant dense<0.000000e+00> : vector<8x4xf32>
      %202 = vector.multi_reduction <add>, %201, %cst_112 [2] : vector<8x4x128xf32> to vector<8x4xf32>
      %c2_113 = arith.constant 2 : index
      %203 = memref.load %arg12[%c2_113] : memref<3xf32, #tpu.memory_space<smem>>
      %204 = vector.broadcast %203 : f32 to vector<8x4xf32>
      %205 = arith.addf %202, %204 : vector<8x4xf32>
      %c0_114 = arith.constant 0 : index
      %c0_115 = arith.constant 0 : index
      %206 = vector.load %arg18[%c0_114, %c0_115] : memref<8x4xf32, #tpu.memory_space<vmem>>, vector<8x4xf32>
      tpu.vector_store %arg18[%c0_114, %c0_115], %205 {strides = array<i32>} : memref<8x4xf32, #tpu.memory_space<vmem>>, vector<8x4xf32>,
    } else {
    }
    %c0 = arith.constant 0 : index
    %c0_1 = arith.constant 0 : index
    %3 = vector.load %arg2[%c0, %c0_1] : memref<4x128xbf16, #tpu.memory_space<vmem>>, vector<4x128xbf16>
    %c0_2 = arith.constant 0 : index
    %c0_3 = arith.constant 0 : index
    %4 = vector.load %arg16[%c0_2, %c0_3] : memref<4x128xbf16, #tpu.memory_space<vmem>>, vector<4x128xbf16>
    %cst = arith.constant dense<0.000000e+00> : vector<4x4xf32>
    %5 = tpu.matmul %3, %4, %cst {dimension_numbers = #tpu.dot_dimension_numbers<[1], [1], [0], [0], [0, 0, 1, 0], [], []>} : vector<4x128xbf16>, vector<4x128xbf16>, vector<4x4xf32> -> vector<4x4xf32>
    %c0_4 = arith.constant 0 : index
    %c0_5 = arith.constant 0 : index
    %6 = vector.load %arg13[%c0_4, %c0_5] : memref<4x4xf32, #tpu.memory_space<vmem>>, vector<4x4xf32>
    tpu.vector_store %arg13[%c0_4, %c0_5], %5 {strides = array<i32>} : memref<4x4xf32, #tpu.memory_space<vmem>>, vector<4x4xf32>,
    %c0_6 = arith.constant 0 : index
    %c0_7 = arith.constant 0 : index
    %c0_8 = arith.constant 0 : index
    %7 = vector.load %arg4[%c0_6, %c0_7, %c0_8] : memref<4x8x128xbf16, #tpu.memory_space<vmem>>, vector<4x8x128xbf16>
    %8 = vector.shape_cast %7 : vector<4x8x128xbf16> to vector<32x128xbf16>
    %c0_9 = arith.constant 0 : index
    %c0_10 = arith.constant 0 : index
    %9 = vector.load %arg18[%c0_9, %c0_10] : memref<8x4xf32, #tpu.memory_space<vmem>>, vector<8x4xf32>
    %cst_11 = arith.constant 0.000000e+00 : f32
    %10 = vector.broadcast %cst_11 : f32 to vector<4x4xf32>
    %c0_12 = arith.constant 0 : index
    %c0_13 = arith.constant 0 : index
    %c0_14 = arith.constant 0 : index
    %11 = vector.load %arg6[%c0_12, %c0_13, %c0_14] : memref<8x4x128xbf16, #tpu.memory_space<vmem>>, vector<2x4x128xbf16>
    %12 = vector.shape_cast %11 : vector<2x4x128xbf16> to vector<8x128xbf16>
    %cst_15 = arith.constant dense<0.000000e+00> : vector<32x8xf32>
    %13 = tpu.matmul %8, %12, %cst_15 {dimension_numbers = #tpu.dot_dimension_numbers<[1], [1], [0], [0], [0, 0, 1, 0], [], []>} : vector<32x128xbf16>, vector<8x128xbf16>, vector<32x8xf32> -> vector<32x8xf32>
    %14 = vector.shape_cast %13 : vector<32x8xf32> to vector<4x8x8xf32>
    %cst_16 = arith.constant dense<0xFF800000> : vector<4x8xf32>
    %15 = vector.multi_reduction <maximumf>, %14, %cst_16 [1] : vector<4x8x8xf32> to vector<4x8xf32>
    %16 = vector.extract_strided_slice %13 {offsets = [0, 0], sizes = [32, 4], strides = [1, 1]} : vector<32x8xf32> to vector<32x4xf32>
    %17 = vector.extract_strided_slice %15 {offsets = [0, 0], sizes = [4, 4], strides = [1, 1]} : vector<4x8xf32> to vector<4x4xf32>
    %18 = vector.extract_strided_slice %9 {offsets = [0, 0], sizes = [1, 4], strides = [1, 1]} : vector<8x4xf32> to vector<1x4xf32>
    %19 = vector.broadcast %18 : vector<1x4xf32> to vector<4x4xf32>
    %20 = arith.mulf %17, %19 : vector<4x4xf32>
    %21 = arith.addf %10, %20 : vector<4x4xf32>
    %22 = vector.extract_strided_slice %13 {offsets = [0, 4], sizes = [32, 4], strides = [1, 1]} : vector<32x8xf32> to vector<32x4xf32>
    %23 = arith.maximumf %16, %22 : vector<32x4xf32>
    %24 = vector.extract_strided_slice %15 {offsets = [0, 4], sizes = [4, 4], strides = [1, 1]} : vector<4x8xf32> to vector<4x4xf32>
    %25 = vector.extract_strided_slice %9 {offsets = [1, 0], sizes = [1, 4], strides = [1, 1]} : vector<8x4xf32> to vector<1x4xf32>
    %26 = vector.broadcast %25 : vector<1x4xf32> to vector<4x4xf32>
    %27 = arith.mulf %24, %26 : vector<4x4xf32>
    %28 = arith.addf %21, %27 : vector<4x4xf32>
    %c2 = arith.constant 2 : index
    %c0_17 = arith.constant 0 : index
    %c0_18 = arith.constant 0 : index
    %29 = vector.load %arg6[%c2, %c0_17, %c0_18] : memref<8x4x128xbf16, #tpu.memory_space<vmem>>, vector<2x4x128xbf16>
    %30 = vector.shape_cast %29 : vector<2x4x128xbf16> to vector<8x128xbf16>
    %cst_19 = arith.constant dense<0.000000e+00> : vector<32x8xf32>
    %31 = tpu.matmul %8, %30, %cst_19 {dimension_numbers = #tpu.dot_dimension_numbers<[1], [1], [0], [0], [0, 0, 1, 0], [], []>} : vector<32x128xbf16>, vector<8x128xbf16>, vector<32x8xf32> -> vector<32x8xf32>
    %32 = vector.shape_cast %31 : vector<32x8xf32> to vector<4x8x8xf32>
    %cst_20 = arith.constant dense<0xFF800000> : vector<4x8xf32>
    %33 = vector.multi_reduction <maximumf>, %32, %cst_20 [1] : vector<4x8x8xf32> to vector<4x8xf32>
    %34 = vector.extract_strided_slice %31 {offsets = [0, 0], sizes = [32, 4], strides = [1, 1]} : vector<32x8xf32> to vector<32x4xf32>
    %35 = arith.maximumf %23, %34 : vector<32x4xf32>
    %36 = vector.extract_strided_slice %33 {offsets = [0, 0], sizes = [4, 4], strides = [1, 1]} : vector<4x8xf32> to vector<4x4xf32>
    %37 = vector.extract_strided_slice %9 {offsets = [2, 0], sizes = [1, 4], strides = [1, 1]} : vector<8x4xf32> to vector<1x4xf32>
    %38 = vector.broadcast %37 : vector<1x4xf32> to vector<4x4xf32>
    %39 = arith.mulf %36, %38 : vector<4x4xf32>
    %40 = arith.addf %28, %39 : vector<4x4xf32>
    %41 = vector.extract_strided_slice %31 {offsets = [0, 4], sizes = [32, 4], strides = [1, 1]} : vector<32x8xf32> to vector<32x4xf32>
    %42 = arith.maximumf %35, %41 : vector<32x4xf32>
    %43 = vector.extract_strided_slice %33 {offsets = [0, 4], sizes = [4, 4], strides = [1, 1]} : vector<4x8xf32> to vector<4x4xf32>
    %44 = vector.extract_strided_slice %9 {offsets = [3, 0], sizes = [1, 4], strides = [1, 1]} : vector<8x4xf32> to vector<1x4xf32>
    %45 = vector.broadcast %44 : vector<1x4xf32> to vector<4x4xf32>
    %46 = arith.mulf %43, %45 : vector<4x4xf32>
    %47 = arith.addf %40, %46 : vector<4x4xf32>
    %c4 = arith.constant 4 : index
    %c0_21 = arith.constant 0 : index
    %c0_22 = arith.constant 0 : index
    %48 = vector.load %arg6[%c4, %c0_21, %c0_22] : memref<8x4x128xbf16, #tpu.memory_space<vmem>>, vector<2x4x128xbf16>
    %49 = vector.shape_cast %48 : vector<2x4x128xbf16> to vector<8x128xbf16>
    %cst_23 = arith.constant dense<0.000000e+00> : vector<32x8xf32>
    %50 = tpu.matmul %8, %49, %cst_23 {dimension_numbers = #tpu.dot_dimension_numbers<[1], [1], [0], [0], [0, 0, 1, 0], [], []>} : vector<32x128xbf16>, vector<8x128xbf16>, vector<32x8xf32> -> vector<32x8xf32>
    %51 = vector.shape_cast %50 : vector<32x8xf32> to vector<4x8x8xf32>
    %cst_24 = arith.constant dense<0xFF800000> : vector<4x8xf32>
    %52 = vector.multi_reduction <maximumf>, %51, %cst_24 [1] : vector<4x8x8xf32> to vector<4x8xf32>
    %53 = vector.extract_strided_slice %50 {offsets = [0, 0], sizes = [32, 4], strides = [1, 1]} : vector<32x8xf32> to vector<32x4xf32>
    %54 = arith.maximumf %42, %53 : vector<32x4xf32>
    %55 = vector.extract_strided_slice %52 {offsets = [0, 0], sizes = [4, 4], strides = [1, 1]} : vector<4x8xf32> to vector<4x4xf32>
    %56 = vector.extract_strided_slice %9 {offsets = [4, 0], sizes = [1, 4], strides = [1, 1]} : vector<8x4xf32> to vector<1x4xf32>
    %57 = vector.broadcast %56 : vector<1x4xf32> to vector<4x4xf32>
    %58 = arith.mulf %55, %57 : vector<4x4xf32>
    %59 = arith.addf %47, %58 : vector<4x4xf32>
    %60 = vector.extract_strided_slice %50 {offsets = [0, 4], sizes = [32, 4], strides = [1, 1]} : vector<32x8xf32> to vector<32x4xf32>
    %61 = arith.maximumf %54, %60 : vector<32x4xf32>
    %62 = vector.extract_strided_slice %52 {offsets = [0, 4], sizes = [4, 4], strides = [1, 1]} : vector<4x8xf32> to vector<4x4xf32>
    %63 = vector.extract_strided_slice %9 {offsets = [5, 0], sizes = [1, 4], strides = [1, 1]} : vector<8x4xf32> to vector<1x4xf32>
    %64 = vector.broadcast %63 : vector<1x4xf32> to vector<4x4xf32>
    %65 = arith.mulf %62, %64 : vector<4x4xf32>
    %66 = arith.addf %59, %65 : vector<4x4xf32>
    %c6 = arith.constant 6 : index
    %c0_25 = arith.constant 0 : index
    %c0_26 = arith.constant 0 : index
    %67 = vector.load %arg6[%c6, %c0_25, %c0_26] : memref<8x4x128xbf16, #tpu.memory_space<vmem>>, vector<2x4x128xbf16>
    %68 = vector.shape_cast %67 : vector<2x4x128xbf16> to vector<8x128xbf16>
    %cst_27 = arith.constant dense<0.000000e+00> : vector<32x8xf32>
    %69 = tpu.matmul %8, %68, %cst_27 {dimension_numbers = #tpu.dot_dimension_numbers<[1], [1], [0], [0], [0, 0, 1, 0], [], []>} : vector<32x128xbf16>, vector<8x128xbf16>, vector<32x8xf32> -> vector<32x8xf32>
    %70 = vector.shape_cast %69 : vector<32x8xf32> to vector<4x8x8xf32>
    %cst_28 = arith.constant dense<0xFF800000> : vector<4x8xf32>
    %71 = vector.multi_reduction <maximumf>, %70, %cst_28 [1] : vector<4x8x8xf32> to vector<4x8xf32>
    %72 = vector.extract_strided_slice %69 {offsets = [0, 0], sizes = [32, 4], strides = [1, 1]} : vector<32x8xf32> to vector<32x4xf32>
    %73 = arith.maximumf %61, %72 : vector<32x4xf32>
    %74 = vector.extract_strided_slice %71 {offsets = [0, 0], sizes = [4, 4], strides = [1, 1]} : vector<4x8xf32> to vector<4x4xf32>
    %75 = vector.extract_strided_slice %9 {offsets = [6, 0], sizes = [1, 4], strides = [1, 1]} : vector<8x4xf32> to vector<1x4xf32>
    %76 = vector.broadcast %75 : vector<1x4xf32> to vector<4x4xf32>
    %77 = arith.mulf %74, %76 : vector<4x4xf32>
    %78 = arith.addf %66, %77 : vector<4x4xf32>
    %79 = vector.extract_strided_slice %69 {offsets = [0, 4], sizes = [32, 4], strides = [1, 1]} : vector<32x8xf32> to vector<32x4xf32>
    %80 = arith.maximumf %73, %79 : vector<32x4xf32>
    %81 = vector.extract_strided_slice %71 {offsets = [0, 4], sizes = [4, 4], strides = [1, 1]} : vector<4x8xf32> to vector<4x4xf32>
    %82 = vector.extract_strided_slice %9 {offsets = [7, 0], sizes = [1, 4], strides = [1, 1]} : vector<8x4xf32> to vector<1x4xf32>
    %83 = vector.broadcast %82 : vector<1x4xf32> to vector<4x4xf32>
    %84 = arith.mulf %81, %83 : vector<4x4xf32>
    %85 = arith.addf %78, %84 : vector<4x4xf32>
    %86 = vector.shape_cast %80 : vector<32x4xf32> to vector<4x8x4xf32>
    %c0_29 = arith.constant 0 : index
    %c0_30 = arith.constant 0 : index
    %87 = vector.load %arg17[%c0_29, %c0_30] : memref<8x4xf32, #tpu.memory_space<vmem>>, vector<8x4xf32>
    %88 = vector.shape_cast %87 : vector<8x4xf32> to vector<1x8x4xf32>
    %89 = vector.broadcast %88 : vector<1x8x4xf32> to vector<4x8x4xf32>
    %90 = arith.mulf %86, %89 : vector<4x8x4xf32>
    %cst_31 = arith.constant dense<0.000000e+00> : vector<4x4xf32>
    %91 = vector.multi_reduction <add>, %90, %cst_31 [1] : vector<4x8x4xf32> to vector<4x4xf32>
    %92 = arith.addf %91, %85 : vector<4x4xf32>
    %cst_32 = arith.constant 5.000000e-01 : f32
    %93 = vector.broadcast %cst_32 : f32 to vector<4x4xf32>
    %94 = arith.mulf %93, %92 : vector<4x4xf32>
    %c0_33 = arith.constant 0 : index
    %c0_34 = arith.constant 0 : index
    %95 = vector.load %arg14[%c0_33, %c0_34] : memref<4x4xf32, #tpu.memory_space<vmem>>, vector<4x4xf32>
    tpu.vector_store %arg14[%c0_33, %c0_34], %94 {strides = array<i32>} : memref<4x4xf32, #tpu.memory_space<vmem>>, vector<4x4xf32>,
    %96 = arith.addf %5, %94 : vector<4x4xf32>
    %c0_35 = arith.constant 0 : index
    %c0_36 = arith.constant 0 : index
    %97 = vector.load %arg15[%c0_35, %c0_36] : memref<4x4xf32, #tpu.memory_space<vmem>>, vector<4x4xf32>
    tpu.vector_store %arg15[%c0_35, %c0_36], %96 {strides = array<i32>} : memref<4x4xf32, #tpu.memory_space<vmem>>, vector<4x4xf32>,
    return
  }
  func.func @transform_0(%arg0: i32, %arg1: i32) -> (i32, i32) {
    %c0_i32 = arith.constant 0 : i32
    %c0_i32_0 = arith.constant 0 : i32
    return %arg1, %c0_i32 : i32, i32
  }
  func.func @transform_1(%arg0: i32, %arg1: i32) -> (i32, i32, i32) {
    %c0_i32 = arith.constant 0 : i32
    %c0_i32_0 = arith.constant 0 : i32
    %c0_i32_1 = arith.constant 0 : i32
    return %arg0, %c0_i32, %c0_i32_0 : i32, i32, i32
  }
  func.func @transform_2(%arg0: i32, %arg1: i32) -> (i32, i32, i32) {
    %c0_i32 = arith.constant 0 : i32
    %c0_i32_0 = arith.constant 0 : i32
    %c0_i32_1 = arith.constant 0 : i32
    return %arg1, %c0_i32, %c0_i32_0 : i32, i32, i32
  }
  func.func @transform_3(%arg0: i32, %arg1: i32) -> (i32, i32, i32) {
    %c0_i32 = arith.constant 0 : i32
    %c0_i32_0 = arith.constant 0 : i32
    %c0_i32_1 = arith.constant 0 : i32
    return %arg0, %c0_i32, %c0_i32_0 : i32, i32, i32
  }
  func.func @transform_4(%arg0: i32, %arg1: i32) -> (i32, i32, i32) {
    %c0_i32 = arith.constant 0 : i32
    %c0_i32_0 = arith.constant 0 : i32
    %c0_i32_1 = arith.constant 0 : i32
    return %c0_i32, %arg0, %c0_i32_0 : i32, i32, i32
  }
  func.func @transform_5(%arg0: i32, %arg1: i32) -> (i32, i32, i32) {
    %c0_i32 = arith.constant 0 : i32
    %c0_i32_0 = arith.constant 0 : i32
    %c0_i32_1 = arith.constant 0 : i32
    %c0_i32_2 = arith.constant 0 : i32
    return %c0_i32, %c0_i32_0, %c0_i32_1 : i32, i32, i32
  }
  func.func @transform_6(%arg0: i32, %arg1: i32) -> (i32, i32, i32) {
    %c0_i32 = arith.constant 0 : i32
    %c0_i32_0 = arith.constant 0 : i32
    %c0_i32_1 = arith.constant 0 : i32
    %c0_i32_2 = arith.constant 0 : i32
    return %c0_i32, %c0_i32_0, %c0_i32_1 : i32, i32, i32
  }
  func.func @transform_7(%arg0: i32, %arg1: i32) -> (i32, i32, i32) {
    %c0_i32 = arith.constant 0 : i32
    %c0_i32_0 = arith.constant 0 : i32
    %c0_i32_1 = arith.constant 0 : i32
    %c0_i32_2 = arith.constant 0 : i32
    return %c0_i32, %c0_i32_0, %c0_i32_1 : i32, i32, i32
  }
  func.func @transform_8(%arg0: i32, %arg1: i32) -> (i32, i32, i32) {
    %c0_i32 = arith.constant 0 : i32
    %c0_i32_0 = arith.constant 0 : i32
    %c0_i32_1 = arith.constant 0 : i32
    %c0_i32_2 = arith.constant 0 : i32
    return %c0_i32, %c0_i32_0, %c0_i32_1 : i32, i32, i32
  }
  func.func @transform_9(%arg0: i32, %arg1: i32) -> (i32, i32, i32) {
    %c0_i32 = arith.constant 0 : i32
    %c0_i32_0 = arith.constant 0 : i32
    %c0_i32_1 = arith.constant 0 : i32
    %c0_i32_2 = arith.constant 0 : i32
    return %c0_i32, %c0_i32_0, %c0_i32_1 : i32, i32, i32
  }
  func.func @transform_10(%arg0: i32, %arg1: i32) -> i32 {
    %c0_i32 = arith.constant 0 : i32
    %c0_i32_0 = arith.constant 0 : i32
    return %c0_i32 : i32
  }
  func.func @transform_11(%arg0: i32, %arg1: i32) -> (i32, i32) {
    %c0_i32 = arith.constant 0 : i32
    return %arg1, %arg0 : i32, i32
  }
  func.func @transform_12(%arg0: i32, %arg1: i32) -> (i32, i32) {
    %c0_i32 = arith.constant 0 : i32
    return %arg1, %arg0 : i32, i32
  }
  func.func @transform_13(%arg0: i32, %arg1: i32) -> (i32, i32) {
    %c0_i32 = arith.constant 0 : i32
    return %arg1, %arg0 : i32, i32
  }
}

</mosaic_0001>

<llo_original>
// kernel: tpu_custom_call.1
$region0: #{tpu_custom_call.1}
  #allocation0 [shape = 'u32[]', space=smem, size = 0x4, offset = 0x4, fixed_abs, tag = 'smem constant byte address 0x4 - core index']
  #allocation1 [shape = 'u32[144,128]{1,0:T(1,128)}', space=vmem, size = 0x12000, scoped, tag = 'internal scratch']
  #allocation2 [shape = 'bf16[4,128]{1,0:T(4,128)(2,1)}', space=vmem, size = 0x400, scoped, tag = 'scratch operand']
  #allocation3 [shape = 'f32[8,4]{1,0:T(8,128)}', space=vmem, size = 0x1000, scoped, tag = 'scratch operand']
  #allocation4 [shape = 'f32[8,4]{1,0:T(8,128)}', space=vmem, size = 0x1000, scoped, tag = 'scratch operand']
  %s0 = inlined_call_operand.hbm [shape: bf16[4,128], index: 0, kind: input, shape index: {}]
  %s1 = inlined_call_operand.hbm [shape: bf16[4,8,128], index: 1, kind: input, shape index: {}]
  %s2 = inlined_call_operand.hbm [shape: bf16[4,8,128], index: 2, kind: input, shape index: {}]
  %s3 = inlined_call_operand.hbm [shape: bf16[4,8,128], index: 3, kind: input, shape index: {}]
  %s4 = inlined_call_operand.hbm [shape: bf16[8,4,128], index: 4, kind: input, shape index: {}]
  %s5 = inlined_call_operand.hbm [shape: bf16[3,128,256], index: 5, kind: input, shape index: {}]
  %s6 = inlined_call_operand.vmem [shape: f32[3,1,256], index: 6, kind: input, shape index: {}]
  %s7 = inlined_call_operand.hbm [shape: bf16[3,256,128], index: 7, kind: input, shape index: {}]
  %s8 = inlined_call_operand.vmem [shape: f32[3,1,128], index: 8, kind: input, shape index: {}]
  %s9 = inlined_call_operand.vmem [shape: f32[3,1,128], index: 9, kind: input, shape index: {}]
  %s10 = inlined_call_operand.vmem [shape: f32[3], index: 10, kind: input, shape index: {}]
  %s11 = inlined_call_operand.hbm [shape: f32[4,4], index: 11, kind: output, shape index: {0}]
  %s12 = inlined_call_operand.hbm [shape: f32[4,4], index: 12, kind: output, shape index: {1}]
  %s13 = inlined_call_operand.hbm [shape: f32[4,4], index: 13, kind: output, shape index: {2}]
  %14 = xla_tuple %s11, %s12, %s13
  %s15 = sld [smem:[#allocation0]]
  $region106: #{tpu_custom_call.1} parent=0
    _
  %s17 = ssub.s32 1, %s15
  %s18 = scalar_select 0, %s17, %s15
  $region1: #{tpu_custom_call.1} parent=0
    #allocation5 [shape = 'u8[1024]{0}', space=vmem, size = 0x400, scoped, tag = 'input window, operand 0, single buffered']
    #allocation6 [shape = 's32[1]{0}', space=sflag, size = 0x4, scoped, tag = 'scoped memory for tpu_custom_call.1']
    #allocation7 [shape = 's32[1]{0}', space=sflag, size = 0x4, scoped, tag = 'scoped memory for tpu_custom_call.1']
    #allocation8 [shape = 's32[1]{0}', space=sflag, size = 0x4, scoped, tag = 'scoped memory for tpu_custom_call.1']
    #allocation9 [shape = 'u8[8192]{0}', space=vmem, size = 0x2000, scoped, tag = 'input window, operand 1, single buffered']
    #allocation10 [shape = 's32[1]{0}', space=sflag, size = 0x4, scoped, tag = 'scoped memory for tpu_custom_call.1']
    #allocation11 [shape = 'u8[8192]{0}', space=vmem, size = 0x2000, scoped, tag = 'input window, operand 2, single buffered']
    #allocation12 [shape = 'u8[8192]{0}', space=vmem, size = 0x2000, scoped, tag = 'input window, operand 3, single buffered']
    #allocation13 [shape = 's32[1]{0}', space=sflag, size = 0x4, scoped, tag = 'scoped memory for tpu_custom_call.1']
    #allocation14 [shape = 'u8[8192]{0}', space=vmem, size = 0x2000, scoped, tag = 'input window, operand 4, single buffered']
    #allocation15 [shape = 'u8[196608]{0}', space=vmem, size = 0x30000, scoped, tag = 'input window, operand 5, single buffered']
    #allocation16 [shape = 's32[1]{0}', space=sflag, size = 0x4, scoped, tag = 'scoped memory for tpu_custom_call.1']
    #allocation17 [shape = 'u8[196608]{0}', space=vmem, size = 0x30000, scoped, tag = 'input window, operand 7, single buffered']
    #allocation18 [shape = 'u8[512]{0}', space=smem, size = 0x200, scoped, tag = 'input window, operand 10, single buffered']
    #allocation19 [shape = 'u8[2048]{0}', space=vmem, size = 0x800, scoped, tag = 'output window, operand 0, single buffered']
    #allocation20 [shape = 'u8[2048]{0}', space=vmem, size = 0x800, scoped, tag = 'output window, operand 1, single buffered']
    #allocation21 [shape = 's32[1]{0}', space=sflag, size = 0x4, scoped, tag = 'scoped memory for tpu_custom_call.1']
    #allocation22 [shape = 'u8[2048]{0}', space=vmem, size = 0x800, scoped, tag = 'output window, operand 2, single buffered']
    %19 = vsyncpa [#allocation6], 0
    %20 = vsyncpa [#allocation10], 0
    %21 = vsyncpa [#allocation13], 0
    %22 = vsyncpa [#allocation16], 0
    %23 = vsyncpa [#allocation8], 0
    %24 = vsyncpa [#allocation7], 0
    %25 = vsyncpa [#allocation21], 0
    // Predicated region
    $region2: #{tpu_custom_call.1} parent=1 // pred_check
      _
    $region3: #{tpu_custom_call.1} parent=1 // pred_check_branch
      %27 = sbr.rel (0) target = $region5
    $region4: #{tpu_custom_call.1} parent=1 // pred_region
      %s29 = ssub.s32 32, 32
      %30 = vsyncadd [#allocation6], %s29
      %s32 = sshll.u32 [#allocation5], 4
      %s33 = int_to_ptr.vmem [resolvable:$true] %s32
      %35 = dma.hbm_to_vmem [thread:$0]  %s0, 32, %s33, [#allocation6]
    $region5: #{tpu_custom_call.1} parent=1 // pred_fallthru
      _
    // Predicated region
    $region6: #{tpu_custom_call.1} parent=1 // pred_check
      _
    $region7: #{tpu_custom_call.1} parent=1 // pred_check_branch
      %37 = sbr.rel (0) target = $region9
    $region8: #{tpu_custom_call.1} parent=1 // pred_region
      %s39 = ssub.s32 256, 256
      %40 = vsyncadd [#allocation10], %s39
      %s41 = sshll.u32 [#allocation9], 4
      %s42 = int_to_ptr.vmem [resolvable:$true] %s41
      %47 = dma.hbm_to_vmem [thread:$0]  %s1, 256, %s42, [#allocation10], 64, 64, 4
    $region9: #{tpu_custom_call.1} parent=1 // pred_fallthru
      _
    // Predicated region
    $region10: #{tpu_custom_call.1} parent=1 // pred_check
      _
    $region11: #{tpu_custom_call.1} parent=1 // pred_check_branch
      %49 = sbr.rel (0) target = $region13
    $region12: #{tpu_custom_call.1} parent=1 // pred_region
      %s51 = ssub.s32 256, 256
      %52 = vsyncadd [#allocation10], %s51
      %s53 = sshll.u32 [#allocation11], 4
      %s54 = int_to_ptr.vmem [resolvable:$true] %s53
      %59 = dma.hbm_to_vmem [thread:$0]  %s2, 256, %s54, [#allocation10], 64, 64, 4
    $region13: #{tpu_custom_call.1} parent=1 // pred_fallthru
      _
    // Predicated region
    $region14: #{tpu_custom_call.1} parent=1 // pred_check
      _
    $region15: #{tpu_custom_call.1} parent=1 // pred_check_branch
      %61 = sbr.rel (0) target = $region17
    $region16: #{tpu_custom_call.1} parent=1 // pred_region
      %s63 = ssub.s32 256, 256
      %64 = vsyncadd [#allocation13], %s63
      %s65 = sshll.u32 [#allocation12], 4
      %s66 = int_to_ptr.vmem [resolvable:$true] %s65
      %71 = dma.hbm_to_vmem [thread:$0]  %s3, 256, %s66, [#allocation13], 64, 64, 4
    $region17: #{tpu_custom_call.1} parent=1 // pred_fallthru
      _
    // Predicated region
    $region18: #{tpu_custom_call.1} parent=1 // pred_check
      _
    $region19: #{tpu_custom_call.1} parent=1 // pred_check_branch
      %73 = sbr.rel (0) target = $region21
    $region20: #{tpu_custom_call.1} parent=1 // pred_region
      %s75 = ssub.s32 256, 256
      %76 = vsyncadd [#allocation13], %s75
      %s77 = sshll.u32 [#allocation14], 4
      %s78 = int_to_ptr.vmem [resolvable:$true] %s77
      %83 = dma.hbm_to_vmem [thread:$0]  %s4, 256, %s78, [#allocation13], 32, 32, 2
    $region21: #{tpu_custom_call.1} parent=1 // pred_fallthru
      _
    // Predicated region
    $region22: #{tpu_custom_call.1} parent=1 // pred_check
      _
    $region23: #{tpu_custom_call.1} parent=1 // pred_check_branch
      %85 = sbr.rel (0) target = $region25
    $region24: #{tpu_custom_call.1} parent=1 // pred_region
      %s87 = ssub.s32 6144, 6144
      %88 = vsyncadd [#allocation16], %s87
      %s89 = sshll.u32 [#allocation15], 4
      %s90 = int_to_ptr.vmem [resolvable:$true] %s89
      %95 = dma.hbm_to_vmem [thread:$0]  %s5, 6144, %s90, [#allocation16], 128, 128, 8
    $region25: #{tpu_custom_call.1} parent=1 // pred_fallthru
      _
    // Predicated region
    $region26: #{tpu_custom_call.1} parent=1 // pred_check
      _
    $region27: #{tpu_custom_call.1} parent=1 // pred_check_branch
      %97 = sbr.rel (0) target = $region29
    $region28: #{tpu_custom_call.1} parent=1 // pred_region
      _
    $region29: #{tpu_custom_call.1} parent=1 // pred_fallthru
      _
    // Predicated region
    $region30: #{tpu_custom_call.1} parent=1 // pred_check
      _
    $region31: #{tpu_custom_call.1} parent=1 // pred_check_branch
      %99 = sbr.rel (0) target = $region33
    $region32: #{tpu_custom_call.1} parent=1 // pred_region
      %s101 = ssub.s32 6144, 6144
      %102 = vsyncadd [#allocation16], %s101
      %s103 = sshll.u32 [#allocation17], 4
      %s104 = int_to_ptr.vmem [resolvable:$true] %s103
      %109 = dma.hbm_to_vmem [thread:$0]  %s7, 6144, %s104, [#allocation16], 64, 64, 4
    $region33: #{tpu_custom_call.1} parent=1 // pred_fallthru
      _
    // Predicated region
    $region34: #{tpu_custom_call.1} parent=1 // pred_check
      _
    $region35: #{tpu_custom_call.1} parent=1 // pred_check_branch
      %111 = sbr.rel (0) target = $region37
    $region36: #{tpu_custom_call.1} parent=1 // pred_region
      _
    $region37: #{tpu_custom_call.1} parent=1 // pred_fallthru
      _
    // Predicated region
    $region38: #{tpu_custom_call.1} parent=1 // pred_check
      _
    $region39: #{tpu_custom_call.1} parent=1 // pred_check_branch
      %113 = sbr.rel (0) target = $region41
    $region40: #{tpu_custom_call.1} parent=1 // pred_region
      _
    $region41: #{tpu_custom_call.1} parent=1 // pred_fallthru
      _
    // Predicated region
    $region42: #{tpu_custom_call.1} parent=1 // pred_check
      _
    $region43: #{tpu_custom_call.1} parent=1 // pred_check_branch
      %115 = sbr.rel (0) target = $region45
    $region44: #{tpu_custom_call.1} parent=1 // pred_region
      %s117 = ssub.s32 16, 16
      %118 = vsyncadd [#allocation8], %s117
      %s120 = sshll.u32 %s10, 4
      %s121 = int_to_ptr.vmem [resolvable:$true] %s120
      %123 = dma.vmem_to_smem %s121, 16, [#allocation18], [#allocation8]
    $region45: #{tpu_custom_call.1} parent=1 // pred_fallthru
      _
    // Predicated region
    $region46: #{tpu_custom_call.1} parent=1 // pred_check
      _
    $region47: #{tpu_custom_call.1} parent=1 // pred_check_branch
      %125 = sbr.rel (0) target = $region49
    $region48: #{tpu_custom_call.1} parent=1 // pred_region
      %126 = dma.done [#allocation6], 32
    $region49: #{tpu_custom_call.1} parent=1 // pred_fallthru
      _
    // Predicated region
    $region50: #{tpu_custom_call.1} parent=1 // pred_check
      _
    $region51: #{tpu_custom_call.1} parent=1 // pred_check_branch
      %128 = sbr.rel (0) target = $region53
    $region52: #{tpu_custom_call.1} parent=1 // pred_region
      %129 = dma.done [#allocation10], 256
    $region53: #{tpu_custom_call.1} parent=1 // pred_fallthru
      _
    // Predicated region
    $region54: #{tpu_custom_call.1} parent=1 // pred_check
      _
    $region55: #{tpu_custom_call.1} parent=1 // pred_check_branch
      %131 = sbr.rel (0) target = $region57
    $region56: #{tpu_custom_call.1} parent=1 // pred_region
      %132 = dma.done [#allocation10], 256
    $region57: #{tpu_custom_call.1} parent=1 // pred_fallthru
      _
    // Predicated region
    $region58: #{tpu_custom_call.1} parent=1 // pred_check
      _
    $region59: #{tpu_custom_call.1} parent=1 // pred_check_branch
      %134 = sbr.rel (0) target = $region61
    $region60: #{tpu_custom_call.1} parent=1 // pred_region
      %135 = dma.done [#allocation13], 256
    $region61: #{tpu_custom_call.1} parent=1 // pred_fallthru
      _
    // Predicated region
    $region62: #{tpu_custom_call.1} parent=1 // pred_check
      _
    $region63: #{tpu_custom_call.1} parent=1 // pred_check_branch
      %137 = sbr.rel (0) target = $region65
    $region64: #{tpu_custom_call.1} parent=1 // pred_region
      %138 = dma.done [#allocation13], 256
    $region65: #{tpu_custom_call.1} parent=1 // pred_fallthru
      _
    // Predicated region
    $region66: #{tpu_custom_call.1} parent=1 // pred_check
      _
    $region67: #{tpu_custom_call.1} parent=1 // pred_check_branch
      %140 = sbr.rel (0) target = $region69
    $region68: #{tpu_custom_call.1} parent=1 // pred_region
      %141 = dma.done [#allocation16], 6144
    $region69: #{tpu_custom_call.1} parent=1 // pred_fallthru
      _
    // Predicated region
    $region70: #{tpu_custom_call.1} parent=1 // pred_check
      _
    $region71: #{tpu_custom_call.1} parent=1 // pred_check_branch
      %143 = sbr.rel (0) target = $region73
    $region72: #{tpu_custom_call.1} parent=1 // pred_region
      %144 = dma.done [#allocation16], 6144
    $region73: #{tpu_custom_call.1} parent=1 // pred_fallthru
      _
    // Predicated region
    $region74: #{tpu_custom_call.1} parent=1 // pred_check
      _
    $region75: #{tpu_custom_call.1} parent=1 // pred_check_branch
      %146 = sbr.rel (0) target = $region77
    $region76: #{tpu_custom_call.1} parent=1 // pred_region
      %147 = dma.done [#allocation8], 16
    $region77: #{tpu_custom_call.1} parent=1 // pred_fallthru
      _
    %148 = sfence
    %p150 = scmp.eq.s32.totalorder 0, 0
    // Predicated region
    $region78: #{tpu_custom_call.1} parent=1 // pred_check
      %p151 = pneg %p150
    $region79: #{tpu_custom_call.1} parent=1 // pred_check_branch
      %153 = sbr.rel (%p151) target = $region81
    $region80: #{tpu_custom_call.1} parent=1 // pred_region
      %v154 = vld [vmem:[#allocation9] sm:$0xf]
      %v155 = vld [vmem:[#allocation9 + $0x4] sm:$0xf]
      %v156 = vld [vmem:[#allocation9 + $0x8] sm:$0xf]
      %v157 = vld [vmem:[#allocation9 + $0xc] sm:$0xf]
      %v158 = vld [vmem:[#allocation15] sm:$0xff]
      %v159 = vld [vmem:[#allocation15 + $0x8] sm:$0xff]
      %v160 = vld [vmem:[#allocation15 + $0x10] sm:$0xff]
      %v161 = vld [vmem:[#allocation15 + $0x18] sm:$0xff]
      %v162 = vld [vmem:[#allocation15 + $0x20] sm:$0xff]
      %v163 = vld [vmem:[#allocation15 + $0x28] sm:$0xff]
      %v164 = vld [vmem:[#allocation15 + $0x30] sm:$0xff]
      %v165 = vld [vmem:[#allocation15 + $0x38] sm:$0xff]
      %v166 = vld [vmem:[#allocation15 + $0x40] sm:$0xff]
      %v167 = vld [vmem:[#allocation15 + $0x48] sm:$0xff]
      %v168 = vld [vmem:[#allocation15 + $0x50] sm:$0xff]
      %v169 = vld [vmem:[#allocation15 + $0x58] sm:$0xff]
      %v170 = vld [vmem:[#allocation15 + $0x60] sm:$0xff]
      %v171 = vld [vmem:[#allocation15 + $0x68] sm:$0xff]
      %v172 = vld [vmem:[#allocation15 + $0x70] sm:$0xff]
      %v173 = vld [vmem:[#allocation15 + $0x78] sm:$0xff]
      %v174 = vld [vmem:[%s6] sm:$0x3]
      %v176 = vlaneseq
      %v177 = vshrl.u32 %v176, 7
      %v178 = vsub.s32 0, %v177
      %v179 = vrot.slane %v174, %v178
      %v180 = vlaneseq
      %v181 = vshrl.u32 %v180, 7
      %v182 = vsub.s32 1, %v181
      %v183 = vrot.slane %v174, %v182
      %v190 = vunpack.c.l.b16 %v154
      %v191 = vunpack.c.l.b16 %v155
      %v192 = vunpack.c.l.b16 %v156
      %v193 = vunpack.c.l.b16 %v157
      %v194 = vpack.c.b16 %v191, %v190
      %v195 = vpack.c.b16 %v193, %v192
      %v214 = vunpack.c.l.b16 %v158
      %v215 = vunpack.c.h.b16 %v158
      %v216 = vunpack.c.l.b16 %v159
      %v217 = vunpack.c.h.b16 %v159
      %v218 = vunpack.c.l.b16 %v160
      %v219 = vunpack.c.h.b16 %v160
      %v220 = vunpack.c.l.b16 %v161
      %v221 = vunpack.c.h.b16 %v161
      %v222 = vunpack.c.l.b16 %v162
      %v223 = vunpack.c.h.b16 %v162
      %v224 = vunpack.c.l.b16 %v163
      %v225 = vunpack.c.h.b16 %v163
      %v226 = vunpack.c.l.b16 %v164
      %v227 = vunpack.c.h.b16 %v164
      %v228 = vunpack.c.l.b16 %v165
      %v229 = vunpack.c.h.b16 %v165
      %v230 = vunpack.c.l.b16 %v166
      %v231 = vunpack.c.h.b16 %v166
      %v232 = vunpack.c.l.b16 %v167
      %v233 = vunpack.c.h.b16 %v167
      %v234 = vunpack.c.l.b16 %v168
      %v235 = vunpack.c.h.b16 %v168
      %v236 = vunpack.c.l.b16 %v169
      %v237 = vunpack.c.h.b16 %v169
      %v238 = vunpack.c.l.b16 %v170
      %v239 = vunpack.c.h.b16 %v170
      %v240 = vunpack.c.l.b16 %v171
      %v241 = vunpack.c.h.b16 %v171
      %v242 = vunpack.c.l.b16 %v172
      %v243 = vunpack.c.h.b16 %v172
      %v244 = vunpack.c.l.b16 %v173
      %v245 = vunpack.c.h.b16 %v173
      %v246 = vpack.c.b16 %v216, %v214
      %v247 = vpack.c.b16 %v217, %v215
      %v248 = vpack.c.b16 %v220, %v218
      %v249 = vpack.c.b16 %v221, %v219
      %v250 = vpack.c.b16 %v224, %v222
      %v251 = vpack.c.b16 %v225, %v223
      %v252 = vpack.c.b16 %v228, %v226
      %v253 = vpack.c.b16 %v229, %v227
      %v254 = vpack.c.b16 %v232, %v230
      %v255 = vpack.c.b16 %v233, %v231
      %v256 = vpack.c.b16 %v236, %v234
      %v257 = vpack.c.b16 %v237, %v235
      %v258 = vpack.c.b16 %v240, %v238
      %v259 = vpack.c.b16 %v241, %v239
      %v260 = vpack.c.b16 %v244, %v242
      %v261 = vpack.c.b16 %v245, %v243
      %278 = vmatprep.subr.bf16.mxu0 %v247
      %279 = vmatpush1.bf16.msra.mxu0 %v246
      %280 = vmatprep.subr.bf16.mxu0 %v249
      %281 = vmatpush1.bf16.msra.mxu0 %v248
      %282 = vmatprep.subr.bf16.mxu0 %v251
      %283 = vmatpush1.bf16.msra.mxu0 %v250
      %284 = vmatprep.subr.bf16.mxu0 %v253
      %285 = vmatpush1.bf16.msra.mxu0 %v252
      %286 = vmatprep.subr.bf16.mxu0 %v255
      %287 = vmatpush1.bf16.msra.mxu0 %v254
      %288 = vmatprep.subr.bf16.mxu0 %v257
      %289 = vmatpush1.bf16.msra.mxu0 %v256
      %290 = vmatprep.subr.bf16.mxu0 %v259
      %291 = vmatpush1.bf16.msra.mxu0 %v258
      %292 = vmatprep.subr.bf16.mxu0 %v261
      %293 = vmatpush1.bf16.msra.mxu0 %v260
      %294 = vmatprep.subr.bf16.mxu0 0
      %295 = vmatpush1.bf16.msra.mxu0 0
      %296 = vmatprep.subr.bf16.mxu0 0
      %297 = vmatpush1.bf16.msra.mxu0 0
      %298 = vmatprep.subr.bf16.mxu0 0
      %299 = vmatpush1.bf16.msra.mxu0 0
      %300 = vmatprep.subr.bf16.mxu0 0
      %301 = vmatpush1.bf16.msra.mxu0 0
      %302 = vmatprep.subr.bf16.mxu0 0
      %303 = vmatpush1.bf16.msra.mxu0 0
      %304 = vmatprep.subr.bf16.mxu0 0
      %305 = vmatpush1.bf16.msra.mxu0 0
      %306 = vmatprep.subr.bf16.mxu0 0
      %307 = vmatpush1.bf16.msra.mxu0 0
      %308 = vmatprep.subr.bf16.mxu0 0
      %309 = vmatpush1.bf16.msra.mxu0 0
      %310 = vmatprep.mubr.bf16.mxu0 0
      %311 = vmatmul.mubr.bf16.gmra.mrb[0].mxu0 %v194
      %v312 = vpop.f32.mrb[0].mxu0
      %v313 = vadd.f32 %v179, %v312
      %v314 = vpop.f32.mrb[0].mxu0
      %v315 = vadd.f32 %v183, %v314
      %v316 = vpop.f32.mrb[0].mxu0
      %v317 = vadd.f32 %v179, %v316
      %v318 = vpop.f32.mrb[0].mxu0
      %v319 = vadd.f32 %v183, %v318
      %320 = vmatprep.mubr.bf16.mxu0 0
      %321 = vmatmul.mubr.bf16.gmra.mrb[0].mxu0 %v195
      %v322 = vpop.f32.mrb[0].mxu0
      %v323 = vadd.f32 %v179, %v322
      %v324 = vpop.f32.mrb[0].mxu0
      %v325 = vadd.f32 %v183, %v324
      %v326 = vpop.f32.mrb[0].mxu0
      %v327 = vadd.f32 %v179, %v326
      %v328 = vpop.f32.mrb[0].mxu0
      %v329 = vadd.f32 %v183, %v328
      %330 = vdwg.mxu0
      %v331 = vmax.f32 %v313, 0.0
      %v332 = vmax.f32 %v315, 0.0
      %v333 = vmax.f32 %v317, 0.0
      %v334 = vmax.f32 %v319, 0.0
      %v335 = vmax.f32 %v323, 0.0
      %v336 = vmax.f32 %v325, 0.0
      %v337 = vmax.f32 %v327, 0.0
      %v338 = vmax.f32 %v329, 0.0
      %v339 = vpack.c.bf16 %v333, %v331
      %v340 = vpack.c.bf16 %v334, %v332
      %v341 = vpack.c.bf16 %v337, %v335
      %v342 = vpack.c.bf16 %v338, %v336
      %v343 = vld [vmem:[#allocation17] sm:$0xf]
      %v344 = vld [vmem:[#allocation17 + $0x4] sm:$0xf]
      %v345 = vld [vmem:[#allocation17 + $0x8] sm:$0xf]
      %v346 = vld [vmem:[#allocation17 + $0xc] sm:$0xf]
      %v347 = vld [vmem:[#allocation17 + $0x10] sm:$0xf]
      %v348 = vld [vmem:[#allocation17 + $0x14] sm:$0xf]
      %v349 = vld [vmem:[#allocation17 + $0x18] sm:$0xf]
      %v350 = vld [vmem:[#allocation17 + $0x1c] sm:$0xf]
      %v351 = vld [vmem:[#allocation17 + $0x20] sm:$0xf]
      %v352 = vld [vmem:[#allocation17 + $0x24] sm:$0xf]
      %v353 = vld [vmem:[#allocation17 + $0x28] sm:$0xf]
      %v354 = vld [vmem:[#allocation17 + $0x2c] sm:$0xf]
      %v355 = vld [vmem:[#allocation17 + $0x30] sm:$0xf]
      %v356 = vld [vmem:[#allocation17 + $0x34] sm:$0xf]
      %v357 = vld [vmem:[#allocation17 + $0x38] sm:$0xf]
      %v358 = vld [vmem:[#allocation17 + $0x3c] sm:$0xf]
      %v359 = vld [vmem:[#allocation17 + $0x40] sm:$0xf]
      %v360 = vld [vmem:[#allocation17 + $0x44] sm:$0xf]
      %v361 = vld [vmem:[#allocation17 + $0x48] sm:$0xf]
      %v362 = vld [vmem:[#allocation17 + $0x4c] sm:$0xf]
      %v363 = vld [vmem:[#allocation17 + $0x50] sm:$0xf]
      %v364 = vld [vmem:[#allocation17 + $0x54] sm:$0xf]
      %v365 = vld [vmem:[#allocation17 + $0x58] sm:$0xf]
      %v366 = vld [vmem:[#allocation17 + $0x5c] sm:$0xf]
      %v367 = vld [vmem:[#allocation17 + $0x60] sm:$0xf]
      %v368 = vld [vmem:[#allocation17 + $0x64] sm:$0xf]
      %v369 = vld [vmem:[#allocation17 + $0x68] sm:$0xf]
      %v370 = vld [vmem:[#allocation17 + $0x6c] sm:$0xf]
      %v371 = vld [vmem:[#allocation17 + $0x70] sm:$0xf]
      %v372 = vld [vmem:[#allocation17 + $0x74] sm:$0xf]
      %v373 = vld [vmem:[#allocation17 + $0x78] sm:$0xf]
      %v374 = vld [vmem:[#allocation17 + $0x7c] sm:$0xf]
      %v375 = vld [vmem:[%s8] sm:$0x1]
      %v377 = vlaneseq
      %v378 = vshrl.u32 %v377, 7
      %v379 = vsub.s32 0, %v378
      %v380 = vrot.slane %v375, %v379
      %v414 = vunpack.c.l.b16 %v343
      %v415 = vunpack.c.l.b16 %v344
      %v416 = vunpack.c.l.b16 %v345
      %v417 = vunpack.c.l.b16 %v346
      %v418 = vunpack.c.l.b16 %v347
      %v419 = vunpack.c.l.b16 %v348
      %v420 = vunpack.c.l.b16 %v349
      %v421 = vunpack.c.l.b16 %v350
      %v422 = vunpack.c.l.b16 %v351
      %v423 = vunpack.c.l.b16 %v352
      %v424 = vunpack.c.l.b16 %v353
      %v425 = vunpack.c.l.b16 %v354
      %v426 = vunpack.c.l.b16 %v355
      %v427 = vunpack.c.l.b16 %v356
      %v428 = vunpack.c.l.b16 %v357
      %v429 = vunpack.c.l.b16 %v358
      %v430 = vunpack.c.l.b16 %v359
      %v431 = vunpack.c.l.b16 %v360
      %v432 = vunpack.c.l.b16 %v361
      %v433 = vunpack.c.l.b16 %v362
      %v434 = vunpack.c.l.b16 %v363
      %v435 = vunpack.c.l.b16 %v364
      %v436 = vunpack.c.l.b16 %v365
      %v437 = vunpack.c.l.b16 %v366
      %v438 = vunpack.c.l.b16 %v367
      %v439 = vunpack.c.l.b16 %v368
      %v440 = vunpack.c.l.b16 %v369
      %v441 = vunpack.c.l.b16 %v370
      %v442 = vunpack.c.l.b16 %v371
      %v443 = vunpack.c.l.b16 %v372
      %v444 = vunpack.c.l.b16 %v373
      %v445 = vunpack.c.l.b16 %v374
      %v446 = vpack.c.b16 %v415, %v414
      %v447 = vpack.c.b16 %v417, %v416
      %v448 = vpack.c.b16 %v419, %v418
      %v449 = vpack.c.b16 %v421, %v420
      %v450 = vpack.c.b16 %v423, %v422
      %v451 = vpack.c.b16 %v425, %v424
      %v452 = vpack.c.b16 %v427, %v426
      %v453 = vpack.c.b16 %v429, %v428
      %v454 = vpack.c.b16 %v431, %v430
      %v455 = vpack.c.b16 %v433, %v432
      %v456 = vpack.c.b16 %v435, %v434
      %v457 = vpack.c.b16 %v437, %v436
      %v458 = vpack.c.b16 %v439, %v438
      %v459 = vpack.c.b16 %v441, %v440
      %v460 = vpack.c.b16 %v443, %v442
      %v461 = vpack.c.b16 %v445, %v444
      %478 = vmatprep.subr.bf16.mxu0 0
      %479 = vmatpush1.bf16.msra.mxu0 %v446
      %480 = vmatprep.subr.bf16.mxu0 0
      %481 = vmatpush1.bf16.msra.mxu0 %v447
      %482 = vmatprep.subr.bf16.mxu0 0
      %483 = vmatpush1.bf16.msra.mxu0 %v448
      %484 = vmatprep.subr.bf16.mxu0 0
      %485 = vmatpush1.bf16.msra.mxu0 %v449
      %486 = vmatprep.subr.bf16.mxu0 0
      %487 = vmatpush1.bf16.msra.mxu0 %v450
      %488 = vmatprep.subr.bf16.mxu0 0
      %489 = vmatpush1.bf16.msra.mxu0 %v451
      %490 = vmatprep.subr.bf16.mxu0 0
      %491 = vmatpush1.bf16.msra.mxu0 %v452
      %492 = vmatprep.subr.bf16.mxu0 0
      %493 = vmatpush1.bf16.msra.mxu0 %v453
      %494 = vmatprep.subr.bf16.mxu0 0
      %495 = vmatpush1.bf16.msra.mxu0 %v454
      %496 = vmatprep.subr.bf16.mxu0 0
      %497 = vmatpush1.bf16.msra.mxu0 %v455
      %498 = vmatprep.subr.bf16.mxu0 0
      %499 = vmatpush1.bf16.msra.mxu0 %v456
      %500 = vmatprep.subr.bf16.mxu0 0
      %501 = vmatpush1.bf16.msra.mxu0 %v457
      %502 = vmatprep.subr.bf16.mxu0 0
      %503 = vmatpush1.bf16.msra.mxu0 %v458
      %504 = vmatprep.subr.bf16.mxu0 0
      %505 = vmatpush1.bf16.msra.mxu0 %v459
      %506 = vmatprep.subr.bf16.mxu0 0
      %507 = vmatpush1.bf16.msra.mxu0 %v460
      %508 = vmatprep.subr.bf16.mxu0 0
      %509 = vmatpush1.bf16.msra.mxu0 %v461
      %510 = vmatprep.mubr.bf16.mxu0 %v340
      %511 = vmatmul.mubr.bf16.gmra.mrb[0].mxu0 %v339
      %v512 = vpop.f32.mrb[0].mxu0
      %v513 = vadd.f32 %v380, %v512
      %v514 = vpop.f32.mrb[0].mxu0
      %v515 = vpop.f32.mrb[0].mxu0
      %v516 = vadd.f32 %v380, %v515
      %v517 = vpop.f32.mrb[0].mxu0
      %518 = vmatprep.mubr.bf16.mxu0 %v342
      %519 = vmatmul.mubr.bf16.gmra.mrb[0].mxu0 %v341
      %v520 = vpop.f32.mrb[0].mxu0
      %v521 = vadd.f32 %v380, %v520
      %v522 = vpop.f32.mrb[0].mxu0
      %v523 = vpop.f32.mrb[0].mxu0
      %v524 = vadd.f32 %v380, %v523
      %v525 = vpop.f32.mrb[0].mxu0
      %526 = vdwg.mxu0
      %v527 = vmax.f32 %v513, 0.0
      %v528 = vmax.f32 %v516, 0.0
      %v529 = vmax.f32 %v521, 0.0
      %v530 = vmax.f32 %v524, 0.0
      %v531 = vld [vmem:[%s9] sm:$0x1]
      %v533 = vlaneseq
      %v534 = vshrl.u32 %v533, 7
      %v535 = vsub.s32 0, %v534
      %v536 = vrot.slane %v531, %v535
      %v538 = vmul.f32 %v527, %v536
      %v539 = vmul.f32 %v528, %v536
      %v540 = vmul.f32 %v529, %v536
      %v541 = vmul.f32 %v530, %v536
      %542 = vadd.xlane.f32.xlu0 %v538
      %v543 = vpop.xlane.xlu0 %542
      %544 = vadd.xlane.f32.xlu0 %v539
      %v545 = vpop.xlane.xlu0 %544
      %546 = vadd.xlane.f32.xlu0 %v540
      %v547 = vpop.xlane.xlu0 %546
      %548 = vadd.xlane.f32.xlu0 %v541
      %v549 = vpop.xlane.xlu0 %548
      %s550 = sld [smem:[#allocation18]]
      %v551 = vstv %s550
      %v552 = vadd.f32 %v543, %v551
      %v553 = vadd.f32 %v545, %v551
      %v554 = vadd.f32 %v547, %v551
      %v555 = vadd.f32 %v549, %v551
      %v556 = vunpack.c.l.bf16 %v154
      %v557 = vunpack.c.l.bf16 %v155
      %v558 = vunpack.c.l.bf16 %v156
      %v559 = vunpack.c.l.bf16 %v157
      %v560 = vmul.f32 %v556, %v552
      %v561 = vmul.f32 %v557, %v553
      %v562 = vmul.f32 %v558, %v554
      %v563 = vmul.f32 %v559, %v555
      %v564 = vrot.slane %v560, 4
      %v565 = vadd.f32 %v560, %v564
      %v566 = vrot.slane %v565, 2
      %v567 = vadd.f32 %v565, %v566
      %v568 = vrot.slane %v567, 1
      %v569 = vadd.f32 %v567, %v568
      %v570 = vrot.slane %v561, 4
      %v571 = vadd.f32 %v561, %v570
      %v572 = vrot.slane %v571, 2
      %v573 = vadd.f32 %v571, %v572
      %v574 = vrot.slane %v573, 1
      %v575 = vadd.f32 %v573, %v574
      %v576 = vrot.slane %v562, 4
      %v577 = vadd.f32 %v562, %v576
      %v578 = vrot.slane %v577, 2
      %v579 = vadd.f32 %v577, %v578
      %v580 = vrot.slane %v579, 1
      %v581 = vadd.f32 %v579, %v580
      %v582 = vrot.slane %v563, 4
      %v583 = vadd.f32 %v563, %v582
      %v584 = vrot.slane %v583, 2
      %v585 = vadd.f32 %v583, %v584
      %v586 = vrot.slane %v585, 1
      %v587 = vadd.f32 %v585, %v586
      %v588 = vmul.f32 %v569, %v569
      %v589 = vmul.f32 %v575, %v575
      %v590 = vmul.f32 %v581, %v581
      %v591 = vmul.f32 %v587, %v587
      %vm596 = vcmask 1041409
      %v597 = vsel %vm596, %v589, %v588
      %vm598 = vcmask 1042434
      %v599 = vsel %vm598, %v590, %v597
      %vm600 = vcmask 1043459
      %v601 = vsel %vm600, %v591, %v599
      %vm603 = vcmask 1043456
      %v604 = vsel %vm603, %v601, 0.0
      %605 = vadd.xlane.f32.xlu0 %v604
      %v606 = vpop.xlane.xlu0 %605
      %v607 = vrsqrt.pop %v606
      %v609 = vrot.slane %v607, 1
      %v610 = vrot.slane %v607, 2
      %v611 = vrot.slane %v607, 3
      %v616 = vmul.f32 %v569, %v607
      %v617 = vmul.f32 %v575, %v609
      %v618 = vmul.f32 %v581, %v610
      %v619 = vmul.f32 %v587, %v611
      %v620 = vpack.c.bf16 %v616, %v616
      %v621 = vpack.c.bf16 %v617, %v617
      %v622 = vpack.c.bf16 %v618, %v618
      %v623 = vpack.c.bf16 %v619, %v619
      %v629 = vunpack.c.l.s4 1983009808
      %v630 = vunpack.c.0.s8 %v629
      %v631 = vlaneseq
      %v632 = vshrl.u32 %v631, 7
      %v633 = vsub.s32 %v630, %v632
      %v634 = vrot.slane %v620, %v633
      %v636 = vunpack.c.l.s4 1983009808
      %v637 = vunpack.c.0.s8 %v636
      %v638 = vlaneseq
      %v639 = vshrl.u32 %v638, 7
      %v640 = vsub.s32 %v637, %v639
      %v641 = vrot.slane %v621, %v640
      %v643 = vunpack.c.l.s4 1983009808
      %v644 = vunpack.c.0.s8 %v643
      %v645 = vlaneseq
      %v646 = vshrl.u32 %v645, 7
      %v647 = vsub.s32 %v644, %v646
      %v648 = vrot.slane %v622, %v647
      %v650 = vunpack.c.l.s4 1983009808
      %v651 = vunpack.c.0.s8 %v650
      %v652 = vlaneseq
      %v653 = vshrl.u32 %v652, 7
      %v654 = vsub.s32 %v651, %v653
      %v655 = vrot.slane %v623, %v654
      %v657 = vunpack.c.l.s4 1983009808
      %v658 = vunpack.c.0.s8 %v657
      %v659 = vlaneseq
      %v660 = vshrl.u32 %v659, 7
      %v661 = vsub.s32 %v658, %v660
      %v662 = vrot.slane %v634, %v661
      %v664 = vunpack.c.l.s4 1983009808
      %v665 = vunpack.c.0.s8 %v664
      %v666 = vlaneseq
      %v667 = vshrl.u32 %v666, 7
      %v668 = vsub.s32 %v665, %v667
      %v669 = vrot.slane %v641, %v668
      %v671 = vunpack.c.l.s4 1983009808
      %v672 = vunpack.c.0.s8 %v671
      %v673 = vlaneseq
      %v674 = vshrl.u32 %v673, 7
      %v675 = vsub.s32 %v672, %v674
      %v676 = vrot.slane %v648, %v675
      %v678 = vunpack.c.l.s4 1983009808
      %v679 = vunpack.c.0.s8 %v678
      %v680 = vlaneseq
      %v681 = vshrl.u32 %v680, 7
      %v682 = vsub.s32 %v679, %v681
      %v683 = vrot.slane %v655, %v682
      %v684 = vunpack.c.l.b16 %v662
      %v685 = vunpack.c.l.b16 %v669
      %v686 = vunpack.c.l.b16 %v676
      %v687 = vunpack.c.l.b16 %v683
      %v688 = vrot.slane %v685, 7
      %v689 = vsel %vm596, %v688, %v684
      %v690 = vrot.slane %v686, 6
      %v691 = vsel %vm598, %v690, %v689
      %v692 = vrot.slane %v687, 5
      %v693 = vsel %vm600, %v692, %v691
      %v694 = vpack.c.b16 %v693, %v693
      %v696 = vunpack.c.l.s4 1983009808
      %v697 = vunpack.c.0.s8 %v696
      %v698 = vlaneseq
      %v699 = vshrl.u32 %v698, 7
      %v700 = vsub.s32 %v697, %v699
      %v701 = vrot.slane %v694, %v700
      %703 = vst [vmem:[#allocation2] sm:$0x3] %v701
      %v704 = vld [vmem:[#allocation12] sm:$0xf]
      %v705 = vld [vmem:[#allocation12 + $0x4] sm:$0xf]
      %v706 = vld [vmem:[#allocation12 + $0x8] sm:$0xf]
      %v707 = vld [vmem:[#allocation12 + $0xc] sm:$0xf]
      %s708 = scalar_lea.vmem [#allocation15], 128
      %v709 = vld [vmem:[%s708] sm:$0xff]
      %v710 = vld [vmem:[%s708 + $0x8] sm:$0xff]
      %v711 = vld [vmem:[%s708 + $0x10] sm:$0xff]
      %v712 = vld [vmem:[%s708 + $0x18] sm:$0xff]
      %v713 = vld [vmem:[%s708 + $0x20] sm:$0xff]
      %v714 = vld [vmem:[%s708 + $0x28] sm:$0xff]
      %v715 = vld [vmem:[%s708 + $0x30] sm:$0xff]
      %v716 = vld [vmem:[%s708 + $0x38] sm:$0xff]
      %v717 = vld [vmem:[%s708 + $0x40] sm:$0xff]
      %v718 = vld [vmem:[%s708 + $0x48] sm:$0xff]
      %v719 = vld [vmem:[%s708 + $0x50] sm:$0xff]
      %v720 = vld [vmem:[%s708 + $0x58] sm:$0xff]
      %v721 = vld [vmem:[%s708 + $0x60] sm:$0xff]
      %v722 = vld [vmem:[%s708 + $0x68] sm:$0xff]
      %v723 = vld [vmem:[%s708 + $0x70] sm:$0xff]
      %v724 = vld [vmem:[%s708 + $0x78] sm:$0xff]
      %s725 = scalar_lea.vmem %s6, 2
      %v726 = vld [vmem:[%s725] sm:$0x3]
      %v728 = vlaneseq
      %v729 = vshrl.u32 %v728, 7
      %v730 = vsub.s32 0, %v729
      %v731 = vrot.slane %v726, %v730
      %v732 = vlaneseq
      %v733 = vshrl.u32 %v732, 7
      %v734 = vsub.s32 1, %v733
      %v735 = vrot.slane %v726, %v734
      %v742 = vunpack.c.l.b16 %v704
      %v743 = vunpack.c.l.b16 %v705
      %v744 = vunpack.c.l.b16 %v706
      %v745 = vunpack.c.l.b16 %v707
      %v746 = vpack.c.b16 %v743, %v742
      %v747 = vpack.c.b16 %v745, %v744
      %v766 = vunpack.c.l.b16 %v709
      %v767 = vunpack.c.h.b16 %v709
      %v768 = vunpack.c.l.b16 %v710
      %v769 = vunpack.c.h.b16 %v710
      %v770 = vunpack.c.l.b16 %v711
      %v771 = vunpack.c.h.b16 %v711
      %v772 = vunpack.c.l.b16 %v712
      %v773 = vunpack.c.h.b16 %v712
      %v774 = vunpack.c.l.b16 %v713
      %v775 = vunpack.c.h.b16 %v713
      %v776 = vunpack.c.l.b16 %v714
      %v777 = vunpack.c.h.b16 %v714
      %v778 = vunpack.c.l.b16 %v715
      %v779 = vunpack.c.h.b16 %v715
      %v780 = vunpack.c.l.b16 %v716
      %v781 = vunpack.c.h.b16 %v716
      %v782 = vunpack.c.l.b16 %v717
      %v783 = vunpack.c.h.b16 %v717
      %v784 = vunpack.c.l.b16 %v718
      %v785 = vunpack.c.h.b16 %v718
      %v786 = vunpack.c.l.b16 %v719
      %v787 = vunpack.c.h.b16 %v719
      %v788 = vunpack.c.l.b16 %v720
      %v789 = vunpack.c.h.b16 %v720
      %v790 = vunpack.c.l.b16 %v721
      %v791 = vunpack.c.h.b16 %v721
      %v792 = vunpack.c.l.b16 %v722
      %v793 = vunpack.c.h.b16 %v722
      %v794 = vunpack.c.l.b16 %v723
      %v795 = vunpack.c.h.b16 %v723
      %v796 = vunpack.c.l.b16 %v724
      %v797 = vunpack.c.h.b16 %v724
      %v798 = vpack.c.b16 %v768, %v766
      %v799 = vpack.c.b16 %v769, %v767
      %v800 = vpack.c.b16 %v772, %v770
      %v801 = vpack.c.b16 %v773, %v771
      %v802 = vpack.c.b16 %v776, %v774
      %v803 = vpack.c.b16 %v777, %v775
      %v804 = vpack.c.b16 %v780, %v778
      %v805 = vpack.c.b16 %v781, %v779
      %v806 = vpack.c.b16 %v784, %v782
      %v807 = vpack.c.b16 %v785, %v783
      %v808 = vpack.c.b16 %v788, %v786
      %v809 = vpack.c.b16 %v789, %v787
      %v810 = vpack.c.b16 %v792, %v790
      %v811 = vpack.c.b16 %v793, %v791
      %v812 = vpack.c.b16 %v796, %v794
      %v813 = vpack.c.b16 %v797, %v795
      %830 = vmatprep.subr.bf16.mxu0 %v799
      %831 = vmatpush1.bf16.msra.mxu0 %v798
      %832 = vmatprep.subr.bf16.mxu0 %v801
      %833 = vmatpush1.bf16.msra.mxu0 %v800
      %834 = vmatprep.subr.bf16.mxu0 %v803
      %835 = vmatpush1.bf16.msra.mxu0 %v802
      %836 = vmatprep.subr.bf16.mxu0 %v805
      %837 = vmatpush1.bf16.msra.mxu0 %v804
      %838 = vmatprep.subr.bf16.mxu0 %v807
      %839 = vmatpush1.bf16.msra.mxu0 %v806
      %840 = vmatprep.subr.bf16.mxu0 %v809
      %841 = vmatpush1.bf16.msra.mxu0 %v808
      %842 = vmatprep.subr.bf16.mxu0 %v811
      %843 = vmatpush1.bf16.msra.mxu0 %v810
      %844 = vmatprep.subr.bf16.mxu0 %v813
      %845 = vmatpush1.bf16.msra.mxu0 %v812
      %846 = vmatprep.subr.bf16.mxu0 0
      %847 = vmatpush1.bf16.msra.mxu0 0
      %848 = vmatprep.subr.bf16.mxu0 0
      %849 = vmatpush1.bf16.msra.mxu0 0
      %850 = vmatprep.subr.bf16.mxu0 0
      %851 = vmatpush1.bf16.msra.mxu0 0
      %852 = vmatprep.subr.bf16.mxu0 0
      %853 = vmatpush1.bf16.msra.mxu0 0
      %854 = vmatprep.subr.bf16.mxu0 0
      %855 = vmatpush1.bf16.msra.mxu0 0
      %856 = vmatprep.subr.bf16.mxu0 0
      %857 = vmatpush1.bf16.msra.mxu0 0
      %858 = vmatprep.subr.bf16.mxu0 0
      %859 = vmatpush1.bf16.msra.mxu0 0
      %860 = vmatprep.subr.bf16.mxu0 0
      %861 = vmatpush1.bf16.msra.mxu0 0
      %862 = vmatprep.mubr.bf16.mxu0 0
      %863 = vmatmul.mubr.bf16.gmra.mrb[0].mxu0 %v746
      %v864 = vpop.f32.mrb[0].mxu0
      %v865 = vadd.f32 %v731, %v864
      %v866 = vpop.f32.mrb[0].mxu0
      %v867 = vadd.f32 %v735, %v866
      %v868 = vpop.f32.mrb[0].mxu0
      %v869 = vadd.f32 %v731, %v868
      %v870 = vpop.f32.mrb[0].mxu0
      %v871 = vadd.f32 %v735, %v870
      %872 = vmatprep.mubr.bf16.mxu0 0
      %873 = vmatmul.mubr.bf16.gmra.mrb[0].mxu0 %v747
      %v874 = vpop.f32.mrb[0].mxu0
      %v875 = vadd.f32 %v731, %v874
      %v876 = vpop.f32.mrb[0].mxu0
      %v877 = vadd.f32 %v735, %v876
      %v878 = vpop.f32.mrb[0].mxu0
      %v879 = vadd.f32 %v731, %v878
      %v880 = vpop.f32.mrb[0].mxu0
      %v881 = vadd.f32 %v735, %v880
      %882 = vdwg.mxu0
      %v883 = vmax.f32 %v865, 0.0
      %v884 = vmax.f32 %v867, 0.0
      %v885 = vmax.f32 %v869, 0.0
      %v886 = vmax.f32 %v871, 0.0
      %v887 = vmax.f32 %v875, 0.0
      %v888 = vmax.f32 %v877, 0.0
      %v889 = vmax.f32 %v879, 0.0
      %v890 = vmax.f32 %v881, 0.0
      %v891 = vpack.c.bf16 %v885, %v883
      %v892 = vpack.c.bf16 %v886, %v884
      %v893 = vpack.c.bf16 %v889, %v887
      %v894 = vpack.c.bf16 %v890, %v888
      %s895 = scalar_lea.vmem [#allocation17], 128
      %v896 = vld [vmem:[%s895] sm:$0xf]
      %v897 = vld [vmem:[%s895 + $0x4] sm:$0xf]
      %v898 = vld [vmem:[%s895 + $0x8] sm:$0xf]
      %v899 = vld [vmem:[%s895 + $0xc] sm:$0xf]
      %v900 = vld [vmem:[%s895 + $0x10] sm:$0xf]
      %v901 = vld [vmem:[%s895 + $0x14] sm:$0xf]
      %v902 = vld [vmem:[%s895 + $0x18] sm:$0xf]
      %v903 = vld [vmem:[%s895 + $0x1c] sm:$0xf]
      %v904 = vld [vmem:[%s895 + $0x20] sm:$0xf]
      %v905 = vld [vmem:[%s895 + $0x24] sm:$0xf]
      %v906 = vld [vmem:[%s895 + $0x28] sm:$0xf]
      %v907 = vld [vmem:[%s895 + $0x2c] sm:$0xf]
      %v908 = vld [vmem:[%s895 + $0x30] sm:$0xf]
      %v909 = vld [vmem:[%s895 + $0x34] sm:$0xf]
      %v910 = vld [vmem:[%s895 + $0x38] sm:$0xf]
      %v911 = vld [vmem:[%s895 + $0x3c] sm:$0xf]
      %v912 = vld [vmem:[%s895 + $0x40] sm:$0xf]
      %v913 = vld [vmem:[%s895 + $0x44] sm:$0xf]
      %v914 = vld [vmem:[%s895 + $0x48] sm:$0xf]
      %v915 = vld [vmem:[%s895 + $0x4c] sm:$0xf]
      %v916 = vld [vmem:[%s895 + $0x50] sm:$0xf]
      %v917 = vld [vmem:[%s895 + $0x54] sm:$0xf]
      %v918 = vld [vmem:[%s895 + $0x58] sm:$0xf]
      %v919 = vld [vmem:[%s895 + $0x5c] sm:$0xf]
      %v920 = vld [vmem:[%s895 + $0x60] sm:$0xf]
      %v921 = vld [vmem:[%s895 + $0x64] sm:$0xf]
      %v922 = vld [vmem:[%s895 + $0x68] sm:$0xf]
      %v923 = vld [vmem:[%s895 + $0x6c] sm:$0xf]
      %v924 = vld [vmem:[%s895 + $0x70] sm:$0xf]
      %v925 = vld [vmem:[%s895 + $0x74] sm:$0xf]
      %v926 = vld [vmem:[%s895 + $0x78] sm:$0xf]
      %v927 = vld [vmem:[%s895 + $0x7c] sm:$0xf]
      %s928 = scalar_lea.vmem %s8, 1
      %v929 = vld [vmem:[%s928] sm:$0x1]
      %v931 = vlaneseq
      %v932 = vshrl.u32 %v931, 7
      %v933 = vsub.s32 0, %v932
      %v934 = vrot.slane %v929, %v933
      %v968 = vunpack.c.l.b16 %v896
      %v969 = vunpack.c.l.b16 %v897
      %v970 = vunpack.c.l.b16 %v898
      %v971 = vunpack.c.l.b16 %v899
      %v972 = vunpack.c.l.b16 %v900
      %v973 = vunpack.c.l.b16 %v901
      %v974 = vunpack.c.l.b16 %v902
      %v975 = vunpack.c.l.b16 %v903
      %v976 = vunpack.c.l.b16 %v904
      %v977 = vunpack.c.l.b16 %v905
      %v978 = vunpack.c.l.b16 %v906
      %v979 = vunpack.c.l.b16 %v907
      %v980 = vunpack.c.l.b16 %v908
      %v981 = vunpack.c.l.b16 %v909
      %v982 = vunpack.c.l.b16 %v910
      %v983 = vunpack.c.l.b16 %v911
      %v984 = vunpack.c.l.b16 %v912
      %v985 = vunpack.c.l.b16 %v913
      %v986 = vunpack.c.l.b16 %v914
      %v987 = vunpack.c.l.b16 %v915
      %v988 = vunpack.c.l.b16 %v916
      %v989 = vunpack.c.l.b16 %v917
      %v990 = vunpack.c.l.b16 %v918
      %v991 = vunpack.c.l.b16 %v919
      %v992 = vunpack.c.l.b16 %v920
      %v993 = vunpack.c.l.b16 %v921
      %v994 = vunpack.c.l.b16 %v922
      %v995 = vunpack.c.l.b16 %v923
      %v996 = vunpack.c.l.b16 %v924
      %v997 = vunpack.c.l.b16 %v925
      %v998 = vunpack.c.l.b16 %v926
      %v999 = vunpack.c.l.b16 %v927
      %v1000 = vpack.c.b16 %v969, %v968
      %v1001 = vpack.c.b16 %v971, %v970
      %v1002 = vpack.c.b16 %v973, %v972
      %v1003 = vpack.c.b16 %v975, %v974
      %v1004 = vpack.c.b16 %v977, %v976
      %v1005 = vpack.c.b16 %v979, %v978
      %v1006 = vpack.c.b16 %v981, %v980
      %v1007 = vpack.c.b16 %v983, %v982
      %v1008 = vpack.c.b16 %v985, %v984
      %v1009 = vpack.c.b16 %v987, %v986
      %v1010 = vpack.c.b16 %v989, %v988
      %v1011 = vpack.c.b16 %v991, %v990
      %v1012 = vpack.c.b16 %v993, %v992
      %v1013 = vpack.c.b16 %v995, %v994
      %v1014 = vpack.c.b16 %v997, %v996
      %v1015 = vpack.c.b16 %v999, %v998
      %1032 = vmatprep.subr.bf16.mxu0 0
      %1033 = vmatpush1.bf16.msra.mxu0 %v1000
      %1034 = vmatprep.subr.bf16.mxu0 0
      %1035 = vmatpush1.bf16.msra.mxu0 %v1001
      %1036 = vmatprep.subr.bf16.mxu0 0
      %1037 = vmatpush1.bf16.msra.mxu0 %v1002
      %1038 = vmatprep.subr.bf16.mxu0 0
      %1039 = vmatpush1.bf16.msra.mxu0 %v1003
      %1040 = vmatprep.subr.bf16.mxu0 0
      %1041 = vmatpush1.bf16.msra.mxu0 %v1004
      %1042 = vmatprep.subr.bf16.mxu0 0
      %1043 = vmatpush1.bf16.msra.mxu0 %v1005
      %1044 = vmatprep.subr.bf16.mxu0 0
      %1045 = vmatpush1.bf16.msra.mxu0 %v1006
      %1046 = vmatprep.subr.bf16.mxu0 0
      %1047 = vmatpush1.bf16.msra.mxu0 %v1007
      %1048 = vmatprep.subr.bf16.mxu0 0
      %1049 = vmatpush1.bf16.msra.mxu0 %v1008
      %1050 = vmatprep.subr.bf16.mxu0 0
      %1051 = vmatpush1.bf16.msra.mxu0 %v1009
      %1052 = vmatprep.subr.bf16.mxu0 0
      %1053 = vmatpush1.bf16.msra.mxu0 %v1010
      %1054 = vmatprep.subr.bf16.mxu0 0
      %1055 = vmatpush1.bf16.msra.mxu0 %v1011
      %1056 = vmatprep.subr.bf16.mxu0 0
      %1057 = vmatpush1.bf16.msra.mxu0 %v1012
      %1058 = vmatprep.subr.bf16.mxu0 0
      %1059 = vmatpush1.bf16.msra.mxu0 %v1013
      %1060 = vmatprep.subr.bf16.mxu0 0
      %1061 = vmatpush1.bf16.msra.mxu0 %v1014
      %1062 = vmatprep.subr.bf16.mxu0 0
      %1063 = vmatpush1.bf16.msra.mxu0 %v1015
      %1064 = vmatprep.mubr.bf16.mxu0 %v892
      %1065 = vmatmul.mubr.bf16.gmra.mrb[0].mxu0 %v891
      %v1066 = vpop.f32.mrb[0].mxu0
      %v1067 = vadd.f32 %v934, %v1066
      %v1068 = vpop.f32.mrb[0].mxu0
      %v1069 = vpop.f32.mrb[0].mxu0
      %v1070 = vadd.f32 %v934, %v1069
      %v1071 = vpop.f32.mrb[0].mxu0
      %1072 = vmatprep.mubr.bf16.mxu0 %v894
      %1073 = vmatmul.mubr.bf16.gmra.mrb[0].mxu0 %v893
      %v1074 = vpop.f32.mrb[0].mxu0
      %v1075 = vadd.f32 %v934, %v1074
      %v1076 = vpop.f32.mrb[0].mxu0
      %v1077 = vpop.f32.mrb[0].mxu0
      %v1078 = vadd.f32 %v934, %v1077
      %v1079 = vpop.f32.mrb[0].mxu0
      %1080 = vdwg.mxu0
      %v1081 = vmax.f32 %v1067, 0.0
      %v1082 = vmax.f32 %v1070, 0.0
      %v1083 = vmax.f32 %v1075, 0.0
      %v1084 = vmax.f32 %v1078, 0.0
      %s1085 = scalar_lea.vmem %s9, 1
      %v1086 = vld [vmem:[%s1085] sm:$0x1]
      %v1088 = vlaneseq
      %v1089 = vshrl.u32 %v1088, 7
      %v1090 = vsub.s32 0, %v1089
      %v1091 = vrot.slane %v1086, %v1090
      %v1093 = vmul.f32 %v1081, %v1091
      %v1094 = vmul.f32 %v1082, %v1091
      %v1095 = vmul.f32 %v1083, %v1091
      %v1096 = vmul.f32 %v1084, %v1091
      %1097 = vadd.xlane.f32.xlu0 %v1093
      %v1098 = vpop.xlane.xlu0 %1097
      %1099 = vadd.xlane.f32.xlu0 %v1094
      %v1100 = vpop.xlane.xlu0 %1099
      %1101 = vadd.xlane.f32.xlu0 %v1095
      %v1102 = vpop.xlane.xlu0 %1101
      %1103 = vadd.xlane.f32.xlu0 %v1096
      %v1104 = vpop.xlane.xlu0 %1103
      %s1105 = sld [smem:[#allocation18 + $0x1]]
      %v1106 = vstv %s1105
      %v1107 = vadd.f32 %v1098, %v1106
      %v1108 = vadd.f32 %v1100, %v1106
      %v1109 = vadd.f32 %v1102, %v1106
      %v1110 = vadd.f32 %v1104, %v1106
      %v1115 = vlaneseq
      %v1116 = vand.u32 %v1115, 127
      %v1117 = vlaneseq
      %v1118 = vshrl.u32 %v1117, 7
      %v1119 = vsub.s32 %v1116, %v1118
      %v1120 = vrot.slane %v1107, %v1119
      %v1121 = vlaneseq
      %v1122 = vshrl.u32 %v1121, 7
      %v1123 = vsub.s32 %v1116, %v1122
      %v1124 = vrot.slane %v1108, %v1123
      %v1125 = vlaneseq
      %v1126 = vshrl.u32 %v1125, 7
      %v1127 = vsub.s32 %v1116, %v1126
      %v1128 = vrot.slane %v1109, %v1127
      %v1129 = vlaneseq
      %v1130 = vshrl.u32 %v1129, 7
      %v1131 = vsub.s32 %v1116, %v1130
      %v1132 = vrot.slane %v1110, %v1131
      %v1133 = vsel %vm596, %v1124, %v1120
      %v1134 = vsel %vm598, %v1128, %v1133
      %v1135 = vsel %vm600, %v1132, %v1134
      %1137 = vxpose.xlu0.b32.start [1/16] %v1135, 128
      %1138 = vxpose.xlu0.b32.cont [2/16] 0.0, 128
      %1139 = vxpose.xlu0.b32.cont [3/16] 0.0, 128
      %1140 = vxpose.xlu0.b32.cont [4/16] 0.0, 128
      %1141 = vxpose.xlu0.b32.cont [5/16] 0.0, 128
      %1142 = vxpose.xlu0.b32.cont [6/16] 0.0, 128
      %1143 = vxpose.xlu0.b32.cont [7/16] 0.0, 128
      %1144 = vxpose.xlu0.b32.cont [8/16] 0.0, 128
      %1145 = vxpose.xlu0.b32.cont [9/16] 0.0, 128
      %1146 = vxpose.xlu0.b32.cont [10/16] 0.0, 128
      %1147 = vxpose.xlu0.b32.cont [11/16] 0.0, 128
      %1148 = vxpose.xlu0.b32.cont [12/16] 0.0, 128
      %1149 = vxpose.xlu0.b32.cont [13/16] 0.0, 128
      %1150 = vxpose.xlu0.b32.cont [14/16] 0.0, 128
      %1151 = vxpose.xlu0.b32.cont [15/16] 0.0, 128
      %1152 = vxpose.xlu0.b32.end [16/16] 0.0, 128
      %v1153 = vpop.trf.xlu0
      %v1154 = vpop.trf.xlu0
      %v1155 = vpop.trf.xlu0
      %v1156 = vpop.trf.xlu0
      %v1157 = vpop.trf.xlu0
      %v1158 = vpop.trf.xlu0
      %v1159 = vpop.trf.xlu0
      %v1160 = vpop.trf.xlu0
      %v1161 = vpop.trf.xlu0
      %v1162 = vpop.trf.xlu0
      %v1163 = vpop.trf.xlu0
      %v1164 = vpop.trf.xlu0
      %v1165 = vpop.trf.xlu0
      %v1166 = vpop.trf.xlu0
      %v1167 = vpop.trf.xlu0
      %v1168 = vpop.trf.xlu0
      %vm1169 = vcmask 31744
      %1170 = vst.msk [vmem:[#allocation3] sm:$0xff] %vm1169, %v1153
      %v1171 = vld [vmem:[#allocation14] sm:$0x3]
      %v1172 = vld [vmem:[#allocation14 + $0x2] sm:$0x3]
      %v1173 = vld [vmem:[#allocation14 + $0x4] sm:$0x3]
      %v1174 = vld [vmem:[#allocation14 + $0x6] sm:$0x3]
      %v1175 = vld [vmem:[#allocation14 + $0x8] sm:$0x3]
      %v1176 = vld [vmem:[#allocation14 + $0xa] sm:$0x3]
      %v1177 = vld [vmem:[#allocation14 + $0xc] sm:$0x3]
      %v1178 = vld [vmem:[#allocation14 + $0xe] sm:$0x3]
      %s1179 = scalar_lea.vmem [#allocation15], 256
      %v1180 = vld [vmem:[%s1179] sm:$0xff]
      %v1181 = vld [vmem:[%s1179 + $0x8] sm:$0xff]
      %v1182 = vld [vmem:[%s1179 + $0x10] sm:$0xff]
      %v1183 = vld [vmem:[%s1179 + $0x18] sm:$0xff]
      %v1184 = vld [vmem:[%s1179 + $0x20] sm:$0xff]
      %v1185 = vld [vmem:[%s1179 + $0x28] sm:$0xff]
      %v1186 = vld [vmem:[%s1179 + $0x30] sm:$0xff]
      %v1187 = vld [vmem:[%s1179 + $0x38] sm:$0xff]
      %v1188 = vld [vmem:[%s1179 + $0x40] sm:$0xff]
      %v1189 = vld [vmem:[%s1179 + $0x48] sm:$0xff]
      %v1190 = vld [vmem:[%s1179 + $0x50] sm:$0xff]
      %v1191 = vld [vmem:[%s1179 + $0x58] sm:$0xff]
      %v1192 = vld [vmem:[%s1179 + $0x60] sm:$0xff]
      %v1193 = vld [vmem:[%s1179 + $0x68] sm:$0xff]
      %v1194 = vld [vmem:[%s1179 + $0x70] sm:$0xff]
      %v1195 = vld [vmem:[%s1179 + $0x78] sm:$0xff]
      %s1196 = scalar_lea.vmem %s6, 4
      %v1197 = vld [vmem:[%s1196] sm:$0x3]
      %v1199 = vlaneseq
      %v1200 = vshrl.u32 %v1199, 7
      %v1201 = vsub.s32 0, %v1200
      %v1202 = vrot.slane %v1197, %v1201
      %v1203 = vlaneseq
      %v1204 = vshrl.u32 %v1203, 7
      %v1205 = vsub.s32 1, %v1204
      %v1206 = vrot.slane %v1197, %v1205
      %v1217 = vcombine.low %v1171, %v1172
      %v1218 = vcombine.low %v1173, %v1174
      %v1220 = vunpack.c.l.s4 1983009808
      %v1221 = vunpack.c.0.s8 %v1220
      %v1222 = vlaneseq
      %v1223 = vshrl.u32 %v1222, 7
      %v1224 = vsub.s32 %v1221, %v1223
      %v1225 = vrot.slane %v1217, %v1224
      %v1227 = vunpack.c.l.s4 1983009808
      %v1228 = vunpack.c.0.s8 %v1227
      %v1229 = vlaneseq
      %v1230 = vshrl.u32 %v1229, 7
      %v1231 = vsub.s32 %v1228, %v1230
      %v1232 = vrot.slane %v1218, %v1231
      %v1233 = vcombine.low %v1225, %v1232
      %v1234 = vcombine.low %v1175, %v1176
      %v1235 = vcombine.low %v1177, %v1178
      %v1237 = vunpack.c.l.s4 1983009808
      %v1238 = vunpack.c.0.s8 %v1237
      %v1239 = vlaneseq
      %v1240 = vshrl.u32 %v1239, 7
      %v1241 = vsub.s32 %v1238, %v1240
      %v1242 = vrot.slane %v1234, %v1241
      %v1244 = vunpack.c.l.s4 1983009808
      %v1245 = vunpack.c.0.s8 %v1244
      %v1246 = vlaneseq
      %v1247 = vshrl.u32 %v1246, 7
      %v1248 = vsub.s32 %v1245, %v1247
      %v1249 = vrot.slane %v1235, %v1248
      %v1250 = vcombine.low %v1242, %v1249
      %v1269 = vunpack.c.l.b16 %v1180
      %v1270 = vunpack.c.h.b16 %v1180
      %v1271 = vunpack.c.l.b16 %v1181
      %v1272 = vunpack.c.h.b16 %v1181
      %v1273 = vunpack.c.l.b16 %v1182
      %v1274 = vunpack.c.h.b16 %v1182
      %v1275 = vunpack.c.l.b16 %v1183
      %v1276 = vunpack.c.h.b16 %v1183
      %v1277 = vunpack.c.l.b16 %v1184
      %v1278 = vunpack.c.h.b16 %v1184
      %v1279 = vunpack.c.l.b16 %v1185
      %v1280 = vunpack.c.h.b16 %v1185
      %v1281 = vunpack.c.l.b16 %v1186
      %v1282 = vunpack.c.h.b16 %v1186
      %v1283 = vunpack.c.l.b16 %v1187
      %v1284 = vunpack.c.h.b16 %v1187
      %v1285 = vunpack.c.l.b16 %v1188
      %v1286 = vunpack.c.h.b16 %v1188
      %v1287 = vunpack.c.l.b16 %v1189
      %v1288 = vunpack.c.h.b16 %v1189
      %v1289 = vunpack.c.l.b16 %v1190
      %v1290 = vunpack.c.h.b16 %v1190
      %v1291 = vunpack.c.l.b16 %v1191
      %v1292 = vunpack.c.h.b16 %v1191
      %v1293 = vunpack.c.l.b16 %v1192
      %v1294 = vunpack.c.h.b16 %v1192
      %v1295 = vunpack.c.l.b16 %v1193
      %v1296 = vunpack.c.h.b16 %v1193
      %v1297 = vunpack.c.l.b16 %v1194
      %v1298 = vunpack.c.h.b16 %v1194
      %v1299 = vunpack.c.l.b16 %v1195
      %v1300 = vunpack.c.h.b16 %v1195
      %v1301 = vpack.c.b16 %v1271, %v1269
      %v1302 = vpack.c.b16 %v1272, %v1270
      %v1303 = vpack.c.b16 %v1275, %v1273
      %v1304 = vpack.c.b16 %v1276, %v1274
      %v1305 = vpack.c.b16 %v1279, %v1277
      %v1306 = vpack.c.b16 %v1280, %v1278
      %v1307 = vpack.c.b16 %v1283, %v1281
      %v1308 = vpack.c.b16 %v1284, %v1282
      %v1309 = vpack.c.b16 %v1287, %v1285
      %v1310 = vpack.c.b16 %v1288, %v1286
      %v1311 = vpack.c.b16 %v1291, %v1289
      %v1312 = vpack.c.b16 %v1292, %v1290
      %v1313 = vpack.c.b16 %v1295, %v1293
      %v1314 = vpack.c.b16 %v1296, %v1294
      %v1315 = vpack.c.b16 %v1299, %v1297
      %v1316 = vpack.c.b16 %v1300, %v1298
      %1333 = vmatprep.subr.bf16.mxu0 %v1302
      %1334 = vmatpush1.bf16.msra.mxu0 %v1301
      %1335 = vmatprep.subr.bf16.mxu0 %v1304
      %1336 = vmatpush1.bf16.msra.mxu0 %v1303
      %1337 = vmatprep.subr.bf16.mxu0 %v1306
      %1338 = vmatpush1.bf16.msra.mxu0 %v1305
      %1339 = vmatprep.subr.bf16.mxu0 %v1308
      %1340 = vmatpush1.bf16.msra.mxu0 %v1307
      %1341 = vmatprep.subr.bf16.mxu0 %v1310
      %1342 = vmatpush1.bf16.msra.mxu0 %v1309
      %1343 = vmatprep.subr.bf16.mxu0 %v1312
      %1344 = vmatpush1.bf16.msra.mxu0 %v1311
      %1345 = vmatprep.subr.bf16.mxu0 %v1314
      %1346 = vmatpush1.bf16.msra.mxu0 %v1313
      %1347 = vmatprep.subr.bf16.mxu0 %v1316
      %1348 = vmatpush1.bf16.msra.mxu0 %v1315
      %1349 = vmatprep.subr.bf16.mxu0 0
      %1350 = vmatpush1.bf16.msra.mxu0 0
      %1351 = vmatprep.subr.bf16.mxu0 0
      %1352 = vmatpush1.bf16.msra.mxu0 0
      %1353 = vmatprep.subr.bf16.mxu0 0
      %1354 = vmatpush1.bf16.msra.mxu0 0
      %1355 = vmatprep.subr.bf16.mxu0 0
      %1356 = vmatpush1.bf16.msra.mxu0 0
      %1357 = vmatprep.subr.bf16.mxu0 0
      %1358 = vmatpush1.bf16.msra.mxu0 0
      %1359 = vmatprep.subr.bf16.mxu0 0
      %1360 = vmatpush1.bf16.msra.mxu0 0
      %1361 = vmatprep.subr.bf16.mxu0 0
      %1362 = vmatpush1.bf16.msra.mxu0 0
      %1363 = vmatprep.subr.bf16.mxu0 0
      %1364 = vmatpush1.bf16.msra.mxu0 0
      %1365 = vmatprep.mubr.bf16.mxu0 0
      %1366 = vmatmul.mubr.bf16.gmra.mrb[0].mxu0 %v1233
      %v1367 = vpop.f32.mrb[0].mxu0
      %v1368 = vadd.f32 %v1202, %v1367
      %v1369 = vpop.f32.mrb[0].mxu0
      %v1370 = vadd.f32 %v1206, %v1369
      %v1371 = vpop.f32.mrb[0].mxu0
      %v1372 = vadd.f32 %v1202, %v1371
      %v1373 = vpop.f32.mrb[0].mxu0
      %v1374 = vadd.f32 %v1206, %v1373
      %1375 = vmatprep.mubr.bf16.mxu0 0
      %1376 = vmatmul.mubr.bf16.gmra.mrb[0].mxu0 %v1250
      %v1377 = vpop.f32.mrb[0].mxu0
      %v1378 = vadd.f32 %v1202, %v1377
      %v1379 = vpop.f32.mrb[0].mxu0
      %v1380 = vadd.f32 %v1206, %v1379
      %v1381 = vpop.f32.mrb[0].mxu0
      %v1382 = vadd.f32 %v1202, %v1381
      %v1383 = vpop.f32.mrb[0].mxu0
      %v1384 = vadd.f32 %v1206, %v1383
      %1385 = vdwg.mxu0
      %v1386 = vmax.f32 %v1368, 0.0
      %v1387 = vmax.f32 %v1370, 0.0
      %v1388 = vmax.f32 %v1372, 0.0
      %v1389 = vmax.f32 %v1374, 0.0
      %v1390 = vmax.f32 %v1378, 0.0
      %v1391 = vmax.f32 %v1380, 0.0
      %v1392 = vmax.f32 %v1382, 0.0
      %v1393 = vmax.f32 %v1384, 0.0
      %v1394 = vpack.c.bf16 %v1388, %v1386
      %v1395 = vpack.c.bf16 %v1389, %v1387
      %v1396 = vpack.c.bf16 %v1392, %v1390
      %v1397 = vpack.c.bf16 %v1393, %v1391
      %s1398 = scalar_lea.vmem [#allocation17], 256
      %v1399 = vld [vmem:[%s1398] sm:$0xf]
      %v1400 = vld [vmem:[%s1398 + $0x4] sm:$0xf]
      %v1401 = vld [vmem:[%s1398 + $0x8] sm:$0xf]
      %v1402 = vld [vmem:[%s1398 + $0xc] sm:$0xf]
      %v1403 = vld [vmem:[%s1398 + $0x10] sm:$0xf]
      %v1404 = vld [vmem:[%s1398 + $0x14] sm:$0xf]
      %v1405 = vld [vmem:[%s1398 + $0x18] sm:$0xf]
      %v1406 = vld [vmem:[%s1398 + $0x1c] sm:$0xf]
      %v1407 = vld [vmem:[%s1398 + $0x20] sm:$0xf]
      %v1408 = vld [vmem:[%s1398 + $0x24] sm:$0xf]
      %v1409 = vld [vmem:[%s1398 + $0x28] sm:$0xf]
      %v1410 = vld [vmem:[%s1398 + $0x2c] sm:$0xf]
      %v1411 = vld [vmem:[%s1398 + $0x30] sm:$0xf]
      %v1412 = vld [vmem:[%s1398 + $0x34] sm:$0xf]
      %v1413 = vld [vmem:[%s1398 + $0x38] sm:$0xf]
      %v1414 = vld [vmem:[%s1398 + $0x3c] sm:$0xf]
      %v1415 = vld [vmem:[%s1398 + $0x40] sm:$0xf]
      %v1416 = vld [vmem:[%s1398 + $0x44] sm:$0xf]
      %v1417 = vld [vmem:[%s1398 + $0x48] sm:$0xf]
      %v1418 = vld [vmem:[%s1398 + $0x4c] sm:$0xf]
      %v1419 = vld [vmem:[%s1398 + $0x50] sm:$0xf]
      %v1420 = vld [vmem:[%s1398 + $0x54] sm:$0xf]
      %v1421 = vld [vmem:[%s1398 + $0x58] sm:$0xf]
      %v1422 = vld [vmem:[%s1398 + $0x5c] sm:$0xf]
      %v1423 = vld [vmem:[%s1398 + $0x60] sm:$0xf]
      %v1424 = vld [vmem:[%s1398 + $0x64] sm:$0xf]
      %v1425 = vld [vmem:[%s1398 + $0x68] sm:$0xf]
      %v1426 = vld [vmem:[%s1398 + $0x6c] sm:$0xf]
      %v1427 = vld [vmem:[%s1398 + $0x70] sm:$0xf]
      %v1428 = vld [vmem:[%s1398 + $0x74] sm:$0xf]
      %v1429 = vld [vmem:[%s1398 + $0x78] sm:$0xf]
      %v1430 = vld [vmem:[%s1398 + $0x7c] sm:$0xf]
      %s1431 = scalar_lea.vmem %s8, 2
      %v1432 = vld [vmem:[%s1431] sm:$0x1]
      %v1434 = vlaneseq
      %v1435 = vshrl.u32 %v1434, 7
      %v1436 = vsub.s32 0, %v1435
      %v1437 = vrot.slane %v1432, %v1436
      %v1471 = vunpack.c.l.b16 %v1399
      %v1472 = vunpack.c.l.b16 %v1400
      %v1473 = vunpack.c.l.b16 %v1401
      %v1474 = vunpack.c.l.b16 %v1402
      %v1475 = vunpack.c.l.b16 %v1403
      %v1476 = vunpack.c.l.b16 %v1404
      %v1477 = vunpack.c.l.b16 %v1405
      %v1478 = vunpack.c.l.b16 %v1406
      %v1479 = vunpack.c.l.b16 %v1407
      %v1480 = vunpack.c.l.b16 %v1408
      %v1481 = vunpack.c.l.b16 %v1409
      %v1482 = vunpack.c.l.b16 %v1410
      %v1483 = vunpack.c.l.b16 %v1411
      %v1484 = vunpack.c.l.b16 %v1412
      %v1485 = vunpack.c.l.b16 %v1413
      %v1486 = vunpack.c.l.b16 %v1414
      %v1487 = vunpack.c.l.b16 %v1415
      %v1488 = vunpack.c.l.b16 %v1416
      %v1489 = vunpack.c.l.b16 %v1417
      %v1490 = vunpack.c.l.b16 %v1418
      %v1491 = vunpack.c.l.b16 %v1419
      %v1492 = vunpack.c.l.b16 %v1420
      %v1493 = vunpack.c.l.b16 %v1421
      %v1494 = vunpack.c.l.b16 %v1422
      %v1495 = vunpack.c.l.b16 %v1423
      %v1496 = vunpack.c.l.b16 %v1424
      %v1497 = vunpack.c.l.b16 %v1425
      %v1498 = vunpack.c.l.b16 %v1426
      %v1499 = vunpack.c.l.b16 %v1427
      %v1500 = vunpack.c.l.b16 %v1428
      %v1501 = vunpack.c.l.b16 %v1429
      %v1502 = vunpack.c.l.b16 %v1430
      %v1503 = vpack.c.b16 %v1472, %v1471
      %v1504 = vpack.c.b16 %v1474, %v1473
      %v1505 = vpack.c.b16 %v1476, %v1475
      %v1506 = vpack.c.b16 %v1478, %v1477
      %v1507 = vpack.c.b16 %v1480, %v1479
      %v1508 = vpack.c.b16 %v1482, %v1481
      %v1509 = vpack.c.b16 %v1484, %v1483
      %v1510 = vpack.c.b16 %v1486, %v1485
      %v1511 = vpack.c.b16 %v1488, %v1487
      %v1512 = vpack.c.b16 %v1490, %v1489
      %v1513 = vpack.c.b16 %v1492, %v1491
      %v1514 = vpack.c.b16 %v1494, %v1493
      %v1515 = vpack.c.b16 %v1496, %v1495
      %v1516 = vpack.c.b16 %v1498, %v1497
      %v1517 = vpack.c.b16 %v1500, %v1499
      %v1518 = vpack.c.b16 %v1502, %v1501
      %1535 = vmatprep.subr.bf16.mxu0 0
      %1536 = vmatpush1.bf16.msra.mxu0 %v1503
      %1537 = vmatprep.subr.bf16.mxu0 0
      %1538 = vmatpush1.bf16.msra.mxu0 %v1504
      %1539 = vmatprep.subr.bf16.mxu0 0
      %1540 = vmatpush1.bf16.msra.mxu0 %v1505
      %1541 = vmatprep.subr.bf16.mxu0 0
      %1542 = vmatpush1.bf16.msra.mxu0 %v1506
      %1543 = vmatprep.subr.bf16.mxu0 0
      %1544 = vmatpush1.bf16.msra.mxu0 %v1507
      %1545 = vmatprep.subr.bf16.mxu0 0
      %1546 = vmatpush1.bf16.msra.mxu0 %v1508
      %1547 = vmatprep.subr.bf16.mxu0 0
      %1548 = vmatpush1.bf16.msra.mxu0 %v1509
      %1549 = vmatprep.subr.bf16.mxu0 0
      %1550 = vmatpush1.bf16.msra.mxu0 %v1510
      %1551 = vmatprep.subr.bf16.mxu0 0
      %1552 = vmatpush1.bf16.msra.mxu0 %v1511
      %1553 = vmatprep.subr.bf16.mxu0 0
      %1554 = vmatpush1.bf16.msra.mxu0 %v1512
      %1555 = vmatprep.subr.bf16.mxu0 0
      %1556 = vmatpush1.bf16.msra.mxu0 %v1513
      %1557 = vmatprep.subr.bf16.mxu0 0
      %1558 = vmatpush1.bf16.msra.mxu0 %v1514
      %1559 = vmatprep.subr.bf16.mxu0 0
      %1560 = vmatpush1.bf16.msra.mxu0 %v1515
      %1561 = vmatprep.subr.bf16.mxu0 0
      %1562 = vmatpush1.bf16.msra.mxu0 %v1516
      %1563 = vmatprep.subr.bf16.mxu0 0
      %1564 = vmatpush1.bf16.msra.mxu0 %v1517
      %1565 = vmatprep.subr.bf16.mxu0 0
      %1566 = vmatpush1.bf16.msra.mxu0 %v1518
      %1567 = vmatprep.mubr.bf16.mxu0 %v1395
      %1568 = vmatmul.mubr.bf16.gmra.mrb[0].mxu0 %v1394
      %v1569 = vpop.f32.mrb[0].mxu0
      %v1570 = vadd.f32 %v1437, %v1569
      %v1571 = vpop.f32.mrb[0].mxu0
      %v1572 = vpop.f32.mrb[0].mxu0
      %v1573 = vadd.f32 %v1437, %v1572
      %v1574 = vpop.f32.mrb[0].mxu0
      %1575 = vmatprep.mubr.bf16.mxu0 %v1397
      %1576 = vmatmul.mubr.bf16.gmra.mrb[0].mxu0 %v1396
      %v1577 = vpop.f32.mrb[0].mxu0
      %v1578 = vadd.f32 %v1437, %v1577
      %v1579 = vpop.f32.mrb[0].mxu0
      %v1580 = vpop.f32.mrb[0].mxu0
      %v1581 = vadd.f32 %v1437, %v1580
      %v1582 = vpop.f32.mrb[0].mxu0
      %1583 = vdwg.mxu0
      %v1584 = vmax.f32 %v1570, 0.0
      %v1585 = vmax.f32 %v1573, 0.0
      %v1586 = vmax.f32 %v1578, 0.0
      %v1587 = vmax.f32 %v1581, 0.0
      %v1592 = vcombine.high %v1584, %v1584
      %v1593 = vcombine.high %v1585, %v1585
      %v1594 = vcombine.high %v1586, %v1586
      %v1595 = vcombine.high %v1587, %v1587
      %s1600 = scalar_lea.vmem %s9, 2
      %v1601 = vld [vmem:[%s1600] sm:$0x1]
      %v1603 = vlaneseq
      %v1604 = vshrl.u32 %v1603, 7
      %v1605 = vsub.s32 0, %v1604
      %v1606 = vrot.slane %v1601, %v1605
      %v1608 = vmul.f32 %v1584, %v1606
      %v1609 = vmul.f32 %v1592, %v1606
      %v1610 = vmul.f32 %v1585, %v1606
      %v1611 = vmul.f32 %v1593, %v1606
      %v1612 = vmul.f32 %v1586, %v1606
      %v1613 = vmul.f32 %v1594, %v1606
      %v1614 = vmul.f32 %v1587, %v1606
      %v1615 = vmul.f32 %v1595, %v1606
      %v1616 = vsel %vm603, %v1608, 0.0
      %1617 = vadd.xlane.f32.xlu0 %v1616
      %v1618 = vpop.xlane.xlu0 %1617
      %v1619 = vsel %vm603, %v1609, 0.0
      %1620 = vadd.xlane.f32.xlu0 %v1619
      %v1621 = vpop.xlane.xlu0 %1620
      %v1622 = vsel %vm603, %v1610, 0.0
      %1623 = vadd.xlane.f32.xlu0 %v1622
      %v1624 = vpop.xlane.xlu0 %1623
      %v1625 = vsel %vm603, %v1611, 0.0
      %1626 = vadd.xlane.f32.xlu0 %v1625
      %v1627 = vpop.xlane.xlu0 %1626
      %v1628 = vsel %vm603, %v1612, 0.0
      %1629 = vadd.xlane.f32.xlu0 %v1628
      %v1630 = vpop.xlane.xlu0 %1629
      %v1631 = vsel %vm603, %v1613, 0.0
      %1632 = vadd.xlane.f32.xlu0 %v1631
      %v1633 = vpop.xlane.xlu0 %1632
      %v1634 = vsel %vm603, %v1614, 0.0
      %1635 = vadd.xlane.f32.xlu0 %v1634
      %v1636 = vpop.xlane.xlu0 %1635
      %v1637 = vsel %vm603, %v1615, 0.0
      %1638 = vadd.xlane.f32.xlu0 %v1637
      %v1639 = vpop.xlane.xlu0 %1638
      %s1640 = sld [smem:[#allocation18 + $0x2]]
      %v1641 = vstv %s1640
      %v1642 = vadd.f32 %v1618, %v1641
      %v1643 = vadd.f32 %v1621, %v1641
      %v1644 = vadd.f32 %v1624, %v1641
      %v1645 = vadd.f32 %v1627, %v1641
      %v1646 = vadd.f32 %v1630, %v1641
      %v1647 = vadd.f32 %v1633, %v1641
      %v1648 = vadd.f32 %v1636, %v1641
      %v1649 = vadd.f32 %v1639, %v1641
      %v1658 = vlaneseq
      %v1659 = vshrl.u32 %v1658, 7
      %v1660 = vsub.s32 %v1116, %v1659
      %v1661 = vrot.slane %v1642, %v1660
      %v1662 = vlaneseq
      %v1663 = vshrl.u32 %v1662, 7
      %v1664 = vsub.s32 %v1116, %v1663
      %v1665 = vrot.slane %v1643, %v1664
      %v1666 = vlaneseq
      %v1667 = vshrl.u32 %v1666, 7
      %v1668 = vsub.s32 %v1116, %v1667
      %v1669 = vrot.slane %v1644, %v1668
      %v1670 = vlaneseq
      %v1671 = vshrl.u32 %v1670, 7
      %v1672 = vsub.s32 %v1116, %v1671
      %v1673 = vrot.slane %v1645, %v1672
      %v1674 = vlaneseq
      %v1675 = vshrl.u32 %v1674, 7
      %v1676 = vsub.s32 %v1116, %v1675
      %v1677 = vrot.slane %v1646, %v1676
      %v1678 = vlaneseq
      %v1679 = vshrl.u32 %v1678, 7
      %v1680 = vsub.s32 %v1116, %v1679
      %v1681 = vrot.slane %v1647, %v1680
      %v1682 = vlaneseq
      %v1683 = vshrl.u32 %v1682, 7
      %v1684 = vsub.s32 %v1116, %v1683
      %v1685 = vrot.slane %v1648, %v1684
      %v1686 = vlaneseq
      %v1687 = vshrl.u32 %v1686, 7
      %v1688 = vsub.s32 %v1116, %v1687
      %v1689 = vrot.slane %v1649, %v1688
      %v1690 = vsel %vm596, %v1665, %v1661
      %v1691 = vsel %vm598, %v1669, %v1690
      %v1692 = vsel %vm600, %v1673, %v1691
      %vm1693 = vcmask 1044484
      %v1694 = vsel %vm1693, %v1677, %v1692
      %vm1695 = vcmask 1045509
      %v1696 = vsel %vm1695, %v1681, %v1694
      %vm1697 = vcmask 1046534
      %v1698 = vsel %vm1697, %v1685, %v1696
      %vm1699 = vcmask 1047559
      %v1700 = vsel %vm1699, %v1689, %v1698
      %1702 = vst.msk [vmem:[#allocation4] sm:$0xff] %vm1169, %v1700
    $region81: #{tpu_custom_call.1} parent=1 // pred_fallthru
      _
    %v1703 = vld [vmem:[#allocation5] sm:$0x3]
    %v1704 = vld [vmem:[#allocation2] sm:$0x3]
    %1705 = vmatprep.subr.bf16.mxu0 0
    %1706 = vmatpush1.bf16.xpose.msra.mxu0 %v1704
    %1707 = vmatprep.subr.bf16.mxu0 0
    %1708 = vmatpush1.bf16.xpose.msra.mxu0 0
    %1709 = vmatprep.subr.bf16.mxu0 0
    %1710 = vmatpush1.bf16.xpose.msra.mxu0 0
    %1711 = vmatprep.subr.bf16.mxu0 0
    %1712 = vmatpush1.bf16.xpose.msra.mxu0 0
    %1713 = vmatprep.subr.bf16.mxu0 0
    %1714 = vmatpush1.bf16.xpose.msra.mxu0 0
    %1715 = vmatprep.subr.bf16.mxu0 0
    %1716 = vmatpush1.bf16.xpose.msra.mxu0 0
    %1717 = vmatprep.subr.bf16.mxu0 0
    %1718 = vmatpush1.bf16.xpose.msra.mxu0 0
    %1719 = vmatprep.subr.bf16.mxu0 0
    %1720 = vmatpush1.bf16.xpose.msra.mxu0 0
    %1721 = vmatprep.subr.bf16.mxu0 0
    %1722 = vmatpush1.bf16.xpose.msra.mxu0 0
    %1723 = vmatprep.subr.bf16.mxu0 0
    %1724 = vmatpush1.bf16.xpose.msra.mxu0 0
    %1725 = vmatprep.subr.bf16.mxu0 0
    %1726 = vmatpush1.bf16.xpose.msra.mxu0 0
    %1727 = vmatprep.subr.bf16.mxu0 0
    %1728 = vmatpush1.bf16.xpose.msra.mxu0 0
    %1729 = vmatprep.subr.bf16.mxu0 0
    %1730 = vmatpush1.bf16.xpose.msra.mxu0 0
    %1731 = vmatprep.subr.bf16.mxu0 0
    %1732 = vmatpush1.bf16.xpose.msra.mxu0 0
    %1733 = vmatprep.subr.bf16.mxu0 0
    %1734 = vmatpush1.bf16.xpose.msra.mxu0 0
    %1735 = vmatprep.subr.bf16.mxu0 0
    %1736 = vmatpush1.bf16.xpose.msra.mxu0 0
    %1737 = vmatprep.mubr.bf16.mxu0 0
    %1738 = vmatmul.mubr.bf16.gmra.mrb[0].mxu0 %v1703
    %v1739 = vpop.f32.mrb[0].mxu0
    %v1740 = vadd.f32 0.0, %v1739
    %v1741 = vpop.f32.mrb[0].mxu0
    %v1742 = vpop.f32.mrb[0].mxu0
    %v1743 = vpop.f32.mrb[0].mxu0
    %1744 = vdwg.mxu0
    %vm1745 = vcmask 27648
    %1746 = vst.msk [vmem:[#allocation19] sm:$0xf] %vm1745, %v1740
    %v1747 = vld [vmem:[#allocation11] sm:$0xf]
    %v1748 = vld [vmem:[#allocation11 + $0x4] sm:$0xf]
    %v1749 = vld [vmem:[#allocation11 + $0x8] sm:$0xf]
    %v1750 = vld [vmem:[#allocation11 + $0xc] sm:$0xf]
    %v1751 = vld [vmem:[#allocation4] sm:$0xff]
    %v1752 = vld [vmem:[#allocation14] sm:$0x3]
    %v1753 = vld [vmem:[#allocation14 + $0x2] sm:$0x3]
    %v1758 = vunpack.c.l.b16 %v1747
    %v1759 = vunpack.c.l.b16 %v1748
    %v1760 = vunpack.c.l.b16 %v1749
    %v1761 = vunpack.c.l.b16 %v1750
    %v1762 = vpack.c.b16 %v1759, %v1758
    %v1763 = vpack.c.b16 %v1761, %v1760
    %v1768 = vcombine.low %v1752, %v1753
    %v1770 = vunpack.c.l.s4 1983009808
    %v1771 = vunpack.c.0.s8 %v1770
    %v1772 = vlaneseq
    %v1773 = vshrl.u32 %v1772, 7
    %v1774 = vsub.s32 %v1771, %v1773
    %v1775 = vrot.slane %v1768, %v1774
    %1777 = vmatprep.subr.bf16.mxu0 0
    %1778 = vmatpush1.bf16.xpose.msra.mxu0 %v1775
    %1779 = vmatprep.subr.bf16.mxu0 0
    %1780 = vmatpush1.bf16.xpose.msra.mxu0 0
    %1781 = vmatprep.subr.bf16.mxu0 0
    %1782 = vmatpush1.bf16.xpose.msra.mxu0 0
    %1783 = vmatprep.subr.bf16.mxu0 0
    %1784 = vmatpush1.bf16.xpose.msra.mxu0 0
    %1785 = vmatprep.subr.bf16.mxu0 0
    %1786 = vmatpush1.bf16.xpose.msra.mxu0 0
    %1787 = vmatprep.subr.bf16.mxu0 0
    %1788 = vmatpush1.bf16.xpose.msra.mxu0 0
    %1789 = vmatprep.subr.bf16.mxu0 0
    %1790 = vmatpush1.bf16.xpose.msra.mxu0 0
    %1791 = vmatprep.subr.bf16.mxu0 0
    %1792 = vmatpush1.bf16.xpose.msra.mxu0 0
    %1793 = vmatprep.subr.bf16.mxu0 0
    %1794 = vmatpush1.bf16.xpose.msra.mxu0 0
    %1795 = vmatprep.subr.bf16.mxu0 0
    %1796 = vmatpush1.bf16.xpose.msra.mxu0 0
    %1797 = vmatprep.subr.bf16.mxu0 0
    %1798 = vmatpush1.bf16.xpose.msra.mxu0 0
    %1799 = vmatprep.subr.bf16.mxu0 0
    %1800 = vmatpush1.bf16.xpose.msra.mxu0 0
    %1801 = vmatprep.subr.bf16.mxu0 0
    %1802 = vmatpush1.bf16.xpose.msra.mxu0 0
    %1803 = vmatprep.subr.bf16.mxu0 0
    %1804 = vmatpush1.bf16.xpose.msra.mxu0 0
    %1805 = vmatprep.subr.bf16.mxu0 0
    %1806 = vmatpush1.bf16.xpose.msra.mxu0 0
    %1807 = vmatprep.subr.bf16.mxu0 0
    %1808 = vmatpush1.bf16.xpose.msra.mxu0 0
    %1809 = vmatprep.mubr.bf16.mxu0 0
    %1810 = vmatmul.mubr.bf16.gmra.mrb[0].mxu0 %v1762
    %v1811 = vpop.f32.mrb[0].mxu0
    %v1812 = vadd.f32 0.0, %v1811
    %v1813 = vpop.f32.mrb[0].mxu0
    %v1814 = vpop.f32.mrb[0].mxu0
    %v1815 = vadd.f32 0.0, %v1814
    %v1816 = vpop.f32.mrb[0].mxu0
    %1817 = vmatprep.mubr.bf16.mxu0 0
    %1818 = vmatmul.mubr.bf16.gmra.mrb[0].mxu0 %v1763
    %v1819 = vpop.f32.mrb[0].mxu0
    %v1820 = vadd.f32 0.0, %v1819
    %v1821 = vpop.f32.mrb[0].mxu0
    %v1822 = vpop.f32.mrb[0].mxu0
    %v1823 = vadd.f32 0.0, %v1822
    %v1824 = vpop.f32.mrb[0].mxu0
    %1825 = vdwg.mxu0
    %vm1826 = vcmask 64512
    %v1827 = vsel %vm1826, %v1812, -inf
    %v1828 = vrot.slane %v1827, 4
    %v1829 = vmax.f32 %v1827, %v1828
    %v1830 = vrot.slane %v1829, 2
    %v1831 = vmax.f32 %v1829, %v1830
    %v1832 = vrot.slane %v1831, 1
    %v1833 = vmax.f32 %v1831, %v1832
    %v1834 = vsel %vm1826, %v1815, -inf
    %v1835 = vrot.slane %v1834, 4
    %v1836 = vmax.f32 %v1834, %v1835
    %v1837 = vrot.slane %v1836, 2
    %v1838 = vmax.f32 %v1836, %v1837
    %v1839 = vrot.slane %v1838, 1
    %v1840 = vmax.f32 %v1838, %v1839
    %v1841 = vsel %vm1826, %v1820, -inf
    %v1842 = vrot.slane %v1841, 4
    %v1843 = vmax.f32 %v1841, %v1842
    %v1844 = vrot.slane %v1843, 2
    %v1845 = vmax.f32 %v1843, %v1844
    %v1846 = vrot.slane %v1845, 1
    %v1847 = vmax.f32 %v1845, %v1846
    %v1848 = vsel %vm1826, %v1823, -inf
    %v1849 = vrot.slane %v1848, 4
    %v1850 = vmax.f32 %v1848, %v1849
    %v1851 = vrot.slane %v1850, 2
    %v1852 = vmax.f32 %v1850, %v1851
    %v1853 = vrot.slane %v1852, 1
    %v1854 = vmax.f32 %v1852, %v1853
    %v1855 = vlaneseq
    %v1856 = vshrl.u32 %v1855, 7
    %v1857 = vsub.s32 0, %v1856
    %v1858 = vrot.slane %v1751, %v1857
    %v1859 = vmul.f32 %v1833, %v1858
    %v1860 = vmul.f32 %v1840, %v1858
    %v1861 = vmul.f32 %v1847, %v1858
    %v1862 = vmul.f32 %v1854, %v1858
    %v1863 = vadd.f32 %v1859, 0.0
    %v1864 = vadd.f32 %v1860, 0.0
    %v1865 = vadd.f32 %v1861, 0.0
    %v1866 = vadd.f32 %v1862, 0.0
    %1871 = vrot.lane.b32.xlu0 %v1812, 124
    %v1872 = vpop.permute.xlu0 %1871
    %1873 = vrot.lane.b32.xlu0 %v1815, 124
    %v1874 = vpop.permute.xlu0 %1873
    %1875 = vrot.lane.b32.xlu0 %v1820, 124
    %v1876 = vpop.permute.xlu0 %1875
    %1877 = vrot.lane.b32.xlu0 %v1823, 124
    %v1878 = vpop.permute.xlu0 %1877
    %v1883 = vmax.f32 %v1812, %v1872
    %v1884 = vmax.f32 %v1815, %v1874
    %v1885 = vmax.f32 %v1820, %v1876
    %v1886 = vmax.f32 %v1823, %v1878
    %v1887 = vlaneseq
    %v1888 = vshrl.u32 %v1887, 7
    %v1889 = vsub.s32 1, %v1888
    %v1890 = vrot.slane %v1751, %v1889
    %1892 = vrot.lane.b32.xlu0 %v1890, 4
    %v1893 = vpop.permute.xlu0 %1892
    %v1895 = vmul.f32 %v1833, %v1893
    %v1896 = vmul.f32 %v1840, %v1893
    %v1897 = vmul.f32 %v1847, %v1893
    %v1898 = vmul.f32 %v1854, %v1893
    %1903 = vrot.lane.b32.xlu0 %v1895, 124
    %v1904 = vpop.permute.xlu0 %1903
    %1905 = vrot.lane.b32.xlu0 %v1896, 124
    %v1906 = vpop.permute.xlu0 %1905
    %1907 = vrot.lane.b32.xlu0 %v1897, 124
    %v1908 = vpop.permute.xlu0 %1907
    %1909 = vrot.lane.b32.xlu0 %v1898, 124
    %v1910 = vpop.permute.xlu0 %1909
    %v1915 = vadd.f32 %v1863, %v1904
    %v1916 = vadd.f32 %v1864, %v1906
    %v1917 = vadd.f32 %v1865, %v1908
    %v1918 = vadd.f32 %v1866, %v1910
    %s1919 = scalar_lea.vmem [#allocation14], 4
    %v1920 = vld [vmem:[%s1919] sm:$0x3]
    %v1921 = vld [vmem:[%s1919 + $0x2] sm:$0x3]
    %v1924 = vcombine.low %v1920, %v1921
    %v1926 = vunpack.c.l.s4 1983009808
    %v1927 = vunpack.c.0.s8 %v1926
    %v1928 = vlaneseq
    %v1929 = vshrl.u32 %v1928, 7
    %v1930 = vsub.s32 %v1927, %v1929
    %v1931 = vrot.slane %v1924, %v1930
    %1933 = vmatprep.subr.bf16.mxu0 0
    %1934 = vmatpush1.bf16.xpose.msra.mxu0 %v1931
    %1935 = vmatprep.subr.bf16.mxu0 0
    %1936 = vmatpush1.bf16.xpose.msra.mxu0 0
    %1937 = vmatprep.subr.bf16.mxu0 0
    %1938 = vmatpush1.bf16.xpose.msra.mxu0 0
    %1939 = vmatprep.subr.bf16.mxu0 0
    %1940 = vmatpush1.bf16.xpose.msra.mxu0 0
    %1941 = vmatprep.subr.bf16.mxu0 0
    %1942 = vmatpush1.bf16.xpose.msra.mxu0 0
    %1943 = vmatprep.subr.bf16.mxu0 0
    %1944 = vmatpush1.bf16.xpose.msra.mxu0 0
    %1945 = vmatprep.subr.bf16.mxu0 0
    %1946 = vmatpush1.bf16.xpose.msra.mxu0 0
    %1947 = vmatprep.subr.bf16.mxu0 0
    %1948 = vmatpush1.bf16.xpose.msra.mxu0 0
    %1949 = vmatprep.subr.bf16.mxu0 0
    %1950 = vmatpush1.bf16.xpose.msra.mxu0 0
    %1951 = vmatprep.subr.bf16.mxu0 0
    %1952 = vmatpush1.bf16.xpose.msra.mxu0 0
    %1953 = vmatprep.subr.bf16.mxu0 0
    %1954 = vmatpush1.bf16.xpose.msra.mxu0 0
    %1955 = vmatprep.subr.bf16.mxu0 0
    %1956 = vmatpush1.bf16.xpose.msra.mxu0 0
    %1957 = vmatprep.subr.bf16.mxu0 0
    %1958 = vmatpush1.bf16.xpose.msra.mxu0 0
    %1959 = vmatprep.subr.bf16.mxu0 0
    %1960 = vmatpush1.bf16.xpose.msra.mxu0 0
    %1961 = vmatprep.subr.bf16.mxu0 0
    %1962 = vmatpush1.bf16.xpose.msra.mxu0 0
    %1963 = vmatprep.subr.bf16.mxu0 0
    %1964 = vmatpush1.bf16.xpose.msra.mxu0 0
    %1965 = vmatprep.mubr.bf16.mxu0 0
    %1966 = vmatmul.mubr.bf16.gmra.mrb[0].mxu0 %v1762
    %v1967 = vpop.f32.mrb[0].mxu0
    %v1968 = vadd.f32 0.0, %v1967
    %v1969 = vpop.f32.mrb[0].mxu0
    %v1970 = vpop.f32.mrb[0].mxu0
    %v1971 = vadd.f32 0.0, %v1970
    %v1972 = vpop.f32.mrb[0].mxu0
    %1973 = vmatprep.mubr.bf16.mxu0 0
    %1974 = vmatmul.mubr.bf16.gmra.mrb[0].mxu0 %v1763
    %v1975 = vpop.f32.mrb[0].mxu0
    %v1976 = vadd.f32 0.0, %v1975
    %v1977 = vpop.f32.mrb[0].mxu0
    %v1978 = vpop.f32.mrb[0].mxu0
    %v1979 = vadd.f32 0.0, %v1978
    %v1980 = vpop.f32.mrb[0].mxu0
    %1981 = vdwg.mxu0
    %v1982 = vsel %vm1826, %v1968, -inf
    %v1983 = vrot.slane %v1982, 4
    %v1984 = vmax.f32 %v1982, %v1983
    %v1985 = vrot.slane %v1984, 2
    %v1986 = vmax.f32 %v1984, %v1985
    %v1987 = vrot.slane %v1986, 1
    %v1988 = vmax.f32 %v1986, %v1987
    %v1989 = vsel %vm1826, %v1971, -inf
    %v1990 = vrot.slane %v1989, 4
    %v1991 = vmax.f32 %v1989, %v1990
    %v1992 = vrot.slane %v1991, 2
    %v1993 = vmax.f32 %v1991, %v1992
    %v1994 = vrot.slane %v1993, 1
    %v1995 = vmax.f32 %v1993, %v1994
    %v1996 = vsel %vm1826, %v1976, -inf
    %v1997 = vrot.slane %v1996, 4
    %v1998 = vmax.f32 %v1996, %v1997
    %v1999 = vrot.slane %v1998, 2
    %v2000 = vmax.f32 %v1998, %v1999
    %v2001 = vrot.slane %v2000, 1
    %v2002 = vmax.f32 %v2000, %v2001
    %v2003 = vsel %vm1826, %v1979, -inf
    %v2004 = vrot.slane %v2003, 4
    %v2005 = vmax.f32 %v2003, %v2004
    %v2006 = vrot.slane %v2005, 2
    %v2007 = vmax.f32 %v2005, %v2006
    %v2008 = vrot.slane %v2007, 1
    %v2009 = vmax.f32 %v2007, %v2008
    %v2010 = vmax.f32 %v1883, %v1968
    %v2011 = vmax.f32 %v1884, %v1971
    %v2012 = vmax.f32 %v1885, %v1976
    %v2013 = vmax.f32 %v1886, %v1979
    %v2014 = vlaneseq
    %v2015 = vshrl.u32 %v2014, 7
    %v2016 = vsub.s32 2, %v2015
    %v2017 = vrot.slane %v1751, %v2016
    %v2018 = vmul.f32 %v1988, %v2017
    %v2019 = vmul.f32 %v1995, %v2017
    %v2020 = vmul.f32 %v2002, %v2017
    %v2021 = vmul.f32 %v2009, %v2017
    %v2022 = vadd.f32 %v1915, %v2018
    %v2023 = vadd.f32 %v1916, %v2019
    %v2024 = vadd.f32 %v1917, %v2020
    %v2025 = vadd.f32 %v1918, %v2021
    %2030 = vrot.lane.b32.xlu0 %v1968, 124
    %v2031 = vpop.permute.xlu0 %2030
    %2032 = vrot.lane.b32.xlu0 %v1971, 124
    %v2033 = vpop.permute.xlu0 %2032
    %2034 = vrot.lane.b32.xlu0 %v1976, 124
    %v2035 = vpop.permute.xlu0 %2034
    %2036 = vrot.lane.b32.xlu0 %v1979, 124
    %v2037 = vpop.permute.xlu0 %2036
    %v2042 = vmax.f32 %v2010, %v2031
    %v2043 = vmax.f32 %v2011, %v2033
    %v2044 = vmax.f32 %v2012, %v2035
    %v2045 = vmax.f32 %v2013, %v2037
    %v2046 = vlaneseq
    %v2047 = vshrl.u32 %v2046, 7
    %v2048 = vsub.s32 3, %v2047
    %v2049 = vrot.slane %v1751, %v2048
    %2051 = vrot.lane.b32.xlu0 %v2049, 4
    %v2052 = vpop.permute.xlu0 %2051
    %v2054 = vmul.f32 %v1988, %v2052
    %v2055 = vmul.f32 %v1995, %v2052
    %v2056 = vmul.f32 %v2002, %v2052
    %v2057 = vmul.f32 %v2009, %v2052
    %2062 = vrot.lane.b32.xlu0 %v2054, 124
    %v2063 = vpop.permute.xlu0 %2062
    %2064 = vrot.lane.b32.xlu0 %v2055, 124
    %v2065 = vpop.permute.xlu0 %2064
    %2066 = vrot.lane.b32.xlu0 %v2056, 124
    %v2067 = vpop.permute.xlu0 %2066
    %2068 = vrot.lane.b32.xlu0 %v2057, 124
    %v2069 = vpop.permute.xlu0 %2068
    %v2074 = vadd.f32 %v2022, %v2063
    %v2075 = vadd.f32 %v2023, %v2065
    %v2076 = vadd.f32 %v2024, %v2067
    %v2077 = vadd.f32 %v2025, %v2069
    %s2078 = scalar_lea.vmem [#allocation14], 8
    %v2079 = vld [vmem:[%s2078] sm:$0x3]
    %v2080 = vld [vmem:[%s2078 + $0x2] sm:$0x3]
    %v2083 = vcombine.low %v2079, %v2080
    %v2085 = vunpack.c.l.s4 1983009808
    %v2086 = vunpack.c.0.s8 %v2085
    %v2087 = vlaneseq
    %v2088 = vshrl.u32 %v2087, 7
    %v2089 = vsub.s32 %v2086, %v2088
    %v2090 = vrot.slane %v2083, %v2089
    %2092 = vmatprep.subr.bf16.mxu0 0
    %2093 = vmatpush1.bf16.xpose.msra.mxu0 %v2090
    %2094 = vmatprep.subr.bf16.mxu0 0
    %2095 = vmatpush1.bf16.xpose.msra.mxu0 0
    %2096 = vmatprep.subr.bf16.mxu0 0
    %2097 = vmatpush1.bf16.xpose.msra.mxu0 0
    %2098 = vmatprep.subr.bf16.mxu0 0
    %2099 = vmatpush1.bf16.xpose.msra.mxu0 0
    %2100 = vmatprep.subr.bf16.mxu0 0
    %2101 = vmatpush1.bf16.xpose.msra.mxu0 0
    %2102 = vmatprep.subr.bf16.mxu0 0
    %2103 = vmatpush1.bf16.xpose.msra.mxu0 0
    %2104 = vmatprep.subr.bf16.mxu0 0
    %2105 = vmatpush1.bf16.xpose.msra.mxu0 0
    %2106 = vmatprep.subr.bf16.mxu0 0
    %2107 = vmatpush1.bf16.xpose.msra.mxu0 0
    %2108 = vmatprep.subr.bf16.mxu0 0
    %2109 = vmatpush1.bf16.xpose.msra.mxu0 0
    %2110 = vmatprep.subr.bf16.mxu0 0
    %2111 = vmatpush1.bf16.xpose.msra.mxu0 0
    %2112 = vmatprep.subr.bf16.mxu0 0
    %2113 = vmatpush1.bf16.xpose.msra.mxu0 0
    %2114 = vmatprep.subr.bf16.mxu0 0
    %2115 = vmatpush1.bf16.xpose.msra.mxu0 0
    %2116 = vmatprep.subr.bf16.mxu0 0
    %2117 = vmatpush1.bf16.xpose.msra.mxu0 0
    %2118 = vmatprep.subr.bf16.mxu0 0
    %2119 = vmatpush1.bf16.xpose.msra.mxu0 0
    %2120 = vmatprep.subr.bf16.mxu0 0
    %2121 = vmatpush1.bf16.xpose.msra.mxu0 0
    %2122 = vmatprep.subr.bf16.mxu0 0
    %2123 = vmatpush1.bf16.xpose.msra.mxu0 0
    %2124 = vmatprep.mubr.bf16.mxu0 0
    %2125 = vmatmul.mubr.bf16.gmra.mrb[0].mxu0 %v1762
    %v2126 = vpop.f32.mrb[0].mxu0
    %v2127 = vadd.f32 0.0, %v2126
    %v2128 = vpop.f32.mrb[0].mxu0
    %v2129 = vpop.f32.mrb[0].mxu0
    %v2130 = vadd.f32 0.0, %v2129
    %v2131 = vpop.f32.mrb[0].mxu0
    %2132 = vmatprep.mubr.bf16.mxu0 0
    %2133 = vmatmul.mubr.bf16.gmra.mrb[0].mxu0 %v1763
    %v2134 = vpop.f32.mrb[0].mxu0
    %v2135 = vadd.f32 0.0, %v2134
    %v2136 = vpop.f32.mrb[0].mxu0
    %v2137 = vpop.f32.mrb[0].mxu0
    %v2138 = vadd.f32 0.0, %v2137
    %v2139 = vpop.f32.mrb[0].mxu0
    %2140 = vdwg.mxu0
    %v2141 = vsel %vm1826, %v2127, -inf
    %v2142 = vrot.slane %v2141, 4
    %v2143 = vmax.f32 %v2141, %v2142
    %v2144 = vrot.slane %v2143, 2
    %v2145 = vmax.f32 %v2143, %v2144
    %v2146 = vrot.slane %v2145, 1
    %v2147 = vmax.f32 %v2145, %v2146
    %v2148 = vsel %vm1826, %v2130, -inf
    %v2149 = vrot.slane %v2148, 4
    %v2150 = vmax.f32 %v2148, %v2149
    %v2151 = vrot.slane %v2150, 2
    %v2152 = vmax.f32 %v2150, %v2151
    %v2153 = vrot.slane %v2152, 1
    %v2154 = vmax.f32 %v2152, %v2153
    %v2155 = vsel %vm1826, %v2135, -inf
    %v2156 = vrot.slane %v2155, 4
    %v2157 = vmax.f32 %v2155, %v2156
    %v2158 = vrot.slane %v2157, 2
    %v2159 = vmax.f32 %v2157, %v2158
    %v2160 = vrot.slane %v2159, 1
    %v2161 = vmax.f32 %v2159, %v2160
    %v2162 = vsel %vm1826, %v2138, -inf
    %v2163 = vrot.slane %v2162, 4
    %v2164 = vmax.f32 %v2162, %v2163
    %v2165 = vrot.slane %v2164, 2
    %v2166 = vmax.f32 %v2164, %v2165
    %v2167 = vrot.slane %v2166, 1
    %v2168 = vmax.f32 %v2166, %v2167
    %v2169 = vmax.f32 %v2042, %v2127
    %v2170 = vmax.f32 %v2043, %v2130
    %v2171 = vmax.f32 %v2044, %v2135
    %v2172 = vmax.f32 %v2045, %v2138
    %v2173 = vlaneseq
    %v2174 = vshrl.u32 %v2173, 7
    %v2175 = vsub.s32 4, %v2174
    %v2176 = vrot.slane %v1751, %v2175
    %v2177 = vmul.f32 %v2147, %v2176
    %v2178 = vmul.f32 %v2154, %v2176
    %v2179 = vmul.f32 %v2161, %v2176
    %v2180 = vmul.f32 %v2168, %v2176
    %v2181 = vadd.f32 %v2074, %v2177
    %v2182 = vadd.f32 %v2075, %v2178
    %v2183 = vadd.f32 %v2076, %v2179
    %v2184 = vadd.f32 %v2077, %v2180
    %2189 = vrot.lane.b32.xlu0 %v2127, 124
    %v2190 = vpop.permute.xlu0 %2189
    %2191 = vrot.lane.b32.xlu0 %v2130, 124
    %v2192 = vpop.permute.xlu0 %2191
    %2193 = vrot.lane.b32.xlu0 %v2135, 124
    %v2194 = vpop.permute.xlu0 %2193
    %2195 = vrot.lane.b32.xlu0 %v2138, 124
    %v2196 = vpop.permute.xlu0 %2195
    %v2201 = vmax.f32 %v2169, %v2190
    %v2202 = vmax.f32 %v2170, %v2192
    %v2203 = vmax.f32 %v2171, %v2194
    %v2204 = vmax.f32 %v2172, %v2196
    %v2205 = vlaneseq
    %v2206 = vshrl.u32 %v2205, 7
    %v2207 = vsub.s32 5, %v2206
    %v2208 = vrot.slane %v1751, %v2207
    %2210 = vrot.lane.b32.xlu0 %v2208, 4
    %v2211 = vpop.permute.xlu0 %2210
    %v2213 = vmul.f32 %v2147, %v2211
    %v2214 = vmul.f32 %v2154, %v2211
    %v2215 = vmul.f32 %v2161, %v2211
    %v2216 = vmul.f32 %v2168, %v2211
    %2221 = vrot.lane.b32.xlu0 %v2213, 124
    %v2222 = vpop.permute.xlu0 %2221
    %2223 = vrot.lane.b32.xlu0 %v2214, 124
    %v2224 = vpop.permute.xlu0 %2223
    %2225 = vrot.lane.b32.xlu0 %v2215, 124
    %v2226 = vpop.permute.xlu0 %2225
    %2227 = vrot.lane.b32.xlu0 %v2216, 124
    %v2228 = vpop.permute.xlu0 %2227
    %v2233 = vadd.f32 %v2181, %v2222
    %v2234 = vadd.f32 %v2182, %v2224
    %v2235 = vadd.f32 %v2183, %v2226
    %v2236 = vadd.f32 %v2184, %v2228
    %s2237 = scalar_lea.vmem [#allocation14], 12
    %v2238 = vld [vmem:[%s2237] sm:$0x3]
    %v2239 = vld [vmem:[%s2237 + $0x2] sm:$0x3]
    %v2242 = vcombine.low %v2238, %v2239
    %v2244 = vunpack.c.l.s4 1983009808
    %v2245 = vunpack.c.0.s8 %v2244
    %v2246 = vlaneseq
    %v2247 = vshrl.u32 %v2246, 7
    %v2248 = vsub.s32 %v2245, %v2247
    %v2249 = vrot.slane %v2242, %v2248
    %2251 = vmatprep.subr.bf16.mxu0 0
    %2252 = vmatpush1.bf16.xpose.msra.mxu0 %v2249
    %2253 = vmatprep.subr.bf16.mxu0 0
    %2254 = vmatpush1.bf16.xpose.msra.mxu0 0
    %2255 = vmatprep.subr.bf16.mxu0 0
    %2256 = vmatpush1.bf16.xpose.msra.mxu0 0
    %2257 = vmatprep.subr.bf16.mxu0 0
    %2258 = vmatpush1.bf16.xpose.msra.mxu0 0
    %2259 = vmatprep.subr.bf16.mxu0 0
    %2260 = vmatpush1.bf16.xpose.msra.mxu0 0
    %2261 = vmatprep.subr.bf16.mxu0 0
    %2262 = vmatpush1.bf16.xpose.msra.mxu0 0
    %2263 = vmatprep.subr.bf16.mxu0 0
    %2264 = vmatpush1.bf16.xpose.msra.mxu0 0
    %2265 = vmatprep.subr.bf16.mxu0 0
    %2266 = vmatpush1.bf16.xpose.msra.mxu0 0
    %2267 = vmatprep.subr.bf16.mxu0 0
    %2268 = vmatpush1.bf16.xpose.msra.mxu0 0
    %2269 = vmatprep.subr.bf16.mxu0 0
    %2270 = vmatpush1.bf16.xpose.msra.mxu0 0
    %2271 = vmatprep.subr.bf16.mxu0 0
    %2272 = vmatpush1.bf16.xpose.msra.mxu0 0
    %2273 = vmatprep.subr.bf16.mxu0 0
    %2274 = vmatpush1.bf16.xpose.msra.mxu0 0
    %2275 = vmatprep.subr.bf16.mxu0 0
    %2276 = vmatpush1.bf16.xpose.msra.mxu0 0
    %2277 = vmatprep.subr.bf16.mxu0 0
    %2278 = vmatpush1.bf16.xpose.msra.mxu0 0
    %2279 = vmatprep.subr.bf16.mxu0 0
    %2280 = vmatpush1.bf16.xpose.msra.mxu0 0
    %2281 = vmatprep.subr.bf16.mxu0 0
    %2282 = vmatpush1.bf16.xpose.msra.mxu0 0
    %2283 = vmatprep.mubr.bf16.mxu0 0
    %2284 = vmatmul.mubr.bf16.gmra.mrb[0].mxu0 %v1762
    %v2285 = vpop.f32.mrb[0].mxu0
    %v2286 = vadd.f32 0.0, %v2285
    %v2287 = vpop.f32.mrb[0].mxu0
    %v2288 = vpop.f32.mrb[0].mxu0
    %v2289 = vadd.f32 0.0, %v2288
    %v2290 = vpop.f32.mrb[0].mxu0
    %2291 = vmatprep.mubr.bf16.mxu0 0
    %2292 = vmatmul.mubr.bf16.gmra.mrb[0].mxu0 %v1763
    %v2293 = vpop.f32.mrb[0].mxu0
    %v2294 = vadd.f32 0.0, %v2293
    %v2295 = vpop.f32.mrb[0].mxu0
    %v2296 = vpop.f32.mrb[0].mxu0
    %v2297 = vadd.f32 0.0, %v2296
    %v2298 = vpop.f32.mrb[0].mxu0
    %2299 = vdwg.mxu0
    %v2300 = vsel %vm1826, %v2286, -inf
    %v2301 = vrot.slane %v2300, 4
    %v2302 = vmax.f32 %v2300, %v2301
    %v2303 = vrot.slane %v2302, 2
    %v2304 = vmax.f32 %v2302, %v2303
    %v2305 = vrot.slane %v2304, 1
    %v2306 = vmax.f32 %v2304, %v2305
    %v2307 = vsel %vm1826, %v2289, -inf
    %v2308 = vrot.slane %v2307, 4
    %v2309 = vmax.f32 %v2307, %v2308
    %v2310 = vrot.slane %v2309, 2
    %v2311 = vmax.f32 %v2309, %v2310
    %v2312 = vrot.slane %v2311, 1
    %v2313 = vmax.f32 %v2311, %v2312
    %v2314 = vsel %vm1826, %v2294, -inf
    %v2315 = vrot.slane %v2314, 4
    %v2316 = vmax.f32 %v2314, %v2315
    %v2317 = vrot.slane %v2316, 2
    %v2318 = vmax.f32 %v2316, %v2317
    %v2319 = vrot.slane %v2318, 1
    %v2320 = vmax.f32 %v2318, %v2319
    %v2321 = vsel %vm1826, %v2297, -inf
    %v2322 = vrot.slane %v2321, 4
    %v2323 = vmax.f32 %v2321, %v2322
    %v2324 = vrot.slane %v2323, 2
    %v2325 = vmax.f32 %v2323, %v2324
    %v2326 = vrot.slane %v2325, 1
    %v2327 = vmax.f32 %v2325, %v2326
    %v2328 = vmax.f32 %v2201, %v2286
    %v2329 = vmax.f32 %v2202, %v2289
    %v2330 = vmax.f32 %v2203, %v2294
    %v2331 = vmax.f32 %v2204, %v2297
    %v2332 = vlaneseq
    %v2333 = vshrl.u32 %v2332, 7
    %v2334 = vsub.s32 6, %v2333
    %v2335 = vrot.slane %v1751, %v2334
    %v2336 = vmul.f32 %v2306, %v2335
    %v2337 = vmul.f32 %v2313, %v2335
    %v2338 = vmul.f32 %v2320, %v2335
    %v2339 = vmul.f32 %v2327, %v2335
    %v2340 = vadd.f32 %v2233, %v2336
    %v2341 = vadd.f32 %v2234, %v2337
    %v2342 = vadd.f32 %v2235, %v2338
    %v2343 = vadd.f32 %v2236, %v2339
    %2348 = vrot.lane.b32.xlu0 %v2286, 124
    %v2349 = vpop.permute.xlu0 %2348
    %2350 = vrot.lane.b32.xlu0 %v2289, 124
    %v2351 = vpop.permute.xlu0 %2350
    %2352 = vrot.lane.b32.xlu0 %v2294, 124
    %v2353 = vpop.permute.xlu0 %2352
    %2354 = vrot.lane.b32.xlu0 %v2297, 124
    %v2355 = vpop.permute.xlu0 %2354
    %v2360 = vmax.f32 %v2328, %v2349
    %v2361 = vmax.f32 %v2329, %v2351
    %v2362 = vmax.f32 %v2330, %v2353
    %v2363 = vmax.f32 %v2331, %v2355
    %v2364 = vlaneseq
    %v2365 = vshrl.u32 %v2364, 7
    %v2366 = vsub.s32 7, %v2365
    %v2367 = vrot.slane %v1751, %v2366
    %2369 = vrot.lane.b32.xlu0 %v2367, 4
    %v2370 = vpop.permute.xlu0 %2369
    %v2372 = vmul.f32 %v2306, %v2370
    %v2373 = vmul.f32 %v2313, %v2370
    %v2374 = vmul.f32 %v2320, %v2370
    %v2375 = vmul.f32 %v2327, %v2370
    %2380 = vrot.lane.b32.xlu0 %v2372, 124
    %v2381 = vpop.permute.xlu0 %2380
    %2382 = vrot.lane.b32.xlu0 %v2373, 124
    %v2383 = vpop.permute.xlu0 %2382
    %2384 = vrot.lane.b32.xlu0 %v2374, 124
    %v2385 = vpop.permute.xlu0 %2384
    %2386 = vrot.lane.b32.xlu0 %v2375, 124
    %v2387 = vpop.permute.xlu0 %2386
    %v2392 = vadd.f32 %v2340, %v2381
    %v2393 = vadd.f32 %v2341, %v2383
    %v2394 = vadd.f32 %v2342, %v2385
    %v2395 = vadd.f32 %v2343, %v2387
    %v2396 = vld [vmem:[#allocation3] sm:$0xff]
    %v2397 = vmul.f32 %v2360, %v2396
    %v2398 = vmul.f32 %v2361, %v2396
    %v2399 = vmul.f32 %v2362, %v2396
    %v2400 = vmul.f32 %v2363, %v2396
    %vm2401 = vcmask 31744
    %v2402 = vsel %vm2401, %v2397, 0.0
    %v2403 = vrot.slane %v2402, 4
    %v2404 = vadd.f32 %v2402, %v2403
    %v2405 = vrot.slane %v2404, 2
    %v2406 = vadd.f32 %v2404, %v2405
    %v2407 = vrot.slane %v2406, 1
    %v2408 = vadd.f32 %v2406, %v2407
    %v2409 = vsel %vm2401, %v2398, 0.0
    %v2410 = vrot.slane %v2409, 4
    %v2411 = vadd.f32 %v2409, %v2410
    %v2412 = vrot.slane %v2411, 2
    %v2413 = vadd.f32 %v2411, %v2412
    %v2414 = vrot.slane %v2413, 1
    %v2415 = vadd.f32 %v2413, %v2414
    %v2416 = vsel %vm2401, %v2399, 0.0
    %v2417 = vrot.slane %v2416, 4
    %v2418 = vadd.f32 %v2416, %v2417
    %v2419 = vrot.slane %v2418, 2
    %v2420 = vadd.f32 %v2418, %v2419
    %v2421 = vrot.slane %v2420, 1
    %v2422 = vadd.f32 %v2420, %v2421
    %v2423 = vsel %vm2401, %v2400, 0.0
    %v2424 = vrot.slane %v2423, 4
    %v2425 = vadd.f32 %v2423, %v2424
    %v2426 = vrot.slane %v2425, 2
    %v2427 = vadd.f32 %v2425, %v2426
    %v2428 = vrot.slane %v2427, 1
    %v2429 = vadd.f32 %v2427, %v2428
    %v2430 = vadd.f32 %v2408, %v2392
    %v2431 = vadd.f32 %v2415, %v2393
    %v2432 = vadd.f32 %v2422, %v2394
    %v2433 = vadd.f32 %v2429, %v2395
    %v2434 = vmul.f32 %v2430, 0.5
    %v2435 = vmul.f32 %v2431, 0.5
    %v2436 = vmul.f32 %v2432, 0.5
    %v2437 = vmul.f32 %v2433, 0.5
    %v2442 = vrot.slane %v2435, 7
    %vm2443 = vcmask 1041409
    %v2444 = vsel %vm2443, %v2442, %v2434
    %v2445 = vrot.slane %v2436, 6
    %vm2446 = vcmask 1042434
    %v2447 = vsel %vm2446, %v2445, %v2444
    %v2448 = vrot.slane %v2437, 5
    %vm2449 = vcmask 1043459
    %v2450 = vsel %vm2449, %v2448, %v2447
    %2452 = vst.msk [vmem:[#allocation20] sm:$0xf] %vm1745, %v2450
    %v2453 = vadd.f32 %v1740, %v2450
    %2454 = vst.msk [vmem:[#allocation22] sm:$0xf] %vm1745, %v2453
    // Predicated region
    $region82: #{tpu_custom_call.1} parent=1 // pred_check
      _
    $region83: #{tpu_custom_call.1} parent=1 // pred_check_branch
      %2456 = sbr.rel (0) target = $region85
    $region84: #{tpu_custom_call.1} parent=1 // pred_region
      %s2458 = ssub.s32 64, 64
      %2459 = vsyncadd [#allocation7], %s2458
      %s2461 = sshll.u32 [#allocation19], 4
      %s2462 = int_to_ptr.vmem [resolvable:$true] %s2461
      %2464 = dma.vmem_to_hbm [thread:$0]  %s2462, 64, %s11, [#allocation7]
    $region85: #{tpu_custom_call.1} parent=1 // pred_fallthru
      _
    // Predicated region
    $region86: #{tpu_custom_call.1} parent=1 // pred_check
      _
    $region87: #{tpu_custom_call.1} parent=1 // pred_check_branch
      %2466 = sbr.rel (0) target = $region89
    $region88: #{tpu_custom_call.1} parent=1 // pred_region
      %s2468 = ssub.s32 64, 64
      %2469 = vsyncadd [#allocation21], %s2468
      %s2471 = sshll.u32 [#allocation20], 4
      %s2472 = int_to_ptr.vmem [resolvable:$true] %s2471
      %2474 = dma.vmem_to_hbm [thread:$0]  %s2472, 64, %s12, [#allocation21]
    $region89: #{tpu_custom_call.1} parent=1 // pred_fallthru
      _
    // Predicated region
    $region90: #{tpu_custom_call.1} parent=1 // pred_check
      _
    $region91: #{tpu_custom_call.1} parent=1 // pred_check_branch
      %2476 = sbr.rel (0) target = $region93
    $region92: #{tpu_custom_call.1} parent=1 // pred_region
      %s2478 = ssub.s32 64, 64
      %2479 = vsyncadd [#allocation21], %s2478
      %s2481 = sshll.u32 [#allocation22], 4
      %s2482 = int_to_ptr.vmem [resolvable:$true] %s2481
      %2484 = dma.vmem_to_hbm [thread:$0]  %s2482, 64, %s13, [#allocation21]
    $region93: #{tpu_custom_call.1} parent=1 // pred_fallthru
      _
    // Predicated region
    $region94: #{tpu_custom_call.1} parent=1 // pred_check
      _
    $region95: #{tpu_custom_call.1} parent=1 // pred_check_branch
      %2486 = sbr.rel (0) target = $region97
    $region96: #{tpu_custom_call.1} parent=1 // pred_region
      %2487 = dma.done [#allocation7], 64
    $region97: #{tpu_custom_call.1} parent=1 // pred_fallthru
      _
    // Predicated region
    $region98: #{tpu_custom_call.1} parent=1 // pred_check
      _
    $region99: #{tpu_custom_call.1} parent=1 // pred_check_branch
      %2489 = sbr.rel (0) target = $region101
    $region100: #{tpu_custom_call.1} parent=1 // pred_region
      %2490 = dma.done [#allocation21], 64
    $region101: #{tpu_custom_call.1} parent=1 // pred_fallthru
      _
    // Predicated region
    $region102: #{tpu_custom_call.1} parent=1 // pred_check
      _
    $region103: #{tpu_custom_call.1} parent=1 // pred_check_branch
      %2492 = sbr.rel (0) target = $region105
    $region104: #{tpu_custom_call.1} parent=1 // pred_region
      %2493 = dma.done [#allocation21], 64
    $region105: #{tpu_custom_call.1} parent=1 // pred_fallthru
      _
    %2494 = vsyncpa [#allocation6], 1
    %2495 = vsyncpa [#allocation10], 1
    %2496 = vsyncpa [#allocation13], 1
    %2497 = vsyncpa [#allocation16], 1
    %2498 = vsyncpa [#allocation7], 1
    %2499 = vsyncpa [#allocation21], 1
    %2500 = vsyncpa [#allocation8], 1

// kernel: tpu_custom_call.1
$region0: #{tpu_custom_call.1}
  #allocation0 [shape = 'u32[]', space=smem, size = 0x4, offset = 0x4, fixed_abs, tag = 'smem constant byte address 0x4 - core index']
  #allocation1 [shape = 'u32[144,128]{1,0:T(1,128)}', space=vmem, size = 0x12000, scoped, tag = 'internal scratch']
  #allocation2 [shape = 'bf16[4,128]{1,0:T(4,128)(2,1)}', space=vmem, size = 0x400, scoped, tag = 'scratch operand']
  #allocation3 [shape = 'f32[8,4]{1,0:T(8,128)}', space=vmem, size = 0x1000, scoped, tag = 'scratch operand']
  #allocation4 [shape = 'f32[8,4]{1,0:T(8,128)}', space=vmem, size = 0x1000, scoped, tag = 'scratch operand']
  %s0 = inlined_call_operand.hbm [shape: bf16[4,128], index: 0, kind: input, shape index: {}]
  %s1 = inlined_call_operand.hbm [shape: bf16[4,8,128], index: 1, kind: input, shape index: {}]
  %s2 = inlined_call_operand.hbm [shape: bf16[4,8,128], index: 2, kind: input, shape index: {}]
  %s3 = inlined_call_operand.hbm [shape: bf16[4,8,128], index: 3, kind: input, shape index: {}]
  %s4 = inlined_call_operand.hbm [shape: bf16[8,4,128], index: 4, kind: input, shape index: {}]
  %s5 = inlined_call_operand.hbm [shape: bf16[3,128,256], index: 5, kind: input, shape index: {}]
  %s6 = inlined_call_operand.vmem [shape: f32[3,1,256], index: 6, kind: input, shape index: {}]
  %s7 = inlined_call_operand.hbm [shape: bf16[3,256,128], index: 7, kind: input, shape index: {}]
  %s8 = inlined_call_operand.vmem [shape: f32[3,1,128], index: 8, kind: input, shape index: {}]
  %s9 = inlined_call_operand.vmem [shape: f32[3,1,128], index: 9, kind: input, shape index: {}]
  %s10 = inlined_call_operand.vmem [shape: f32[3], index: 10, kind: input, shape index: {}]
  %s11 = inlined_call_operand.hbm [shape: f32[4,4], index: 11, kind: output, shape index: {0}]
  %s12 = inlined_call_operand.hbm [shape: f32[4,4], index: 12, kind: output, shape index: {1}]
  %s13 = inlined_call_operand.hbm [shape: f32[4,4], index: 13, kind: output, shape index: {2}]
  %14 = xla_tuple %s11, %s12, %s13
  %s15 = sld [smem:[#allocation0]]
  $region106: #{tpu_custom_call.1} parent=0
    _
  %s17 = ssub.s32 1, %s15
  %s18 = scalar_select 0, %s17, %s15
  $region1: #{tpu_custom_call.1} parent=0
    #allocation5 [shape = 'u8[1024]{0}', space=vmem, size = 0x400, scoped, tag = 'input window, operand 0, single buffered']
    #allocation6 [shape = 's32[1]{0}', space=sflag, size = 0x4, scoped, tag = 'scoped memory for tpu_custom_call.1']
    #allocation7 [shape = 's32[1]{0}', space=sflag, size = 0x4, scoped, tag = 'scoped memory for tpu_custom_call.1']
    #allocation8 [shape = 's32[1]{0}', space=sflag, size = 0x4, scoped, tag = 'scoped memory for tpu_custom_call.1']
    #allocation9 [shape = 'u8[8192]{0}', space=vmem, size = 0x2000, scoped, tag = 'input window, operand 1, single buffered']
    #allocation10 [shape = 's32[1]{0}', space=sflag, size = 0x4, scoped, tag = 'scoped memory for tpu_custom_call.1']
    #allocation11 [shape = 'u8[8192]{0}', space=vmem, size = 0x2000, scoped, tag = 'input window, operand 2, single buffered']
    #allocation12 [shape = 'u8[8192]{0}', space=vmem, size = 0x2000, scoped, tag = 'input window, operand 3, single buffered']
    #allocation13 [shape = 's32[1]{0}', space=sflag, size = 0x4, scoped, tag = 'scoped memory for tpu_custom_call.1']
    #allocation14 [shape = 'u8[8192]{0}', space=vmem, size = 0x2000, scoped, tag = 'input window, operand 4, single buffered']
    #allocation15 [shape = 'u8[196608]{0}', space=vmem, size = 0x30000, scoped, tag = 'input window, operand 5, single buffered']
    #allocation16 [shape = 's32[1]{0}', space=sflag, size = 0x4, scoped, tag = 'scoped memory for tpu_custom_call.1']
    #allocation17 [shape = 'u8[196608]{0}', space=vmem, size = 0x30000, scoped, tag = 'input window, operand 7, single buffered']
    #allocation18 [shape = 'u8[512]{0}', space=smem, size = 0x200, scoped, tag = 'input window, operand 10, single buffered']
    #allocation19 [shape = 'u8[2048]{0}', space=vmem, size = 0x800, scoped, tag = 'output window, operand 0, single buffered']
    #allocation20 [shape = 'u8[2048]{0}', space=vmem, size = 0x800, scoped, tag = 'output window, operand 1, single buffered']
    #allocation21 [shape = 's32[1]{0}', space=sflag, size = 0x4, scoped, tag = 'scoped memory for tpu_custom_call.1']
    #allocation22 [shape = 'u8[2048]{0}', space=vmem, size = 0x800, scoped, tag = 'output window, operand 2, single buffered']
    %19 = vsyncpa [#allocation6], 0
    %20 = vsyncpa [#allocation10], 0
    %21 = vsyncpa [#allocation13], 0
    %22 = vsyncpa [#allocation16], 0
    %23 = vsyncpa [#allocation8], 0
    %24 = vsyncpa [#allocation7], 0
    %25 = vsyncpa [#allocation21], 0
    // Predicated region
    $region2: #{tpu_custom_call.1} parent=1 // pred_check
      _
    $region3: #{tpu_custom_call.1} parent=1 // pred_check_branch
      %27 = sbr.rel (0) target = $region5
    $region4: #{tpu_custom_call.1} parent=1 // pred_region
      %s29 = ssub.s32 32, 32
      %30 = vsyncadd [#allocation6], %s29
      %s32 = sshll.u32 [#allocation5], 4
      %s33 = int_to_ptr.vmem [resolvable:$true] %s32
      %35 = dma.hbm_to_vmem [thread:$0]  %s0, 32, %s33, [#allocation6]
    $region5: #{tpu_custom_call.1} parent=1 // pred_fallthru
      _
    // Predicated region
    $region6: #{tpu_custom_call.1} parent=1 // pred_check
      _
    $region7: #{tpu_custom_call.1} parent=1 // pred_check_branch
      %37 = sbr.rel (0) target = $region9
    $region8: #{tpu_custom_call.1} parent=1 // pred_region
      %s39 = ssub.s32 256, 256
      %40 = vsyncadd [#allocation10], %s39
      %s41 = sshll.u32 [#allocation9], 4
      %s42 = int_to_ptr.vmem [resolvable:$true] %s41
      %47 = dma.hbm_to_vmem [thread:$0]  %s1, 256, %s42, [#allocation10], 64, 64, 4
    $region9: #{tpu_custom_call.1} parent=1 // pred_fallthru
      _
    // Predicated region
    $region10: #{tpu_custom_call.1} parent=1 // pred_check
      _
    $region11: #{tpu_custom_call.1} parent=1 // pred_check_branch
      %49 = sbr.rel (0) target = $region13
    $region12: #{tpu_custom_call.1} parent=1 // pred_region
      %s51 = ssub.s32 256, 256
      %52 = vsyncadd [#allocation10], %s51
      %s53 = sshll.u32 [#allocation11], 4
      %s54 = int_to_ptr.vmem [resolvable:$true] %s53
      %59 = dma.hbm_to_vmem [thread:$0]  %s2, 256, %s54, [#allocation10], 64, 64, 4
    $region13: #{tpu_custom_call.1} parent=1 // pred_fallthru
      _
    // Predicated region
    $region14: #{tpu_custom_call.1} parent=1 // pred_check
      _
    $region15: #{tpu_custom_call.1} parent=1 // pred_check_branch
      %61 = sbr.rel (0) target = $region17
    $region16: #{tpu_custom_call.1} parent=1 // pred_region
      %s63 = ssub.s32 256, 256
      %64 = vsyncadd [#allocation13], %s63
      %s65 = sshll.u32 [#allocation12], 4
      %s66 = int_to_ptr.vmem [resolvable:$true] %s65
      %71 = dma.hbm_to_vmem [thread:$0]  %s3, 256, %s66, [#allocation13], 64, 64, 4
    $region17: #{tpu_custom_call.1} parent=1 // pred_fallthru
      _
    // Predicated region
    $region18: #{tpu_custom_call.1} parent=1 // pred_check
      _
    $region19: #{tpu_custom_call.1} parent=1 // pred_check_branch
      %73 = sbr.rel (0) target = $region21
    $region20: #{tpu_custom_call.1} parent=1 // pred_region
      %s75 = ssub.s32 256, 256
      %76 = vsyncadd [#allocation13], %s75
      %s77 = sshll.u32 [#allocation14], 4
      %s78 = int_to_ptr.vmem [resolvable:$true] %s77
      %83 = dma.hbm_to_vmem [thread:$0]  %s4, 256, %s78, [#allocation13], 32, 32, 2
    $region21: #{tpu_custom_call.1} parent=1 // pred_fallthru
      _
    // Predicated region
    $region22: #{tpu_custom_call.1} parent=1 // pred_check
      _
    $region23: #{tpu_custom_call.1} parent=1 // pred_check_branch
      %85 = sbr.rel (0) target = $region25
    $region24: #{tpu_custom_call.1} parent=1 // pred_region
      %s87 = ssub.s32 6144, 6144
      %88 = vsyncadd [#allocation16], %s87
      %s89 = sshll.u32 [#allocation15], 4
      %s90 = int_to_ptr.vmem [resolvable:$true] %s89
      %95 = dma.hbm_to_vmem [thread:$0]  %s5, 6144, %s90, [#allocation16], 128, 128, 8
    $region25: #{tpu_custom_call.1} parent=1 // pred_fallthru
      _
    // Predicated region
    $region26: #{tpu_custom_call.1} parent=1 // pred_check
      _
    $region27: #{tpu_custom_call.1} parent=1 // pred_check_branch
      %97 = sbr.rel (0) target = $region29
    $region28: #{tpu_custom_call.1} parent=1 // pred_region
      _
    $region29: #{tpu_custom_call.1} parent=1 // pred_fallthru
      _
    // Predicated region
    $region30: #{tpu_custom_call.1} parent=1 // pred_check
      _
    $region31: #{tpu_custom_call.1} parent=1 // pred_check_branch
      %99 = sbr.rel (0) target = $region33
    $region32: #{tpu_custom_call.1} parent=1 // pred_region
      %s101 = ssub.s32 6144, 6144
      %102 = vsyncadd [#allocation16], %s101
      %s103 = sshll.u32 [#allocation17], 4
      %s104 = int_to_ptr.vmem [resolvable:$true] %s103
      %109 = dma.hbm_to_vmem [thread:$0]  %s7, 6144, %s104, [#allocation16], 64, 64, 4
    $region33: #{tpu_custom_call.1} parent=1 // pred_fallthru
      _
    // Predicated region
    $region34: #{tpu_custom_call.1} parent=1 // pred_check
      _
    $region35: #{tpu_custom_call.1} parent=1 // pred_check_branch
      %111 = sbr.rel (0) target = $region37
    $region36: #{tpu_custom_call.1} parent=1 // pred_region
      _
    $region37: #{tpu_custom_call.1} parent=1 // pred_fallthru
      _
    // Predicated region
    $region38: #{tpu_custom_call.1} parent=1 // pred_check
      _
    $region39: #{tpu_custom_call.1} parent=1 // pred_check_branch
      %113 = sbr.rel (0) target = $region41
    $region40: #{tpu_custom_call.1} parent=1 // pred_region
      _
    $region41: #{tpu_custom_call.1} parent=1 // pred_fallthru
      _
    // Predicated region
    $region42: #{tpu_custom_call.1} parent=1 // pred_check
      _
    $region43: #{tpu_custom_call.1} parent=1 // pred_check_branch
      %115 = sbr.rel (0) target = $region45
    $region44: #{tpu_custom_call.1} parent=1 // pred_region
      %s117 = ssub.s32 16, 16
      %118 = vsyncadd [#allocation8], %s117
      %s120 = sshll.u32 %s10, 4
      %s121 = int_to_ptr.vmem [resolvable:$true] %s120
      %123 = dma.vmem_to_smem %s121, 16, [#allocation18], [#allocation8]
    $region45: #{tpu_custom_call.1} parent=1 // pred_fallthru
      _
    // Predicated region
    $region46: #{tpu_custom_call.1} parent=1 // pred_check
      _
    $region47: #{tpu_custom_call.1} parent=1 // pred_check_branch
      %125 = sbr.rel (0) target = $region49
    $region48: #{tpu_custom_call.1} parent=1 // pred_region
      %126 = dma.done [#allocation6], 32
    $region49: #{tpu_custom_call.1} parent=1 // pred_fallthru
      _
    // Predicated region
    $region50: #{tpu_custom_call.1} parent=1 // pred_check
      _
    $region51: #{tpu_custom_call.1} parent=1 // pred_check_branch
      %128 = sbr.rel (0) target = $region53
    $region52: #{tpu_custom_call.1} parent=1 // pred_region
      %129 = dma.done [#allocation10], 256
    $region53: #{tpu_custom_call.1} parent=1 // pred_fallthru
      _
    // Predicated region
    $region54: #{tpu_custom_call.1} parent=1 // pred_check
      _
    $region55: #{tpu_custom_call.1} parent=1 // pred_check_branch
      %131 = sbr.rel (0) target = $region57
    $region56: #{tpu_custom_call.1} parent=1 // pred_region
      %132 = dma.done [#allocation10], 256
    $region57: #{tpu_custom_call.1} parent=1 // pred_fallthru
      _
    // Predicated region
    $region58: #{tpu_custom_call.1} parent=1 // pred_check
      _
    $region59: #{tpu_custom_call.1} parent=1 // pred_check_branch
      %134 = sbr.rel (0) target = $region61
    $region60: #{tpu_custom_call.1} parent=1 // pred_region
      %135 = dma.done [#allocation13], 256
    $region61: #{tpu_custom_call.1} parent=1 // pred_fallthru
      _
    // Predicated region
    $region62: #{tpu_custom_call.1} parent=1 // pred_check
      _
    $region63: #{tpu_custom_call.1} parent=1 // pred_check_branch
      %137 = sbr.rel (0) target = $region65
    $region64: #{tpu_custom_call.1} parent=1 // pred_region
      %138 = dma.done [#allocation13], 256
    $region65: #{tpu_custom_call.1} parent=1 // pred_fallthru
      _
    // Predicated region
    $region66: #{tpu_custom_call.1} parent=1 // pred_check
      _
    $region67: #{tpu_custom_call.1} parent=1 // pred_check_branch
      %140 = sbr.rel (0) target = $region69
    $region68: #{tpu_custom_call.1} parent=1 // pred_region
      %141 = dma.done [#allocation16], 6144
    $region69: #{tpu_custom_call.1} parent=1 // pred_fallthru
      _
    // Predicated region
    $region70: #{tpu_custom_call.1} parent=1 // pred_check
      _
    $region71: #{tpu_custom_call.1} parent=1 // pred_check_branch
      %143 = sbr.rel (0) target = $region73
    $region72: #{tpu_custom_call.1} parent=1 // pred_region
      %144 = dma.done [#allocation16], 6144
    $region73: #{tpu_custom_call.1} parent=1 // pred_fallthru
      _
    // Predicated region
    $region74: #{tpu_custom_call.1} parent=1 // pred_check
      _
    $region75: #{tpu_custom_call.1} parent=1 // pred_check_branch
      %146 = sbr.rel (0) target = $region77
    $region76: #{tpu_custom_call.1} parent=1 // pred_region
      %147 = dma.done [#allocation8], 16
    $region77: #{tpu_custom_call.1} parent=1 // pred_fallthru
      _
    %148 = sfence
    %p150 = scmp.eq.s32.totalorder 0, 0
    // Predicated region
    $region78: #{tpu_custom_call.1} parent=1 // pred_check
      %p151 = pneg %p150
    $region79: #{tpu_custom_call.1} parent=1 // pred_check_branch
      %153 = sbr.rel (%p151) target = $region81
    $region80: #{tpu_custom_call.1} parent=1 // pred_region
      %v154 = vld [vmem:[#allocation9] sm:$0xf]
      %v155 = vld [vmem:[#allocation9 + $0x4] sm:$0xf]
      %v156 = vld [vmem:[#allocation9 + $0x8] sm:$0xf]
      %v157 = vld [vmem:[#allocation9 + $0xc] sm:$0xf]
      %v158 = vld [vmem:[#allocation15] sm:$0xff]
      %v159 = vld [vmem:[#allocation15 + $0x8] sm:$0xff]
      %v160 = vld [vmem:[#allocation15 + $0x10] sm:$0xff]
      %v161 = vld [vmem:[#allocation15 + $0x18] sm:$0xff]
      %v162 = vld [vmem:[#allocation15 + $0x20] sm:$0xff]
      %v163 = vld [vmem:[#allocation15 + $0x28] sm:$0xff]
      %v164 = vld [vmem:[#allocation15 + $0x30] sm:$0xff]
      %v165 = vld [vmem:[#allocation15 + $0x38] sm:$0xff]
      %v166 = vld [vmem:[#allocation15 + $0x40] sm:$0xff]
      %v167 = vld [vmem:[#allocation15 + $0x48] sm:$0xff]
      %v168 = vld [vmem:[#allocation15 + $0x50] sm:$0xff]
      %v169 = vld [vmem:[#allocation15 + $0x58] sm:$0xff]
      %v170 = vld [vmem:[#allocation15 + $0x60] sm:$0xff]
      %v171 = vld [vmem:[#allocation15 + $0x68] sm:$0xff]
      %v172 = vld [vmem:[#allocation15 + $0x70] sm:$0xff]
      %v173 = vld [vmem:[#allocation15 + $0x78] sm:$0xff]
      %v174 = vld [vmem:[%s6] sm:$0x3]
      %v176 = vlaneseq
      %v177 = vshrl.u32 %v176, 7
      %v178 = vsub.s32 0, %v177
      %v179 = vrot.slane %v174, %v178
      %v180 = vlaneseq
      %v181 = vshrl.u32 %v180, 7
      %v182 = vsub.s32 1, %v181
      %v183 = vrot.slane %v174, %v182
      %v190 = vunpack.c.l.b16 %v154
      %v191 = vunpack.c.l.b16 %v155
      %v192 = vunpack.c.l.b16 %v156
      %v193 = vunpack.c.l.b16 %v157
      %v194 = vpack.c.b16 %v191, %v190
      %v195 = vpack.c.b16 %v193, %v192
      %v214 = vunpack.c.l.b16 %v158
      %v215 = vunpack.c.h.b16 %v158
      %v216 = vunpack.c.l.b16 %v159
      %v217 = vunpack.c.h.b16 %v159
      %v218 = vunpack.c.l.b16 %v160
      %v219 = vunpack.c.h.b16 %v160
      %v220 = vunpack.c.l.b16 %v161
      %v221 = vunpack.c.h.b16 %v161
      %v222 = vunpack.c.l.b16 %v162
      %v223 = vunpack.c.h.b16 %v162
      %v224 = vunpack.c.l.b16 %v163
      %v225 = vunpack.c.h.b16 %v163
      %v226 = vunpack.c.l.b16 %v164
      %v227 = vunpack.c.h.b16 %v164
      %v228 = vunpack.c.l.b16 %v165
      %v229 = vunpack.c.h.b16 %v165
      %v230 = vunpack.c.l.b16 %v166
      %v231 = vunpack.c.h.b16 %v166
      %v232 = vunpack.c.l.b16 %v167
      %v233 = vunpack.c.h.b16 %v167
      %v234 = vunpack.c.l.b16 %v168
      %v235 = vunpack.c.h.b16 %v168
      %v236 = vunpack.c.l.b16 %v169
      %v237 = vunpack.c.h.b16 %v169
      %v238 = vunpack.c.l.b16 %v170
      %v239 = vunpack.c.h.b16 %v170
      %v240 = vunpack.c.l.b16 %v171
      %v241 = vunpack.c.h.b16 %v171
      %v242 = vunpack.c.l.b16 %v172
      %v243 = vunpack.c.h.b16 %v172
      %v244 = vunpack.c.l.b16 %v173
      %v245 = vunpack.c.h.b16 %v173
      %v246 = vpack.c.b16 %v216, %v214
      %v247 = vpack.c.b16 %v217, %v215
      %v248 = vpack.c.b16 %v220, %v218
      %v249 = vpack.c.b16 %v221, %v219
      %v250 = vpack.c.b16 %v224, %v222
      %v251 = vpack.c.b16 %v225, %v223
      %v252 = vpack.c.b16 %v228, %v226
      %v253 = vpack.c.b16 %v229, %v227
      %v254 = vpack.c.b16 %v232, %v230
      %v255 = vpack.c.b16 %v233, %v231
      %v256 = vpack.c.b16 %v236, %v234
      %v257 = vpack.c.b16 %v237, %v235
      %v258 = vpack.c.b16 %v240, %v238
      %v259 = vpack.c.b16 %v241, %v239
      %v260 = vpack.c.b16 %v244, %v242
      %v261 = vpack.c.b16 %v245, %v243
      %278 = vmatprep.subr.bf16.mxu0 %v247
      %279 = vmatpush1.bf16.msra.mxu0 %v246
      %280 = vmatprep.subr.bf16.mxu0 %v249
      %281 = vmatpush1.bf16.msra.mxu0 %v248
      %282 = vmatprep.subr.bf16.mxu0 %v251
      %283 = vmatpush1.bf16.msra.mxu0 %v250
      %284 = vmatprep.subr.bf16.mxu0 %v253
      %285 = vmatpush1.bf16.msra.mxu0 %v252
      %286 = vmatprep.subr.bf16.mxu0 %v255
      %287 = vmatpush1.bf16.msra.mxu0 %v254
      %288 = vmatprep.subr.bf16.mxu0 %v257
      %289 = vmatpush1.bf16.msra.mxu0 %v256
      %290 = vmatprep.subr.bf16.mxu0 %v259
      %291 = vmatpush1.bf16.msra.mxu0 %v258
      %292 = vmatprep.subr.bf16.mxu0 %v261
      %293 = vmatpush1.bf16.msra.mxu0 %v260
      %294 = vmatprep.subr.bf16.mxu0 0
      %295 = vmatpush1.bf16.msra.mxu0 0
      %296 = vmatprep.subr.bf16.mxu0 0
      %297 = vmatpush1.bf16.msra.mxu0 0
      %298 = vmatprep.subr.bf16.mxu0 0
      %299 = vmatpush1.bf16.msra.mxu0 0
      %300 = vmatprep.subr.bf16.mxu0 0
      %301 = vmatpush1.bf16.msra.mxu0 0
      %302 = vmatprep.subr.bf16.mxu0 0
      %303 = vmatpush1.bf16.msra.mxu0 0
      %304 = vmatprep.subr.bf16.mxu0 0
      %305 = vmatpush1.bf16.msra.mxu0 0
      %306 = vmatprep.subr.bf16.mxu0 0
      %307 = vmatpush1.bf16.msra.mxu0 0
      %308 = vmatprep.subr.bf16.mxu0 0
      %309 = vmatpush1.bf16.msra.mxu0 0
      %310 = vmatprep.mubr.bf16.mxu0 0
      %311 = vmatmul.mubr.bf16.gmra.mrb[0].mxu0 %v194
      %v312 = vpop.f32.mrb[0].mxu0
      %v313 = vadd.f32 %v179, %v312
      %v314 = vpop.f32.mrb[0].mxu0
      %v315 = vadd.f32 %v183, %v314
      %v316 = vpop.f32.mrb[0].mxu0
      %v317 = vadd.f32 %v179, %v316
      %v318 = vpop.f32.mrb[0].mxu0
      %v319 = vadd.f32 %v183, %v318
      %320 = vmatprep.mubr.bf16.mxu0 0
      %321 = vmatmul.mubr.bf16.gmra.mrb[0].mxu0 %v195
      %v322 = vpop.f32.mrb[0].mxu0
      %v323 = vadd.f32 %v179, %v322
      %v324 = vpop.f32.mrb[0].mxu0
      %v325 = vadd.f32 %v183, %v324
      %v326 = vpop.f32.mrb[0].mxu0
      %v327 = vadd.f32 %v179, %v326
      %v328 = vpop.f32.mrb[0].mxu0
      %v329 = vadd.f32 %v183, %v328
      %330 = vdwg.mxu0
      %v331 = vmax.f32 %v313, 0.0
      %v332 = vmax.f32 %v315, 0.0
      %v333 = vmax.f32 %v317, 0.0
      %v334 = vmax.f32 %v319, 0.0
      %v335 = vmax.f32 %v323, 0.0
      %v336 = vmax.f32 %v325, 0.0
      %v337 = vmax.f32 %v327, 0.0
      %v338 = vmax.f32 %v329, 0.0
      %v339 = vpack.c.bf16 %v333, %v331
      %v340 = vpack.c.bf16 %v334, %v332
      %v341 = vpack.c.bf16 %v337, %v335
      %v342 = vpack.c.bf16 %v338, %v336
      %v343 = vld [vmem:[#allocation17] sm:$0xf]
      %v344 = vld [vmem:[#allocation17 + $0x4] sm:$0xf]
      %v345 = vld [vmem:[#allocation17 + $0x8] sm:$0xf]
      %v346 = vld [vmem:[#allocation17 + $0xc] sm:$0xf]
      %v347 = vld [vmem:[#allocation17 + $0x10] sm:$0xf]
      %v348 = vld [vmem:[#allocation17 + $0x14] sm:$0xf]
      %v349 = vld [vmem:[#allocation17 + $0x18] sm:$0xf]
      %v350 = vld [vmem:[#allocation17 + $0x1c] sm:$0xf]
      %v351 = vld [vmem:[#allocation17 + $0x20] sm:$0xf]
      %v352 = vld [vmem:[#allocation17 + $0x24] sm:$0xf]
      %v353 = vld [vmem:[#allocation17 + $0x28] sm:$0xf]
      %v354 = vld [vmem:[#allocation17 + $0x2c] sm:$0xf]
      %v355 = vld [vmem:[#allocation17 + $0x30] sm:$0xf]
      %v356 = vld [vmem:[#allocation17 + $0x34] sm:$0xf]
      %v357 = vld [vmem:[#allocation17 + $0x38] sm:$0xf]
      %v358 = vld [vmem:[#allocation17 + $0x3c] sm:$0xf]
      %v359 = vld [vmem:[#allocation17 + $0x40] sm:$0xf]
      %v360 = vld [vmem:[#allocation17 + $0x44] sm:$0xf]
      %v361 = vld [vmem:[#allocation17 + $0x48] sm:$0xf]
      %v362 = vld [vmem:[#allocation17 + $0x4c] sm:$0xf]
      %v363 = vld [vmem:[#allocation17 + $0x50] sm:$0xf]
      %v364 = vld [vmem:[#allocation17 + $0x54] sm:$0xf]
      %v365 = vld [vmem:[#allocation17 + $0x58] sm:$0xf]
      %v366 = vld [vmem:[#allocation17 + $0x5c] sm:$0xf]
      %v367 = vld [vmem:[#allocation17 + $0x60] sm:$0xf]
      %v368 = vld [vmem:[#allocation17 + $0x64] sm:$0xf]
      %v369 = vld [vmem:[#allocation17 + $0x68] sm:$0xf]
      %v370 = vld [vmem:[#allocation17 + $0x6c] sm:$0xf]
      %v371 = vld [vmem:[#allocation17 + $0x70] sm:$0xf]
      %v372 = vld [vmem:[#allocation17 + $0x74] sm:$0xf]
      %v373 = vld [vmem:[#allocation17 + $0x78] sm:$0xf]
      %v374 = vld [vmem:[#allocation17 + $0x7c] sm:$0xf]
      %v375 = vld [vmem:[%s8] sm:$0x1]
      %v377 = vlaneseq
      %v378 = vshrl.u32 %v377, 7
      %v379 = vsub.s32 0, %v378
      %v380 = vrot.slane %v375, %v379
      %v414 = vunpack.c.l.b16 %v343
      %v415 = vunpack.c.l.b16 %v344
      %v416 = vunpack.c.l.b16 %v345
      %v417 = vunpack.c.l.b16 %v346
      %v418 = vunpack.c.l.b16 %v347
      %v419 = vunpack.c.l.b16 %v348
      %v420 = vunpack.c.l.b16 %v349
      %v421 = vunpack.c.l.b16 %v350
      %v422 = vunpack.c.l.b16 %v351
      %v423 = vunpack.c.l.b16 %v352
      %v424 = vunpack.c.l.b16 %v353
      %v425 = vunpack.c.l.b16 %v354
      %v426 = vunpack.c.l.b16 %v355
      %v427 = vunpack.c.l.b16 %v356
      %v428 = vunpack.c.l.b16 %v357
      %v429 = vunpack.c.l.b16 %v358
      %v430 = vunpack.c.l.b16 %v359
      %v431 = vunpack.c.l.b16 %v360
      %v432 = vunpack.c.l.b16 %v361
      %v433 = vunpack.c.l.b16 %v362
      %v434 = vunpack.c.l.b16 %v363
      %v435 = vunpack.c.l.b16 %v364
      %v436 = vunpack.c.l.b16 %v365
      %v437 = vunpack.c.l.b16 %v366
      %v438 = vunpack.c.l.b16 %v367
      %v439 = vunpack.c.l.b16 %v368
      %v440 = vunpack.c.l.b16 %v369
      %v441 = vunpack.c.l.b16 %v370
      %v442 = vunpack.c.l.b16 %v371
      %v443 = vunpack.c.l.b16 %v372
      %v444 = vunpack.c.l.b16 %v373
      %v445 = vunpack.c.l.b16 %v374
      %v446 = vpack.c.b16 %v415, %v414
      %v447 = vpack.c.b16 %v417, %v416
      %v448 = vpack.c.b16 %v419, %v418
      %v449 = vpack.c.b16 %v421, %v420
      %v450 = vpack.c.b16 %v423, %v422
      %v451 = vpack.c.b16 %v425, %v424
      %v452 = vpack.c.b16 %v427, %v426
      %v453 = vpack.c.b16 %v429, %v428
      %v454 = vpack.c.b16 %v431, %v430
      %v455 = vpack.c.b16 %v433, %v432
      %v456 = vpack.c.b16 %v435, %v434
      %v457 = vpack.c.b16 %v437, %v436
      %v458 = vpack.c.b16 %v439, %v438
      %v459 = vpack.c.b16 %v441, %v440
      %v460 = vpack.c.b16 %v443, %v442
      %v461 = vpack.c.b16 %v445, %v444
      %478 = vmatprep.subr.bf16.mxu0 0
      %479 = vmatpush1.bf16.msra.mxu0 %v446
      %480 = vmatprep.subr.bf16.mxu0 0
      %481 = vmatpush1.bf16.msra.mxu0 %v447
      %482 = vmatprep.subr.bf16.mxu0 0
      %483 = vmatpush1.bf16.msra.mxu0 %v448
      %484 = vmatprep.subr.bf16.mxu0 0
      %485 = vmatpush1.bf16.msra.mxu0 %v449
      %486 = vmatprep.subr.bf16.mxu0 0
      %487 = vmatpush1.bf16.msra.mxu0 %v450
      %488 = vmatprep.subr.bf16.mxu0 0
      %489 = vmatpush1.bf16.msra.mxu0 %v451
      %490 = vmatprep.subr.bf16.mxu0 0
      %491 = vmatpush1.bf16.msra.mxu0 %v452
      %492 = vmatprep.subr.bf16.mxu0 0
      %493 = vmatpush1.bf16.msra.mxu0 %v453
      %494 = vmatprep.subr.bf16.mxu0 0
      %495 = vmatpush1.bf16.msra.mxu0 %v454
      %496 = vmatprep.subr.bf16.mxu0 0
      %497 = vmatpush1.bf16.msra.mxu0 %v455
      %498 = vmatprep.subr.bf16.mxu0 0
      %499 = vmatpush1.bf16.msra.mxu0 %v456
      %500 = vmatprep.subr.bf16.mxu0 0
      %501 = vmatpush1.bf16.msra.mxu0 %v457
      %502 = vmatprep.subr.bf16.mxu0 0
      %503 = vmatpush1.bf16.msra.mxu0 %v458
      %504 = vmatprep.subr.bf16.mxu0 0
      %505 = vmatpush1.bf16.msra.mxu0 %v459
      %506 = vmatprep.subr.bf16.mxu0 0
      %507 = vmatpush1.bf16.msra.mxu0 %v460
      %508 = vmatprep.subr.bf16.mxu0 0
      %509 = vmatpush1.bf16.msra.mxu0 %v461
      %510 = vmatprep.mubr.bf16.mxu0 %v340
      %511 = vmatmul.mubr.bf16.gmra.mrb[0].mxu0 %v339
      %v512 = vpop.f32.mrb[0].mxu0
      %v513 = vadd.f32 %v380, %v512
      %v514 = vpop.f32.mrb[0].mxu0
      %v515 = vpop.f32.mrb[0].mxu0
      %v516 = vadd.f32 %v380, %v515
      %v517 = vpop.f32.mrb[0].mxu0
      %518 = vmatprep.mubr.bf16.mxu0 %v342
      %519 = vmatmul.mubr.bf16.gmra.mrb[0].mxu0 %v341
      %v520 = vpop.f32.mrb[0].mxu0
      %v521 = vadd.f32 %v380, %v520
      %v522 = vpop.f32.mrb[0].mxu0
      %v523 = vpop.f32.mrb[0].mxu0
      %v524 = vadd.f32 %v380, %v523
      %v525 = vpop.f32.mrb[0].mxu0
      %526 = vdwg.mxu0
      %v527 = vmax.f32 %v513, 0.0
      %v528 = vmax.f32 %v516, 0.0
      %v529 = vmax.f32 %v521, 0.0
      %v530 = vmax.f32 %v524, 0.0
      %v531 = vld [vmem:[%s9] sm:$0x1]
      %v533 = vlaneseq
      %v534 = vshrl.u32 %v533, 7
      %v535 = vsub.s32 0, %v534
      %v536 = vrot.slane %v531, %v535
      %v538 = vmul.f32 %v527, %v536
      %v539 = vmul.f32 %v528, %v536
      %v540 = vmul.f32 %v529, %v536
      %v541 = vmul.f32 %v530, %v536
      %542 = vadd.xlane.f32.xlu0 %v538
      %v543 = vpop.xlane.xlu0 %542
      %544 = vadd.xlane.f32.xlu0 %v539
      %v545 = vpop.xlane.xlu0 %544
      %546 = vadd.xlane.f32.xlu0 %v540
      %v547 = vpop.xlane.xlu0 %546
      %548 = vadd.xlane.f32.xlu0 %v541
      %v549 = vpop.xlane.xlu0 %548
      %s550 = sld [smem:[#allocation18]]
      %v551 = vstv %s550
      %v552 = vadd.f32 %v543, %v551
      %v553 = vadd.f32 %v545, %v551
      %v554 = vadd.f32 %v547, %v551
      %v555 = vadd.f32 %v549, %v551
      %v556 = vunpack.c.l.bf16 %v154
      %v557 = vunpack.c.l.bf16 %v155
      %v558 = vunpack.c.l.bf16 %v156
      %v559 = vunpack.c.l.bf16 %v157
      %v560 = vmul.f32 %v556, %v552
      %v561 = vmul.f32 %v557, %v553
      %v562 = vmul.f32 %v558, %v554
      %v563 = vmul.f32 %v559, %v555
      %v564 = vrot.slane %v560, 4
      %v565 = vadd.f32 %v560, %v564
      %v566 = vrot.slane %v565, 2
      %v567 = vadd.f32 %v565, %v566
      %v568 = vrot.slane %v567, 1
      %v569 = vadd.f32 %v567, %v568
      %v570 = vrot.slane %v561, 4
      %v571 = vadd.f32 %v561, %v570
      %v572 = vrot.slane %v571, 2
      %v573 = vadd.f32 %v571, %v572
      %v574 = vrot.slane %v573, 1
      %v575 = vadd.f32 %v573, %v574
      %v576 = vrot.slane %v562, 4
      %v577 = vadd.f32 %v562, %v576
      %v578 = vrot.slane %v577, 2
      %v579 = vadd.f32 %v577, %v578
      %v580 = vrot.slane %v579, 1
      %v581 = vadd.f32 %v579, %v580
      %v582 = vrot.slane %v563, 4
      %v583 = vadd.f32 %v563, %v582
      %v584 = vrot.slane %v583, 2
      %v585 = vadd.f32 %v583, %v584
      %v586 = vrot.slane %v585, 1
      %v587 = vadd.f32 %v585, %v586
      %v588 = vmul.f32 %v569, %v569
      %v589 = vmul.f32 %v575, %v575
      %v590 = vmul.f32 %v581, %v581
      %v591 = vmul.f32 %v587, %v587
      %vm596 = vcmask 1041409
      %v597 = vsel %vm596, %v589, %v588
      %vm598 = vcmask 1042434
      %v599 = vsel %vm598, %v590, %v597
      %vm600 = vcmask 1043459
      %v601 = vsel %vm600, %v591, %v599
      %vm603 = vcmask 1043456
      %v604 = vsel %vm603, %v601, 0.0
      %605 = vadd.xlane.f32.xlu0 %v604
      %v606 = vpop.xlane.xlu0 %605
      %v607 = vrsqrt.pop %v606
      %v609 = vrot.slane %v607, 1
      %v610 = vrot.slane %v607, 2
      %v611 = vrot.slane %v607, 3
      %v616 = vmul.f32 %v569, %v607
      %v617 = vmul.f32 %v575, %v609
      %v618 = vmul.f32 %v581, %v610
      %v619 = vmul.f32 %v587, %v611
      %v620 = vpack.c.bf16 %v616, %v616
      %v621 = vpack.c.bf16 %v617, %v617
      %v622 = vpack.c.bf16 %v618, %v618
      %v623 = vpack.c.bf16 %v619, %v619
      %v629 = vunpack.c.l.s4 1983009808
      %v630 = vunpack.c.0.s8 %v629
      %v631 = vlaneseq
      %v632 = vshrl.u32 %v631, 7
      %v633 = vsub.s32 %v630, %v632
      %v634 = vrot.slane %v620, %v633
      %v636 = vunpack.c.l.s4 1983009808
      %v637 = vunpack.c.0.s8 %v636
      %v638 = vlaneseq
      %v639 = vshrl.u32 %v638, 7
      %v640 = vsub.s32 %v637, %v639
      %v641 = vrot.slane %v621, %v640
      %v643 = vunpack.c.l.s4 1983009808
      %v644 = vunpack.c.0.s8 %v643
      %v645 = vlaneseq
      %v646 = vshrl.u32 %v645, 7
      %v647 = vsub.s32 %v644, %v646
      %v648 = vrot.slane %v622, %v647
      %v650 = vunpack.c.l.s4 1983009808
      %v651 = vunpack.c.0.s8 %v650
      %v652 = vlaneseq
      %v653 = vshrl.u32 %v652, 7
      %v654 = vsub.s32 %v651, %v653
      %v655 = vrot.slane %v623, %v654
      %v657 = vunpack.c.l.s4 1983009808
      %v658 = vunpack.c.0.s8 %v657
      %v659 = vlaneseq
      %v660 = vshrl.u32 %v659, 7
      %v661 = vsub.s32 %v658, %v660
      %v662 = vrot.slane %v634, %v661
      %v664 = vunpack.c.l.s4 1983009808
      %v665 = vunpack.c.0.s8 %v664
      %v666 = vlaneseq
      %v667 = vshrl.u32 %v666, 7
      %v668 = vsub.s32 %v665, %v667
      %v669 = vrot.slane %v641, %v668
      %v671 = vunpack.c.l.s4 1983009808
      %v672 = vunpack.c.0.s8 %v671
      %v673 = vlaneseq
      %v674 = vshrl.u32 %v673, 7
      %v675 = vsub.s32 %v672, %v674
      %v676 = vrot.slane %v648, %v675
      %v678 = vunpack.c.l.s4 1983009808
      %v679 = vunpack.c.0.s8 %v678
      %v680 = vlaneseq
      %v681 = vshrl.u32 %v680, 7
      %v682 = vsub.s32 %v679, %v681
      %v683 = vrot.slane %v655, %v682
      %v684 = vunpack.c.l.b16 %v662
      %v685 = vunpack.c.l.b16 %v669
      %v686 = vunpack.c.l.b16 %v676
      %v687 = vunpack.c.l.b16 %v683
      %v688 = vrot.slane %v685, 7
      %v689 = vsel %vm596, %v688, %v684
      %v690 = vrot.slane %v686, 6
      %v691 = vsel %vm598, %v690, %v689
      %v692 = vrot.slane %v687, 5
      %v693 = vsel %vm600, %v692, %v691
      %v694 = vpack.c.b16 %v693, %v693
      %v696 = vunpack.c.l.s4 1983009808
      %v697 = vunpack.c.0.s8 %v696
      %v698 = vlaneseq
      %v699 = vshrl.u32 %v698, 7
      %v700 = vsub.s32 %v697, %v699
      %v701 = vrot.slane %v694, %v700
      %703 = vst [vmem:[#allocation2] sm:$0x3] %v701
      %v704 = vld [vmem:[#allocation12] sm:$0xf]
      %v705 = vld [vmem:[#allocation12 + $0x4] sm:$0xf]
      %v706 = vld [vmem:[#allocation12 + $0x8] sm:$0xf]
      %v707 = vld [vmem:[#allocation12 + $0xc] sm:$0xf]
      %s708 = scalar_lea.vmem [#allocation15], 128
      %v709 = vld [vmem:[%s708] sm:$0xff]
      %v710 = vld [vmem:[%s708 + $0x8] sm:$0xff]
      %v711 = vld [vmem:[%s708 + $0x10] sm:$0xff]
      %v712 = vld [vmem:[%s708 + $0x18] sm:$0xff]
      %v713 = vld [vmem:[%s708 + $0x20] sm:$0xff]
      %v714 = vld [vmem:[%s708 + $0x28] sm:$0xff]
      %v715 = vld [vmem:[%s708 + $0x30] sm:$0xff]
      %v716 = vld [vmem:[%s708 + $0x38] sm:$0xff]
      %v717 = vld [vmem:[%s708 + $0x40] sm:$0xff]
      %v718 = vld [vmem:[%s708 + $0x48] sm:$0xff]
      %v719 = vld [vmem:[%s708 + $0x50] sm:$0xff]
      %v720 = vld [vmem:[%s708 + $0x58] sm:$0xff]
      %v721 = vld [vmem:[%s708 + $0x60] sm:$0xff]
      %v722 = vld [vmem:[%s708 + $0x68] sm:$0xff]
      %v723 = vld [vmem:[%s708 + $0x70] sm:$0xff]
      %v724 = vld [vmem:[%s708 + $0x78] sm:$0xff]
      %s725 = scalar_lea.vmem %s6, 2
      %v726 = vld [vmem:[%s725] sm:$0x3]
      %v728 = vlaneseq
      %v729 = vshrl.u32 %v728, 7
      %v730 = vsub.s32 0, %v729
      %v731 = vrot.slane %v726, %v730
      %v732 = vlaneseq
      %v733 = vshrl.u32 %v732, 7
      %v734 = vsub.s32 1, %v733
      %v735 = vrot.slane %v726, %v734
      %v742 = vunpack.c.l.b16 %v704
      %v743 = vunpack.c.l.b16 %v705
      %v744 = vunpack.c.l.b16 %v706
      %v745 = vunpack.c.l.b16 %v707
      %v746 = vpack.c.b16 %v743, %v742
      %v747 = vpack.c.b16 %v745, %v744
      %v766 = vunpack.c.l.b16 %v709
      %v767 = vunpack.c.h.b16 %v709
      %v768 = vunpack.c.l.b16 %v710
      %v769 = vunpack.c.h.b16 %v710
      %v770 = vunpack.c.l.b16 %v711
      %v771 = vunpack.c.h.b16 %v711
      %v772 = vunpack.c.l.b16 %v712
      %v773 = vunpack.c.h.b16 %v712
      %v774 = vunpack.c.l.b16 %v713
      %v775 = vunpack.c.h.b16 %v713
      %v776 = vunpack.c.l.b16 %v714
      %v777 = vunpack.c.h.b16 %v714
      %v778 = vunpack.c.l.b16 %v715
      %v779 = vunpack.c.h.b16 %v715
      %v780 = vunpack.c.l.b16 %v716
      %v781 = vunpack.c.h.b16 %v716
      %v782 = vunpack.c.l.b16 %v717
      %v783 = vunpack.c.h.b16 %v717
      %v784 = vunpack.c.l.b16 %v718
      %v785 = vunpack.c.h.b16 %v718
      %v786 = vunpack.c.l.b16 %v719
      %v787 = vunpack.c.h.b16 %v719
      %v788 = vunpack.c.l.b16 %v720
      %v789 = vunpack.c.h.b16 %v720
      %v790 = vunpack.c.l.b16 %v721
      %v791 = vunpack.c.h.b16 %v721
      %v792 = vunpack.c.l.b16 %v722
      %v793 = vunpack.c.h.b16 %v722
      %v794 = vunpack.c.l.b16 %v723
      %v795 = vunpack.c.h.b16 %v723
      %v796 = vunpack.c.l.b16 %v724
      %v797 = vunpack.c.h.b16 %v724
      %v798 = vpack.c.b16 %v768, %v766
      %v799 = vpack.c.b16 %v769, %v767
      %v800 = vpack.c.b16 %v772, %v770
      %v801 = vpack.c.b16 %v773, %v771
      %v802 = vpack.c.b16 %v776, %v774
      %v803 = vpack.c.b16 %v777, %v775
      %v804 = vpack.c.b16 %v780, %v778
      %v805 = vpack.c.b16 %v781, %v779
      %v806 = vpack.c.b16 %v784, %v782
      %v807 = vpack.c.b16 %v785, %v783
      %v808 = vpack.c.b16 %v788, %v786
      %v809 = vpack.c.b16 %v789, %v787
      %v810 = vpack.c.b16 %v792, %v790
      %v811 = vpack.c.b16 %v793, %v791
      %v812 = vpack.c.b16 %v796, %v794
      %v813 = vpack.c.b16 %v797, %v795
      %830 = vmatprep.subr.bf16.mxu0 %v799
      %831 = vmatpush1.bf16.msra.mxu0 %v798
      %832 = vmatprep.subr.bf16.mxu0 %v801
      %833 = vmatpush1.bf16.msra.mxu0 %v800
      %834 = vmatprep.subr.bf16.mxu0 %v803
      %835 = vmatpush1.bf16.msra.mxu0 %v802
      %836 = vmatprep.subr.bf16.mxu0 %v805
      %837 = vmatpush1.bf16.msra.mxu0 %v804
      %838 = vmatprep.subr.bf16.mxu0 %v807
      %839 = vmatpush1.bf16.msra.mxu0 %v806
      %840 = vmatprep.subr.bf16.mxu0 %v809
      %841 = vmatpush1.bf16.msra.mxu0 %v808
      %842 = vmatprep.subr.bf16.mxu0 %v811
      %843 = vmatpush1.bf16.msra.mxu0 %v810
      %844 = vmatprep.subr.bf16.mxu0 %v813
      %845 = vmatpush1.bf16.msra.mxu0 %v812
      %846 = vmatprep.subr.bf16.mxu0 0
      %847 = vmatpush1.bf16.msra.mxu0 0
      %848 = vmatprep.subr.bf16.mxu0 0
      %849 = vmatpush1.bf16.msra.mxu0 0
      %850 = vmatprep.subr.bf16.mxu0 0
      %851 = vmatpush1.bf16.msra.mxu0 0
      %852 = vmatprep.subr.bf16.mxu0 0
      %853 = vmatpush1.bf16.msra.mxu0 0
      %854 = vmatprep.subr.bf16.mxu0 0
      %855 = vmatpush1.bf16.msra.mxu0 0
      %856 = vmatprep.subr.bf16.mxu0 0
      %857 = vmatpush1.bf16.msra.mxu0 0
      %858 = vmatprep.subr.bf16.mxu0 0
      %859 = vmatpush1.bf16.msra.mxu0 0
      %860 = vmatprep.subr.bf16.mxu0 0
      %861 = vmatpush1.bf16.msra.mxu0 0
      %862 = vmatprep.mubr.bf16.mxu0 0
      %863 = vmatmul.mubr.bf16.gmra.mrb[0].mxu0 %v746
      %v864 = vpop.f32.mrb[0].mxu0
      %v865 = vadd.f32 %v731, %v864
      %v866 = vpop.f32.mrb[0].mxu0
      %v867 = vadd.f32 %v735, %v866
      %v868 = vpop.f32.mrb[0].mxu0
      %v869 = vadd.f32 %v731, %v868
      %v870 = vpop.f32.mrb[0].mxu0
      %v871 = vadd.f32 %v735, %v870
      %872 = vmatprep.mubr.bf16.mxu0 0
      %873 = vmatmul.mubr.bf16.gmra.mrb[0].mxu0 %v747
      %v874 = vpop.f32.mrb[0].mxu0
      %v875 = vadd.f32 %v731, %v874
      %v876 = vpop.f32.mrb[0].mxu0
      %v877 = vadd.f32 %v735, %v876
      %v878 = vpop.f32.mrb[0].mxu0
      %v879 = vadd.f32 %v731, %v878
      %v880 = vpop.f32.mrb[0].mxu0
      %v881 = vadd.f32 %v735, %v880
      %882 = vdwg.mxu0
      %v883 = vmax.f32 %v865, 0.0
      %v884 = vmax.f32 %v867, 0.0
      %v885 = vmax.f32 %v869, 0.0
      %v886 = vmax.f32 %v871, 0.0
      %v887 = vmax.f32 %v875, 0.0
      %v888 = vmax.f32 %v877, 0.0
      %v889 = vmax.f32 %v879, 0.0
      %v890 = vmax.f32 %v881, 0.0
      %v891 = vpack.c.bf16 %v885, %v883
      %v892 = vpack.c.bf16 %v886, %v884
      %v893 = vpack.c.bf16 %v889, %v887
      %v894 = vpack.c.bf16 %v890, %v888
      %s895 = scalar_lea.vmem [#allocation17], 128
      %v896 = vld [vmem:[%s895] sm:$0xf]
      %v897 = vld [vmem:[%s895 + $0x4] sm:$0xf]
      %v898 = vld [vmem:[%s895 + $0x8] sm:$0xf]
      %v899 = vld [vmem:[%s895 + $0xc] sm:$0xf]
      %v900 = vld [vmem:[%s895 + $0x10] sm:$0xf]
      %v901 = vld [vmem:[%s895 + $0x14] sm:$0xf]
      %v902 = vld [vmem:[%s895 + $0x18] sm:$0xf]
      %v903 = vld [vmem:[%s895 + $0x1c] sm:$0xf]
      %v904 = vld [vmem:[%s895 + $0x20] sm:$0xf]
      %v905 = vld [vmem:[%s895 + $0x24] sm:$0xf]
      %v906 = vld [vmem:[%s895 + $0x28] sm:$0xf]
      %v907 = vld [vmem:[%s895 + $0x2c] sm:$0xf]
      %v908 = vld [vmem:[%s895 + $0x30] sm:$0xf]
      %v909 = vld [vmem:[%s895 + $0x34] sm:$0xf]
      %v910 = vld [vmem:[%s895 + $0x38] sm:$0xf]
      %v911 = vld [vmem:[%s895 + $0x3c] sm:$0xf]
      %v912 = vld [vmem:[%s895 + $0x40] sm:$0xf]
      %v913 = vld [vmem:[%s895 + $0x44] sm:$0xf]
      %v914 = vld [vmem:[%s895 + $0x48] sm:$0xf]
      %v915 = vld [vmem:[%s895 + $0x4c] sm:$0xf]
      %v916 = vld [vmem:[%s895 + $0x50] sm:$0xf]
      %v917 = vld [vmem:[%s895 + $0x54] sm:$0xf]
      %v918 = vld [vmem:[%s895 + $0x58] sm:$0xf]
      %v919 = vld [vmem:[%s895 + $0x5c] sm:$0xf]
      %v920 = vld [vmem:[%s895 + $0x60] sm:$0xf]
      %v921 = vld [vmem:[%s895 + $0x64] sm:$0xf]
      %v922 = vld [vmem:[%s895 + $0x68] sm:$0xf]
      %v923 = vld [vmem:[%s895 + $0x6c] sm:$0xf]
      %v924 = vld [vmem:[%s895 + $0x70] sm:$0xf]
      %v925 = vld [vmem:[%s895 + $0x74] sm:$0xf]
      %v926 = vld [vmem:[%s895 + $0x78] sm:$0xf]
      %v927 = vld [vmem:[%s895 + $0x7c] sm:$0xf]
      %s928 = scalar_lea.vmem %s8, 1
      %v929 = vld [vmem:[%s928] sm:$0x1]
      %v931 = vlaneseq
      %v932 = vshrl.u32 %v931, 7
      %v933 = vsub.s32 0, %v932
      %v934 = vrot.slane %v929, %v933
      %v968 = vunpack.c.l.b16 %v896
      %v969 = vunpack.c.l.b16 %v897
      %v970 = vunpack.c.l.b16 %v898
      %v971 = vunpack.c.l.b16 %v899
      %v972 = vunpack.c.l.b16 %v900
      %v973 = vunpack.c.l.b16 %v901
      %v974 = vunpack.c.l.b16 %v902
      %v975 = vunpack.c.l.b16 %v903
      %v976 = vunpack.c.l.b16 %v904
      %v977 = vunpack.c.l.b16 %v905
      %v978 = vunpack.c.l.b16 %v906
      %v979 = vunpack.c.l.b16 %v907
      %v980 = vunpack.c.l.b16 %v908
      %v981 = vunpack.c.l.b16 %v909
      %v982 = vunpack.c.l.b16 %v910
      %v983 = vunpack.c.l.b16 %v911
      %v984 = vunpack.c.l.b16 %v912
      %v985 = vunpack.c.l.b16 %v913
      %v986 = vunpack.c.l.b16 %v914
      %v987 = vunpack.c.l.b16 %v915
      %v988 = vunpack.c.l.b16 %v916
      %v989 = vunpack.c.l.b16 %v917
      %v990 = vunpack.c.l.b16 %v918
      %v991 = vunpack.c.l.b16 %v919
      %v992 = vunpack.c.l.b16 %v920
      %v993 = vunpack.c.l.b16 %v921
      %v994 = vunpack.c.l.b16 %v922
      %v995 = vunpack.c.l.b16 %v923
      %v996 = vunpack.c.l.b16 %v924
      %v997 = vunpack.c.l.b16 %v925
      %v998 = vunpack.c.l.b16 %v926
      %v999 = vunpack.c.l.b16 %v927
      %v1000 = vpack.c.b16 %v969, %v968
      %v1001 = vpack.c.b16 %v971, %v970
      %v1002 = vpack.c.b16 %v973, %v972
      %v1003 = vpack.c.b16 %v975, %v974
      %v1004 = vpack.c.b16 %v977, %v976
      %v1005 = vpack.c.b16 %v979, %v978
      %v1006 = vpack.c.b16 %v981, %v980
      %v1007 = vpack.c.b16 %v983, %v982
      %v1008 = vpack.c.b16 %v985, %v984
      %v1009 = vpack.c.b16 %v987, %v986
      %v1010 = vpack.c.b16 %v989, %v988
      %v1011 = vpack.c.b16 %v991, %v990
      %v1012 = vpack.c.b16 %v993, %v992
      %v1013 = vpack.c.b16 %v995, %v994
      %v1014 = vpack.c.b16 %v997, %v996
      %v1015 = vpack.c.b16 %v999, %v998
      %1032 = vmatprep.subr.bf16.mxu0 0
      %1033 = vmatpush1.bf16.msra.mxu0 %v1000
      %1034 = vmatprep.subr.bf16.mxu0 0
      %1035 = vmatpush1.bf16.msra.mxu0 %v1001
      %1036 = vmatprep.subr.bf16.mxu0 0
      %1037 = vmatpush1.bf16.msra.mxu0 %v1002
      %1038 = vmatprep.subr.bf16.mxu0 0
      %1039 = vmatpush1.bf16.msra.mxu0 %v1003
      %1040 = vmatprep.subr.bf16.mxu0 0
      %1041 = vmatpush1.bf16.msra.mxu0 %v1004
      %1042 = vmatprep.subr.bf16.mxu0 0
      %1043 = vmatpush1.bf16.msra.mxu0 %v1005
      %1044 = vmatprep.subr.bf16.mxu0 0
      %1045 = vmatpush1.bf16.msra.mxu0 %v1006
      %1046 = vmatprep.subr.bf16.mxu0 0
      %1047 = vmatpush1.bf16.msra.mxu0 %v1007
      %1048 = vmatprep.subr.bf16.mxu0 0
      %1049 = vmatpush1.bf16.msra.mxu0 %v1008
      %1050 = vmatprep.subr.bf16.mxu0 0
      %1051 = vmatpush1.bf16.msra.mxu0 %v1009
      %1052 = vmatprep.subr.bf16.mxu0 0
      %1053 = vmatpush1.bf16.msra.mxu0 %v1010
      %1054 = vmatprep.subr.bf16.mxu0 0
      %1055 = vmatpush1.bf16.msra.mxu0 %v1011
      %1056 = vmatprep.subr.bf16.mxu0 0
      %1057 = vmatpush1.bf16.msra.mxu0 %v1012
      %1058 = vmatprep.subr.bf16.mxu0 0
      %1059 = vmatpush1.bf16.msra.mxu0 %v1013
      %1060 = vmatprep.subr.bf16.mxu0 0
      %1061 = vmatpush1.bf16.msra.mxu0 %v1014
      %1062 = vmatprep.subr.bf16.mxu0 0
      %1063 = vmatpush1.bf16.msra.mxu0 %v1015
      %1064 = vmatprep.mubr.bf16.mxu0 %v892
      %1065 = vmatmul.mubr.bf16.gmra.mrb[0].mxu0 %v891
      %v1066 = vpop.f32.mrb[0].mxu0
      %v1067 = vadd.f32 %v934, %v1066
      %v1068 = vpop.f32.mrb[0].mxu0
      %v1069 = vpop.f32.mrb[0].mxu0
      %v1070 = vadd.f32 %v934, %v1069
      %v1071 = vpop.f32.mrb[0].mxu0
      %1072 = vmatprep.mubr.bf16.mxu0 %v894
      %1073 = vmatmul.mubr.bf16.gmra.mrb[0].mxu0 %v893
      %v1074 = vpop.f32.mrb[0].mxu0
      %v1075 = vadd.f32 %v934, %v1074
      %v1076 = vpop.f32.mrb[0].mxu0
      %v1077 = vpop.f32.mrb[0].mxu0
      %v1078 = vadd.f32 %v934, %v1077
      %v1079 = vpop.f32.mrb[0].mxu0
      %1080 = vdwg.mxu0
      %v1081 = vmax.f32 %v1067, 0.0
      %v1082 = vmax.f32 %v1070, 0.0
      %v1083 = vmax.f32 %v1075, 0.0
      %v1084 = vmax.f32 %v1078, 0.0
      %s1085 = scalar_lea.vmem %s9, 1
      %v1086 = vld [vmem:[%s1085] sm:$0x1]
      %v1088 = vlaneseq
      %v1089 = vshrl.u32 %v1088, 7
      %v1090 = vsub.s32 0, %v1089
      %v1091 = vrot.slane %v1086, %v1090
      %v1093 = vmul.f32 %v1081, %v1091
      %v1094 = vmul.f32 %v1082, %v1091
      %v1095 = vmul.f32 %v1083, %v1091
      %v1096 = vmul.f32 %v1084, %v1091
      %1097 = vadd.xlane.f32.xlu0 %v1093
      %v1098 = vpop.xlane.xlu0 %1097
      %1099 = vadd.xlane.f32.xlu0 %v1094
      %v1100 = vpop.xlane.xlu0 %1099
      %1101 = vadd.xlane.f32.xlu0 %v1095
      %v1102 = vpop.xlane.xlu0 %1101
      %1103 = vadd.xlane.f32.xlu0 %v1096
      %v1104 = vpop.xlane.xlu0 %1103
      %s1105 = sld [smem:[#allocation18 + $0x1]]
      %v1106 = vstv %s1105
      %v1107 = vadd.f32 %v1098, %v1106
      %v1108 = vadd.f32 %v1100, %v1106
      %v1109 = vadd.f32 %v1102, %v1106
      %v1110 = vadd.f32 %v1104, %v1106
      %v1115 = vlaneseq
      %v1116 = vand.u32 %v1115, 127
      %v1117 = vlaneseq
      %v1118 = vshrl.u32 %v1117, 7
      %v1119 = vsub.s32 %v1116, %v1118
      %v1120 = vrot.slane %v1107, %v1119
      %v1121 = vlaneseq
      %v1122 = vshrl.u32 %v1121, 7
      %v1123 = vsub.s32 %v1116, %v1122
      %v1124 = vrot.slane %v1108, %v1123
      %v1125 = vlaneseq
      %v1126 = vshrl.u32 %v1125, 7
      %v1127 = vsub.s32 %v1116, %v1126
      %v1128 = vrot.slane %v1109, %v1127
      %v1129 = vlaneseq
      %v1130 = vshrl.u32 %v1129, 7
      %v1131 = vsub.s32 %v1116, %v1130
      %v1132 = vrot.slane %v1110, %v1131
      %v1133 = vsel %vm596, %v1124, %v1120
      %v1134 = vsel %vm598, %v1128, %v1133
      %v1135 = vsel %vm600, %v1132, %v1134
      %1137 = vxpose.xlu0.b32.start [1/16] %v1135, 128
      %1138 = vxpose.xlu0.b32.cont [2/16] 0.0, 128
      %1139 = vxpose.xlu0.b32.cont [3/16] 0.0, 128
      %1140 = vxpose.xlu0.b32.cont [4/16] 0.0, 128
      %1141 = vxpose.xlu0.b32.cont [5/16] 0.0, 128
      %1142 = vxpose.xlu0.b32.cont [6/16] 0.0, 128
      %1143 = vxpose.xlu0.b32.cont [7/16] 0.0, 128
      %1144 = vxpose.xlu0.b32.cont [8/16] 0.0, 128
      %1145 = vxpose.xlu0.b32.cont [9/16] 0.0, 128
      %1146 = vxpose.xlu0.b32.cont [10/16] 0.0, 128
      %1147 = vxpose.xlu0.b32.cont [11/16] 0.0, 128
      %1148 = vxpose.xlu0.b32.cont [12/16] 0.0, 128
      %1149 = vxpose.xlu0.b32.cont [13/16] 0.0, 128
      %1150 = vxpose.xlu0.b32.cont [14/16] 0.0, 128
      %1151 = vxpose.xlu0.b32.cont [15/16] 0.0, 128
      %1152 = vxpose.xlu0.b32.end [16/16] 0.0, 128
      %v1153 = vpop.trf.xlu0
      %v1154 = vpop.trf.xlu0
      %v1155 = vpop.trf.xlu0
      %v1156 = vpop.trf.xlu0
      %v1157 = vpop.trf.xlu0
      %v1158 = vpop.trf.xlu0
      %v1159 = vpop.trf.xlu0
      %v1160 = vpop.trf.xlu0
      %v1161 = vpop.trf.xlu0
      %v1162 = vpop.trf.xlu0
      %v1163 = vpop.trf.xlu0
      %v1164 = vpop.trf.xlu0
      %v1165 = vpop.trf.xlu0
      %v1166 = vpop.trf.xlu0
      %v1167 = vpop.trf.xlu0
      %v1168 = vpop.trf.xlu0
      %vm1169 = vcmask 31744
      %1170 = vst.msk [vmem:[#allocation3] sm:$0xff] %vm1169, %v1153
      %v1171 = vld [vmem:[#allocation14] sm:$0x3]
      %v1172 = vld [vmem:[#allocation14 + $0x2] sm:$0x3]
      %v1173 = vld [vmem:[#allocation14 + $0x4] sm:$0x3]
      %v1174 = vld [vmem:[#allocation14 + $0x6] sm:$0x3]
      %v1175 = vld [vmem:[#allocation14 + $0x8] sm:$0x3]
      %v1176 = vld [vmem:[#allocation14 + $0xa] sm:$0x3]
      %v1177 = vld [vmem:[#allocation14 + $0xc] sm:$0x3]
      %v1178 = vld [vmem:[#allocation14 + $0xe] sm:$0x3]
      %s1179 = scalar_lea.vmem [#allocation15], 256
      %v1180 = vld [vmem:[%s1179] sm:$0xff]
      %v1181 = vld [vmem:[%s1179 + $0x8] sm:$0xff]
      %v1182 = vld [vmem:[%s1179 + $0x10] sm:$0xff]
      %v1183 = vld [vmem:[%s1179 + $0x18] sm:$0xff]
      %v1184 = vld [vmem:[%s1179 + $0x20] sm:$0xff]
      %v1185 = vld [vmem:[%s1179 + $0x28] sm:$0xff]
      %v1186 = vld [vmem:[%s1179 + $0x30] sm:$0xff]
      %v1187 = vld [vmem:[%s1179 + $0x38] sm:$0xff]
      %v1188 = vld [vmem:[%s1179 + $0x40] sm:$0xff]
      %v1189 = vld [vmem:[%s1179 + $0x48] sm:$0xff]
      %v1190 = vld [vmem:[%s1179 + $0x50] sm:$0xff]
      %v1191 = vld [vmem:[%s1179 + $0x58] sm:$0xff]
      %v1192 = vld [vmem:[%s1179 + $0x60] sm:$0xff]
      %v1193 = vld [vmem:[%s1179 + $0x68] sm:$0xff]
      %v1194 = vld [vmem:[%s1179 + $0x70] sm:$0xff]
      %v1195 = vld [vmem:[%s1179 + $0x78] sm:$0xff]
      %s1196 = scalar_lea.vmem %s6, 4
      %v1197 = vld [vmem:[%s1196] sm:$0x3]
      %v1199 = vlaneseq
      %v1200 = vshrl.u32 %v1199, 7
      %v1201 = vsub.s32 0, %v1200
      %v1202 = vrot.slane %v1197, %v1201
      %v1203 = vlaneseq
      %v1204 = vshrl.u32 %v1203, 7
      %v1205 = vsub.s32 1, %v1204
      %v1206 = vrot.slane %v1197, %v1205
      %v1217 = vcombine.low %v1171, %v1172
      %v1218 = vcombine.low %v1173, %v1174
      %v1220 = vunpack.c.l.s4 1983009808
      %v1221 = vunpack.c.0.s8 %v1220
      %v1222 = vlaneseq
      %v1223 = vshrl.u32 %v1222, 7
      %v1224 = vsub.s32 %v1221, %v1223
      %v1225 = vrot.slane %v1217, %v1224
      %v1227 = vunpack.c.l.s4 1983009808
      %v1228 = vunpack.c.0.s8 %v1227
      %v1229 = vlaneseq
      %v1230 = vshrl.u32 %v1229, 7
      %v1231 = vsub.s32 %v1228, %v1230
      %v1232 = vrot.slane %v1218, %v1231
      %v1233 = vcombine.low %v1225, %v1232
      %v1234 = vcombine.low %v1175, %v1176
      %v1235 = vcombine.low %v1177, %v1178
      %v1237 = vunpack.c.l.s4 1983009808
      %v1238 = vunpack.c.0.s8 %v1237
      %v1239 = vlaneseq
      %v1240 = vshrl.u32 %v1239, 7
      %v1241 = vsub.s32 %v1238, %v1240
      %v1242 = vrot.slane %v1234, %v1241
      %v1244 = vunpack.c.l.s4 1983009808
      %v1245 = vunpack.c.0.s8 %v1244
      %v1246 = vlaneseq
      %v1247 = vshrl.u32 %v1246, 7
      %v1248 = vsub.s32 %v1245, %v1247
      %v1249 = vrot.slane %v1235, %v1248
      %v1250 = vcombine.low %v1242, %v1249
      %v1269 = vunpack.c.l.b16 %v1180
      %v1270 = vunpack.c.h.b16 %v1180
      %v1271 = vunpack.c.l.b16 %v1181
      %v1272 = vunpack.c.h.b16 %v1181
      %v1273 = vunpack.c.l.b16 %v1182
      %v1274 = vunpack.c.h.b16 %v1182
      %v1275 = vunpack.c.l.b16 %v1183
      %v1276 = vunpack.c.h.b16 %v1183
      %v1277 = vunpack.c.l.b16 %v1184
      %v1278 = vunpack.c.h.b16 %v1184
      %v1279 = vunpack.c.l.b16 %v1185
      %v1280 = vunpack.c.h.b16 %v1185
      %v1281 = vunpack.c.l.b16 %v1186
      %v1282 = vunpack.c.h.b16 %v1186
      %v1283 = vunpack.c.l.b16 %v1187
      %v1284 = vunpack.c.h.b16 %v1187
      %v1285 = vunpack.c.l.b16 %v1188
      %v1286 = vunpack.c.h.b16 %v1188
      %v1287 = vunpack.c.l.b16 %v1189
      %v1288 = vunpack.c.h.b16 %v1189
      %v1289 = vunpack.c.l.b16 %v1190
      %v1290 = vunpack.c.h.b16 %v1190
      %v1291 = vunpack.c.l.b16 %v1191
      %v1292 = vunpack.c.h.b16 %v1191
      %v1293 = vunpack.c.l.b16 %v1192
      %v1294 = vunpack.c.h.b16 %v1192
      %v1295 = vunpack.c.l.b16 %v1193
      %v1296 = vunpack.c.h.b16 %v1193
      %v1297 = vunpack.c.l.b16 %v1194
      %v1298 = vunpack.c.h.b16 %v1194
      %v1299 = vunpack.c.l.b16 %v1195
      %v1300 = vunpack.c.h.b16 %v1195
      %v1301 = vpack.c.b16 %v1271, %v1269
      %v1302 = vpack.c.b16 %v1272, %v1270
      %v1303 = vpack.c.b16 %v1275, %v1273
      %v1304 = vpack.c.b16 %v1276, %v1274
      %v1305 = vpack.c.b16 %v1279, %v1277
      %v1306 = vpack.c.b16 %v1280, %v1278
      %v1307 = vpack.c.b16 %v1283, %v1281
      %v1308 = vpack.c.b16 %v1284, %v1282
      %v1309 = vpack.c.b16 %v1287, %v1285
      %v1310 = vpack.c.b16 %v1288, %v1286
      %v1311 = vpack.c.b16 %v1291, %v1289
      %v1312 = vpack.c.b16 %v1292, %v1290
      %v1313 = vpack.c.b16 %v1295, %v1293
      %v1314 = vpack.c.b16 %v1296, %v1294
      %v1315 = vpack.c.b16 %v1299, %v1297
      %v1316 = vpack.c.b16 %v1300, %v1298
      %1333 = vmatprep.subr.bf16.mxu0 %v1302
      %1334 = vmatpush1.bf16.msra.mxu0 %v1301
      %1335 = vmatprep.subr.bf16.mxu0 %v1304
      %1336 = vmatpush1.bf16.msra.mxu0 %v1303
      %1337 = vmatprep.subr.bf16.mxu0 %v1306
      %1338 = vmatpush1.bf16.msra.mxu0 %v1305
      %1339 = vmatprep.subr.bf16.mxu0 %v1308
      %1340 = vmatpush1.bf16.msra.mxu0 %v1307
      %1341 = vmatprep.subr.bf16.mxu0 %v1310
      %1342 = vmatpush1.bf16.msra.mxu0 %v1309
      %1343 = vmatprep.subr.bf16.mxu0 %v1312
      %1344 = vmatpush1.bf16.msra.mxu0 %v1311
      %1345 = vmatprep.subr.bf16.mxu0 %v1314
      %1346 = vmatpush1.bf16.msra.mxu0 %v1313
      %1347 = vmatprep.subr.bf16.mxu0 %v1316
      %1348 = vmatpush1.bf16.msra.mxu0 %v1315
      %1349 = vmatprep.subr.bf16.mxu0 0
      %1350 = vmatpush1.bf16.msra.mxu0 0
      %1351 = vmatprep.subr.bf16.mxu0 0
      %1352 = vmatpush1.bf16.msra.mxu0 0
      %1353 = vmatprep.subr.bf16.mxu0 0
      %1354 = vmatpush1.bf16.msra.mxu0 0
      %1355 = vmatprep.subr.bf16.mxu0 0
      %1356 = vmatpush1.bf16.msra.mxu0 0
      %1357 = vmatprep.subr.bf16.mxu0 0
      %1358 = vmatpush1.bf16.msra.mxu0 0
      %1359 = vmatprep.subr.bf16.mxu0 0
      %1360 = vmatpush1.bf16.msra.mxu0 0
      %1361 = vmatprep.subr.bf16.mxu0 0
      %1362 = vmatpush1.bf16.msra.mxu0 0
      %1363 = vmatprep.subr.bf16.mxu0 0
      %1364 = vmatpush1.bf16.msra.mxu0 0
      %1365 = vmatprep.mubr.bf16.mxu0 0
      %1366 = vmatmul.mubr.bf16.gmra.mrb[0].mxu0 %v1233
      %v1367 = vpop.f32.mrb[0].mxu0
      %v1368 = vadd.f32 %v1202, %v1367
      %v1369 = vpop.f32.mrb[0].mxu0
      %v1370 = vadd.f32 %v1206, %v1369
      %v1371 = vpop.f32.mrb[0].mxu0
      %v1372 = vadd.f32 %v1202, %v1371
      %v1373 = vpop.f32.mrb[0].mxu0
      %v1374 = vadd.f32 %v1206, %v1373
      %1375 = vmatprep.mubr.bf16.mxu0 0
      %1376 = vmatmul.mubr.bf16.gmra.mrb[0].mxu0 %v1250
      %v1377 = vpop.f32.mrb[0].mxu0
      %v1378 = vadd.f32 %v1202, %v1377
      %v1379 = vpop.f32.mrb[0].mxu0
      %v1380 = vadd.f32 %v1206, %v1379
      %v1381 = vpop.f32.mrb[0].mxu0
      %v1382 = vadd.f32 %v1202, %v1381
      %v1383 = vpop.f32.mrb[0].mxu0
      %v1384 = vadd.f32 %v1206, %v1383
      %1385 = vdwg.mxu0
      %v1386 = vmax.f32 %v1368, 0.0
      %v1387 = vmax.f32 %v1370, 0.0
      %v1388 = vmax.f32 %v1372, 0.0
      %v1389 = vmax.f32 %v1374, 0.0
      %v1390 = vmax.f32 %v1378, 0.0
      %v1391 = vmax.f32 %v1380, 0.0
      %v1392 = vmax.f32 %v1382, 0.0
      %v1393 = vmax.f32 %v1384, 0.0
      %v1394 = vpack.c.bf16 %v1388, %v1386
      %v1395 = vpack.c.bf16 %v1389, %v1387
      %v1396 = vpack.c.bf16 %v1392, %v1390
      %v1397 = vpack.c.bf16 %v1393, %v1391
      %s1398 = scalar_lea.vmem [#allocation17], 256
      %v1399 = vld [vmem:[%s1398] sm:$0xf]
      %v1400 = vld [vmem:[%s1398 + $0x4] sm:$0xf]
      %v1401 = vld [vmem:[%s1398 + $0x8] sm:$0xf]
      %v1402 = vld [vmem:[%s1398 + $0xc] sm:$0xf]
      %v1403 = vld [vmem:[%s1398 + $0x10] sm:$0xf]
      %v1404 = vld [vmem:[%s1398 + $0x14] sm:$0xf]
      %v1405 = vld [vmem:[%s1398 + $0x18] sm:$0xf]
      %v1406 = vld [vmem:[%s1398 + $0x1c] sm:$0xf]
      %v1407 = vld [vmem:[%s1398 + $0x20] sm:$0xf]
      %v1408 = vld [vmem:[%s1398 + $0x24] sm:$0xf]
      %v1409 = vld [vmem:[%s1398 + $0x28] sm:$0xf]
      %v1410 = vld [vmem:[%s1398 + $0x2c] sm:$0xf]
      %v1411 = vld [vmem:[%s1398 + $0x30] sm:$0xf]
      %v1412 = vld [vmem:[%s1398 + $0x34] sm:$0xf]
      %v1413 = vld [vmem:[%s1398 + $0x38] sm:$0xf]
      %v1414 = vld [vmem:[%s1398 + $0x3c] sm:$0xf]
      %v1415 = vld [vmem:[%s1398 + $0x40] sm:$0xf]
      %v1416 = vld [vmem:[%s1398 + $0x44] sm:$0xf]
      %v1417 = vld [vmem:[%s1398 + $0x48] sm:$0xf]
      %v1418 = vld [vmem:[%s1398 + $0x4c] sm:$0xf]
      %v1419 = vld [vmem:[%s1398 + $0x50] sm:$0xf]
      %v1420 = vld [vmem:[%s1398 + $0x54] sm:$0xf]
      %v1421 = vld [vmem:[%s1398 + $0x58] sm:$0xf]
      %v1422 = vld [vmem:[%s1398 + $0x5c] sm:$0xf]
      %v1423 = vld [vmem:[%s1398 + $0x60] sm:$0xf]
      %v1424 = vld [vmem:[%s1398 + $0x64] sm:$0xf]
      %v1425 = vld [vmem:[%s1398 + $0x68] sm:$0xf]
      %v1426 = vld [vmem:[%s1398 + $0x6c] sm:$0xf]
      %v1427 = vld [vmem:[%s1398 + $0x70] sm:$0xf]
      %v1428 = vld [vmem:[%s1398 + $0x74] sm:$0xf]
      %v1429 = vld [vmem:[%s1398 + $0x78] sm:$0xf]
      %v1430 = vld [vmem:[%s1398 + $0x7c] sm:$0xf]
      %s1431 = scalar_lea.vmem %s8, 2
      %v1432 = vld [vmem:[%s1431] sm:$0x1]
      %v1434 = vlaneseq
      %v1435 = vshrl.u32 %v1434, 7
      %v1436 = vsub.s32 0, %v1435
      %v1437 = vrot.slane %v1432, %v1436
      %v1471 = vunpack.c.l.b16 %v1399
      %v1472 = vunpack.c.l.b16 %v1400
      %v1473 = vunpack.c.l.b16 %v1401
      %v1474 = vunpack.c.l.b16 %v1402
      %v1475 = vunpack.c.l.b16 %v1403
      %v1476 = vunpack.c.l.b16 %v1404
      %v1477 = vunpack.c.l.b16 %v1405
      %v1478 = vunpack.c.l.b16 %v1406
      %v1479 = vunpack.c.l.b16 %v1407
      %v1480 = vunpack.c.l.b16 %v1408
      %v1481 = vunpack.c.l.b16 %v1409
      %v1482 = vunpack.c.l.b16 %v1410
      %v1483 = vunpack.c.l.b16 %v1411
      %v1484 = vunpack.c.l.b16 %v1412
      %v1485 = vunpack.c.l.b16 %v1413
      %v1486 = vunpack.c.l.b16 %v1414
      %v1487 = vunpack.c.l.b16 %v1415
      %v1488 = vunpack.c.l.b16 %v1416
      %v1489 = vunpack.c.l.b16 %v1417
      %v1490 = vunpack.c.l.b16 %v1418
      %v1491 = vunpack.c.l.b16 %v1419
      %v1492 = vunpack.c.l.b16 %v1420
      %v1493 = vunpack.c.l.b16 %v1421
      %v1494 = vunpack.c.l.b16 %v1422
      %v1495 = vunpack.c.l.b16 %v1423
      %v1496 = vunpack.c.l.b16 %v1424
      %v1497 = vunpack.c.l.b16 %v1425
      %v1498 = vunpack.c.l.b16 %v1426
      %v1499 = vunpack.c.l.b16 %v1427
      %v1500 = vunpack.c.l.b16 %v1428
      %v1501 = vunpack.c.l.b16 %v1429
      %v1502 = vunpack.c.l.b16 %v1430
      %v1503 = vpack.c.b16 %v1472, %v1471
      %v1504 = vpack.c.b16 %v1474, %v1473
      %v1505 = vpack.c.b16 %v1476, %v1475
      %v1506 = vpack.c.b16 %v1478, %v1477
      %v1507 = vpack.c.b16 %v1480, %v1479
      %v1508 = vpack.c.b16 %v1482, %v1481
      %v1509 = vpack.c.b16 %v1484, %v1483
      %v1510 = vpack.c.b16 %v1486, %v1485
      %v1511 = vpack.c.b16 %v1488, %v1487
      %v1512 = vpack.c.b16 %v1490, %v1489
      %v1513 = vpack.c.b16 %v1492, %v1491
      %v1514 = vpack.c.b16 %v1494, %v1493
      %v1515 = vpack.c.b16 %v1496, %v1495
      %v1516 = vpack.c.b16 %v1498, %v1497
      %v1517 = vpack.c.b16 %v1500, %v1499
      %v1518 = vpack.c.b16 %v1502, %v1501
      %1535 = vmatprep.subr.bf16.mxu0 0
      %1536 = vmatpush1.bf16.msra.mxu0 %v1503
      %1537 = vmatprep.subr.bf16.mxu0 0
      %1538 = vmatpush1.bf16.msra.mxu0 %v1504
      %1539 = vmatprep.subr.bf16.mxu0 0
      %1540 = vmatpush1.bf16.msra.mxu0 %v1505
      %1541 = vmatprep.subr.bf16.mxu0 0
      %1542 = vmatpush1.bf16.msra.mxu0 %v1506
      %1543 = vmatprep.subr.bf16.mxu0 0
      %1544 = vmatpush1.bf16.msra.mxu0 %v1507
      %1545 = vmatprep.subr.bf16.mxu0 0
      %1546 = vmatpush1.bf16.msra.mxu0 %v1508
      %1547 = vmatprep.subr.bf16.mxu0 0
      %1548 = vmatpush1.bf16.msra.mxu0 %v1509
      %1549 = vmatprep.subr.bf16.mxu0 0
      %1550 = vmatpush1.bf16.msra.mxu0 %v1510
      %1551 = vmatprep.subr.bf16.mxu0 0
      %1552 = vmatpush1.bf16.msra.mxu0 %v1511
      %1553 = vmatprep.subr.bf16.mxu0 0
      %1554 = vmatpush1.bf16.msra.mxu0 %v1512
      %1555 = vmatprep.subr.bf16.mxu0 0
      %1556 = vmatpush1.bf16.msra.mxu0 %v1513
      %1557 = vmatprep.subr.bf16.mxu0 0
      %1558 = vmatpush1.bf16.msra.mxu0 %v1514
      %1559 = vmatprep.subr.bf16.mxu0 0
      %1560 = vmatpush1.bf16.msra.mxu0 %v1515
      %1561 = vmatprep.subr.bf16.mxu0 0
      %1562 = vmatpush1.bf16.msra.mxu0 %v1516
      %1563 = vmatprep.subr.bf16.mxu0 0
      %1564 = vmatpush1.bf16.msra.mxu0 %v1517
      %1565 = vmatprep.subr.bf16.mxu0 0
      %1566 = vmatpush1.bf16.msra.mxu0 %v1518
      %1567 = vmatprep.mubr.bf16.mxu0 %v1395
      %1568 = vmatmul.mubr.bf16.gmra.mrb[0].mxu0 %v1394
      %v1569 = vpop.f32.mrb[0].mxu0
      %v1570 = vadd.f32 %v1437, %v1569
      %v1571 = vpop.f32.mrb[0].mxu0
      %v1572 = vpop.f32.mrb[0].mxu0
      %v1573 = vadd.f32 %v1437, %v1572
      %v1574 = vpop.f32.mrb[0].mxu0
      %1575 = vmatprep.mubr.bf16.mxu0 %v1397
      %1576 = vmatmul.mubr.bf16.gmra.mrb[0].mxu0 %v1396
      %v1577 = vpop.f32.mrb[0].mxu0
      %v1578 = vadd.f32 %v1437, %v1577
      %v1579 = vpop.f32.mrb[0].mxu0
      %v1580 = vpop.f32.mrb[0].mxu0
      %v1581 = vadd.f32 %v1437, %v1580
      %v1582 = vpop.f32.mrb[0].mxu0
      %1583 = vdwg.mxu0
      %v1584 = vmax.f32 %v1570, 0.0
      %v1585 = vmax.f32 %v1573, 0.0
      %v1586 = vmax.f32 %v1578, 0.0
      %v1587 = vmax.f32 %v1581, 0.0
      %v1592 = vcombine.high %v1584, %v1584
      %v1593 = vcombine.high %v1585, %v1585
      %v1594 = vcombine.high %v1586, %v1586
      %v1595 = vcombine.high %v1587, %v1587
      %s1600 = scalar_lea.vmem %s9, 2
      %v1601 = vld [vmem:[%s1600] sm:$0x1]
      %v1603 = vlaneseq
      %v1604 = vshrl.u32 %v1603, 7
      %v1605 = vsub.s32 0, %v1604
      %v1606 = vrot.slane %v1601, %v1605
      %v1608 = vmul.f32 %v1584, %v1606
      %v1609 = vmul.f32 %v1592, %v1606
      %v1610 = vmul.f32 %v1585, %v1606
      %v1611 = vmul.f32 %v1593, %v1606
      %v1612 = vmul.f32 %v1586, %v1606
      %v1613 = vmul.f32 %v1594, %v1606
      %v1614 = vmul.f32 %v1587, %v1606
      %v1615 = vmul.f32 %v1595, %v1606
      %v1616 = vsel %vm603, %v1608, 0.0
      %1617 = vadd.xlane.f32.xlu0 %v1616
      %v1618 = vpop.xlane.xlu0 %1617
      %v1619 = vsel %vm603, %v1609, 0.0
      %1620 = vadd.xlane.f32.xlu0 %v1619
      %v1621 = vpop.xlane.xlu0 %1620
      %v1622 = vsel %vm603, %v1610, 0.0
      %1623 = vadd.xlane.f32.xlu0 %v1622
      %v1624 = vpop.xlane.xlu0 %1623
      %v1625 = vsel %vm603, %v1611, 0.0
      %1626 = vadd.xlane.f32.xlu0 %v1625
      %v1627 = vpop.xlane.xlu0 %1626
      %v1628 = vsel %vm603, %v1612, 0.0
      %1629 = vadd.xlane.f32.xlu0 %v1628
      %v1630 = vpop.xlane.xlu0 %1629
      %v1631 = vsel %vm603, %v1613, 0.0
      %1632 = vadd.xlane.f32.xlu0 %v1631
      %v1633 = vpop.xlane.xlu0 %1632
      %v1634 = vsel %vm603, %v1614, 0.0
      %1635 = vadd.xlane.f32.xlu0 %v1634
      %v1636 = vpop.xlane.xlu0 %1635
      %v1637 = vsel %vm603, %v1615, 0.0
      %1638 = vadd.xlane.f32.xlu0 %v1637
      %v1639 = vpop.xlane.xlu0 %1638
      %s1640 = sld [smem:[#allocation18 + $0x2]]
      %v1641 = vstv %s1640
      %v1642 = vadd.f32 %v1618, %v1641
      %v1643 = vadd.f32 %v1621, %v1641
      %v1644 = vadd.f32 %v1624, %v1641
      %v1645 = vadd.f32 %v1627, %v1641
      %v1646 = vadd.f32 %v1630, %v1641
      %v1647 = vadd.f32 %v1633, %v1641
      %v1648 = vadd.f32 %v1636, %v1641
      %v1649 = vadd.f32 %v1639, %v1641
      %v1658 = vlaneseq
      %v1659 = vshrl.u32 %v1658, 7
      %v1660 = vsub.s32 %v1116, %v1659
      %v1661 = vrot.slane %v1642, %v1660
      %v1662 = vlaneseq
      %v1663 = vshrl.u32 %v1662, 7
      %v1664 = vsub.s32 %v1116, %v1663
      %v1665 = vrot.slane %v1643, %v1664
      %v1666 = vlaneseq
      %v1667 = vshrl.u32 %v1666, 7
      %v1668 = vsub.s32 %v1116, %v1667
      %v1669 = vrot.slane %v1644, %v1668
      %v1670 = vlaneseq
      %v1671 = vshrl.u32 %v1670, 7
      %v1672 = vsub.s32 %v1116, %v1671
      %v1673 = vrot.slane %v1645, %v1672
      %v1674 = vlaneseq
      %v1675 = vshrl.u32 %v1674, 7
      %v1676 = vsub.s32 %v1116, %v1675
      %v1677 = vrot.slane %v1646, %v1676
      %v1678 = vlaneseq
      %v1679 = vshrl.u32 %v1678, 7
      %v1680 = vsub.s32 %v1116, %v1679
      %v1681 = vrot.slane %v1647, %v1680
      %v1682 = vlaneseq
      %v1683 = vshrl.u32 %v1682, 7
      %v1684 = vsub.s32 %v1116, %v1683
      %v1685 = vrot.slane %v1648, %v1684
      %v1686 = vlaneseq
      %v1687 = vshrl.u32 %v1686, 7
      %v1688 = vsub.s32 %v1116, %v1687
      %v1689 = vrot.slane %v1649, %v1688
      %v1690 = vsel %vm596, %v1665, %v1661
      %v1691 = vsel %vm598, %v1669, %v1690
      %v1692 = vsel %vm600, %v1673, %v1691
      %vm1693 = vcmask 1044484
      %v1694 = vsel %vm1693, %v1677, %v1692
      %vm1695 = vcmask 1045509
      %v1696 = vsel %vm1695, %v1681, %v1694
      %vm1697 = vcmask 1046534
      %v1698 = vsel %vm1697, %v1685, %v1696
      %vm1699 = vcmask 1047559
      %v1700 = vsel %vm1699, %v1689, %v1698
      %1702 = vst.msk [vmem:[#allocation4] sm:$0xff] %vm1169, %v1700
    $region81: #{tpu_custom_call.1} parent=1 // pred_fallthru
      _
    %v1703 = vld [vmem:[#allocation5] sm:$0x3]
    %v1704 = vld [vmem:[#allocation2] sm:$0x3]
    %1705 = vmatprep.subr.bf16.mxu0 0
    %1706 = vmatpush1.bf16.xpose.msra.mxu0 %v1704
    %1707 = vmatprep.subr.bf16.mxu0 0
    %1708 = vmatpush1.bf16.xpose.msra.mxu0 0
    %1709 = vmatprep.subr.bf16.mxu0 0
    %1710 = vmatpush1.bf16.xpose.msra.mxu0 0
    %1711 = vmatprep.subr.bf16.mxu0 0
    %1712 = vmatpush1.bf16.xpose.msra.mxu0 0
    %1713 = vmatprep.subr.bf16.mxu0 0
    %1714 = vmatpush1.bf16.xpose.msra.mxu0 0
    %1715 = vmatprep.subr.bf16.mxu0 0
    %1716 = vmatpush1.bf16.xpose.msra.mxu0 0
    %1717 = vmatprep.subr.bf16.mxu0 0
    %1718 = vmatpush1.bf16.xpose.msra.mxu0 0
    %1719 = vmatprep.subr.bf16.mxu0 0
    %1720 = vmatpush1.bf16.xpose.msra.mxu0 0
    %1721 = vmatprep.subr.bf16.mxu0 0
    %1722 = vmatpush1.bf16.xpose.msra.mxu0 0
    %1723 = vmatprep.subr.bf16.mxu0 0
    %1724 = vmatpush1.bf16.xpose.msra.mxu0 0
    %1725 = vmatprep.subr.bf16.mxu0 0
    %1726 = vmatpush1.bf16.xpose.msra.mxu0 0
    %1727 = vmatprep.subr.bf16.mxu0 0
    %1728 = vmatpush1.bf16.xpose.msra.mxu0 0
    %1729 = vmatprep.subr.bf16.mxu0 0
    %1730 = vmatpush1.bf16.xpose.msra.mxu0 0
    %1731 = vmatprep.subr.bf16.mxu0 0
    %1732 = vmatpush1.bf16.xpose.msra.mxu0 0
    %1733 = vmatprep.subr.bf16.mxu0 0
    %1734 = vmatpush1.bf16.xpose.msra.mxu0 0
    %1735 = vmatprep.subr.bf16.mxu0 0
    %1736 = vmatpush1.bf16.xpose.msra.mxu0 0
    %1737 = vmatprep.mubr.bf16.mxu0 0
    %1738 = vmatmul.mubr.bf16.gmra.mrb[0].mxu0 %v1703
    %v1739 = vpop.f32.mrb[0].mxu0
    %v1740 = vadd.f32 0.0, %v1739
    %v1741 = vpop.f32.mrb[0].mxu0
    %v1742 = vpop.f32.mrb[0].mxu0
    %v1743 = vpop.f32.mrb[0].mxu0
    %1744 = vdwg.mxu0
    %vm1745 = vcmask 27648
    %1746 = vst.msk [vmem:[#allocation19] sm:$0xf] %vm1745, %v1740
    %v1747 = vld [vmem:[#allocation11] sm:$0xf]
    %v1748 = vld [vmem:[#allocation11 + $0x4] sm:$0xf]
    %v1749 = vld [vmem:[#allocation11 + $0x8] sm:$0xf]
    %v1750 = vld [vmem:[#allocation11 + $0xc] sm:$0xf]
    %v1751 = vld [vmem:[#allocation4] sm:$0xff]
    %v1752 = vld [vmem:[#allocation14] sm:$0x3]
    %v1753 = vld [vmem:[#allocation14 + $0x2] sm:$0x3]
    %v1758 = vunpack.c.l.b16 %v1747
    %v1759 = vunpack.c.l.b16 %v1748
    %v1760 = vunpack.c.l.b16 %v1749
    %v1761 = vunpack.c.l.b16 %v1750
    %v1762 = vpack.c.b16 %v1759, %v1758
    %v1763 = vpack.c.b16 %v1761, %v1760
    %v1768 = vcombine.low %v1752, %v1753
    %v1770 = vunpack.c.l.s4 1983009808
    %v1771 = vunpack.c.0.s8 %v1770
    %v1772 = vlaneseq
    %v1773 = vshrl.u32 %v1772, 7
    %v1774 = vsub.s32 %v1771, %v1773
    %v1775 = vrot.slane %v1768, %v1774
    %1777 = vmatprep.subr.bf16.mxu0 0
    %1778 = vmatpush1.bf16.xpose.msra.mxu0 %v1775
    %1779 = vmatprep.subr.bf16.mxu0 0
    %1780 = vmatpush1.bf16.xpose.msra.mxu0 0
    %1781 = vmatprep.subr.bf16.mxu0 0
    %1782 = vmatpush1.bf16.xpose.msra.mxu0 0
    %1783 = vmatprep.subr.bf16.mxu0 0
    %1784 = vmatpush1.bf16.xpose.msra.mxu0 0
    %1785 = vmatprep.subr.bf16.mxu0 0
    %1786 = vmatpush1.bf16.xpose.msra.mxu0 0
    %1787 = vmatprep.subr.bf16.mxu0 0
    %1788 = vmatpush1.bf16.xpose.msra.mxu0 0
    %1789 = vmatprep.subr.bf16.mxu0 0
    %1790 = vmatpush1.bf16.xpose.msra.mxu0 0
    %1791 = vmatprep.subr.bf16.mxu0 0
    %1792 = vmatpush1.bf16.xpose.msra.mxu0 0
    %1793 = vmatprep.subr.bf16.mxu0 0
    %1794 = vmatpush1.bf16.xpose.msra.mxu0 0
    %1795 = vmatprep.subr.bf16.mxu0 0
    %1796 = vmatpush1.bf16.xpose.msra.mxu0 0
    %1797 = vmatprep.subr.bf16.mxu0 0
    %1798 = vmatpush1.bf16.xpose.msra.mxu0 0
    %1799 = vmatprep.subr.bf16.mxu0 0
    %1800 = vmatpush1.bf16.xpose.msra.mxu0 0
    %1801 = vmatprep.subr.bf16.mxu0 0
    %1802 = vmatpush1.bf16.xpose.msra.mxu0 0
    %1803 = vmatprep.subr.bf16.mxu0 0
    %1804 = vmatpush1.bf16.xpose.msra.mxu0 0
    %1805 = vmatprep.subr.bf16.mxu0 0
    %1806 = vmatpush1.bf16.xpose.msra.mxu0 0
    %1807 = vmatprep.subr.bf16.mxu0 0
    %1808 = vmatpush1.bf16.xpose.msra.mxu0 0
    %1809 = vmatprep.mubr.bf16.mxu0 0
    %1810 = vmatmul.mubr.bf16.gmra.mrb[0].mxu0 %v1762
    %v1811 = vpop.f32.mrb[0].mxu0
    %v1812 = vadd.f32 0.0, %v1811
    %v1813 = vpop.f32.mrb[0].mxu0
    %v1814 = vpop.f32.mrb[0].mxu0
    %v1815 = vadd.f32 0.0, %v1814
    %v1816 = vpop.f32.mrb[0].mxu0
    %1817 = vmatprep.mubr.bf16.mxu0 0
    %1818 = vmatmul.mubr.bf16.gmra.mrb[0].mxu0 %v1763
    %v1819 = vpop.f32.mrb[0].mxu0
    %v1820 = vadd.f32 0.0, %v1819
    %v1821 = vpop.f32.mrb[0].mxu0
    %v1822 = vpop.f32.mrb[0].mxu0
    %v1823 = vadd.f32 0.0, %v1822
    %v1824 = vpop.f32.mrb[0].mxu0
    %1825 = vdwg.mxu0
    %vm1826 = vcmask 64512
    %v1827 = vsel %vm1826, %v1812, -inf
    %v1828 = vrot.slane %v1827, 4
    %v1829 = vmax.f32 %v1827, %v1828
    %v1830 = vrot.slane %v1829, 2
    %v1831 = vmax.f32 %v1829, %v1830
    %v1832 = vrot.slane %v1831, 1
    %v1833 = vmax.f32 %v1831, %v1832
    %v1834 = vsel %vm1826, %v1815, -inf
    %v1835 = vrot.slane %v1834, 4
    %v1836 = vmax.f32 %v1834, %v1835
    %v1837 = vrot.slane %v1836, 2
    %v1838 = vmax.f32 %v1836, %v1837
    %v1839 = vrot.slane %v1838, 1
    %v1840 = vmax.f32 %v1838, %v1839
    %v1841 = vsel %vm1826, %v1820, -inf
    %v1842 = vrot.slane %v1841, 4
    %v1843 = vmax.f32 %v1841, %v1842
    %v1844 = vrot.slane %v1843, 2
    %v1845 = vmax.f32 %v1843, %v1844
    %v1846 = vrot.slane %v1845, 1
    %v1847 = vmax.f32 %v1845, %v1846
    %v1848 = vsel %vm1826, %v1823, -inf
    %v1849 = vrot.slane %v1848, 4
    %v1850 = vmax.f32 %v1848, %v1849
    %v1851 = vrot.slane %v1850, 2
    %v1852 = vmax.f32 %v1850, %v1851
    %v1853 = vrot.slane %v1852, 1
    %v1854 = vmax.f32 %v1852, %v1853
    %v1855 = vlaneseq
    %v1856 = vshrl.u32 %v1855, 7
    %v1857 = vsub.s32 0, %v1856
    %v1858 = vrot.slane %v1751, %v1857
    %v1859 = vmul.f32 %v1833, %v1858
    %v1860 = vmul.f32 %v1840, %v1858
    %v1861 = vmul.f32 %v1847, %v1858
    %v1862 = vmul.f32 %v1854, %v1858
    %v1863 = vadd.f32 %v1859, 0.0
    %v1864 = vadd.f32 %v1860, 0.0
    %v1865 = vadd.f32 %v1861, 0.0
    %v1866 = vadd.f32 %v1862, 0.0
    %1871 = vrot.lane.b32.xlu0 %v1812, 124
    %v1872 = vpop.permute.xlu0 %1871
    %1873 = vrot.lane.b32.xlu0 %v1815, 124
    %v1874 = vpop.permute.xlu0 %1873
    %1875 = vrot.lane.b32.xlu0 %v1820, 124
    %v1876 = vpop.permute.xlu0 %1875
    %1877 = vrot.lane.b32.xlu0 %v1823, 124
    %v1878 = vpop.permute.xlu0 %1877
    %v1883 = vmax.f32 %v1812, %v1872
    %v1884 = vmax.f32 %v1815, %v1874
    %v1885 = vmax.f32 %v1820, %v1876
    %v1886 = vmax.f32 %v1823, %v1878
    %v1887 = vlaneseq
    %v1888 = vshrl.u32 %v1887, 7
    %v1889 = vsub.s32 1, %v1888
    %v1890 = vrot.slane %v1751, %v1889
    %1892 = vrot.lane.b32.xlu0 %v1890, 4
    %v1893 = vpop.permute.xlu0 %1892
    %v1895 = vmul.f32 %v1833, %v1893
    %v1896 = vmul.f32 %v1840, %v1893
    %v1897 = vmul.f32 %v1847, %v1893
    %v1898 = vmul.f32 %v1854, %v1893
    %1903 = vrot.lane.b32.xlu0 %v1895, 124
    %v1904 = vpop.permute.xlu0 %1903
    %1905 = vrot.lane.b32.xlu0 %v1896, 124
    %v1906 = vpop.permute.xlu0 %1905
    %1907 = vrot.lane.b32.xlu0 %v1897, 124
    %v1908 = vpop.permute.xlu0 %1907
    %1909 = vrot.lane.b32.xlu0 %v1898, 124
    %v1910 = vpop.permute.xlu0 %1909
    %v1915 = vadd.f32 %v1863, %v1904
    %v1916 = vadd.f32 %v1864, %v1906
    %v1917 = vadd.f32 %v1865, %v1908
    %v1918 = vadd.f32 %v1866, %v1910
    %s1919 = scalar_lea.vmem [#allocation14], 4
    %v1920 = vld [vmem:[%s1919] sm:$0x3]
    %v1921 = vld [vmem:[%s1919 + $0x2] sm:$0x3]
    %v1924 = vcombine.low %v1920, %v1921
    %v1926 = vunpack.c.l.s4 1983009808
    %v1927 = vunpack.c.0.s8 %v1926
    %v1928 = vlaneseq
    %v1929 = vshrl.u32 %v1928, 7
    %v1930 = vsub.s32 %v1927, %v1929
    %v1931 = vrot.slane %v1924, %v1930
    %1933 = vmatprep.subr.bf16.mxu0 0
    %1934 = vmatpush1.bf16.xpose.msra.mxu0 %v1931
    %1935 = vmatprep.subr.bf16.mxu0 0
    %1936 = vmatpush1.bf16.xpose.msra.mxu0 0
    %1937 = vmatprep.subr.bf16.mxu0 0
    %1938 = vmatpush1.bf16.xpose.msra.mxu0 0
    %1939 = vmatprep.subr.bf16.mxu0 0
    %1940 = vmatpush1.bf16.xpose.msra.mxu0 0
    %1941 = vmatprep.subr.bf16.mxu0 0
    %1942 = vmatpush1.bf16.xpose.msra.mxu0 0
    %1943 = vmatprep.subr.bf16.mxu0 0
    %1944 = vmatpush1.bf16.xpose.msra.mxu0 0
    %1945 = vmatprep.subr.bf16.mxu0 0
    %1946 = vmatpush1.bf16.xpose.msra.mxu0 0
    %1947 = vmatprep.subr.bf16.mxu0 0
    %1948 = vmatpush1.bf16.xpose.msra.mxu0 0
    %1949 = vmatprep.subr.bf16.mxu0 0
    %1950 = vmatpush1.bf16.xpose.msra.mxu0 0
    %1951 = vmatprep.subr.bf16.mxu0 0
    %1952 = vmatpush1.bf16.xpose.msra.mxu0 0
    %1953 = vmatprep.subr.bf16.mxu0 0
    %1954 = vmatpush1.bf16.xpose.msra.mxu0 0
    %1955 = vmatprep.subr.bf16.mxu0 0
    %1956 = vmatpush1.bf16.xpose.msra.mxu0 0
    %1957 = vmatprep.subr.bf16.mxu0 0
    %1958 = vmatpush1.bf16.xpose.msra.mxu0 0
    %1959 = vmatprep.subr.bf16.mxu0 0
    %1960 = vmatpush1.bf16.xpose.msra.mxu0 0
    %1961 = vmatprep.subr.bf16.mxu0 0
    %1962 = vmatpush1.bf16.xpose.msra.mxu0 0
    %1963 = vmatprep.subr.bf16.mxu0 0
    %1964 = vmatpush1.bf16.xpose.msra.mxu0 0
    %1965 = vmatprep.mubr.bf16.mxu0 0
    %1966 = vmatmul.mubr.bf16.gmra.mrb[0].mxu0 %v1762
    %v1967 = vpop.f32.mrb[0].mxu0
    %v1968 = vadd.f32 0.0, %v1967
    %v1969 = vpop.f32.mrb[0].mxu0
    %v1970 = vpop.f32.mrb[0].mxu0
    %v1971 = vadd.f32 0.0, %v1970
    %v1972 = vpop.f32.mrb[0].mxu0
    %1973 = vmatprep.mubr.bf16.mxu0 0
    %1974 = vmatmul.mubr.bf16.gmra.mrb[0].mxu0 %v1763
    %v1975 = vpop.f32.mrb[0].mxu0
    %v1976 = vadd.f32 0.0, %v1975
    %v1977 = vpop.f32.mrb[0].mxu0
    %v1978 = vpop.f32.mrb[0].mxu0
    %v1979 = vadd.f32 0.0, %v1978
    %v1980 = vpop.f32.mrb[0].mxu0
    %1981 = vdwg.mxu0
    %v1982 = vsel %vm1826, %v1968, -inf
    %v1983 = vrot.slane %v1982, 4
    %v1984 = vmax.f32 %v1982, %v1983
    %v1985 = vrot.slane %v1984, 2
    %v1986 = vmax.f32 %v1984, %v1985
    %v1987 = vrot.slane %v1986, 1
    %v1988 = vmax.f32 %v1986, %v1987
    %v1989 = vsel %vm1826, %v1971, -inf
    %v1990 = vrot.slane %v1989, 4
    %v1991 = vmax.f32 %v1989, %v1990
    %v1992 = vrot.slane %v1991, 2
    %v1993 = vmax.f32 %v1991, %v1992
    %v1994 = vrot.slane %v1993, 1
    %v1995 = vmax.f32 %v1993, %v1994
    %v1996 = vsel %vm1826, %v1976, -inf
    %v1997 = vrot.slane %v1996, 4
    %v1998 = vmax.f32 %v1996, %v1997
    %v1999 = vrot.slane %v1998, 2
    %v2000 = vmax.f32 %v1998, %v1999
    %v2001 = vrot.slane %v2000, 1
    %v2002 = vmax.f32 %v2000, %v2001
    %v2003 = vsel %vm1826, %v1979, -inf
    %v2004 = vrot.slane %v2003, 4
    %v2005 = vmax.f32 %v2003, %v2004
    %v2006 = vrot.slane %v2005, 2
    %v2007 = vmax.f32 %v2005, %v2006
    %v2008 = vrot.slane %v2007, 1
    %v2009 = vmax.f32 %v2007, %v2008
    %v2010 = vmax.f32 %v1883, %v1968
    %v2011 = vmax.f32 %v1884, %v1971
    %v2012 = vmax.f32 %v1885, %v1976
    %v2013 = vmax.f32 %v1886, %v1979
    %v2014 = vlaneseq
    %v2015 = vshrl.u32 %v2014, 7
    %v2016 = vsub.s32 2, %v2015
    %v2017 = vrot.slane %v1751, %v2016
    %v2018 = vmul.f32 %v1988, %v2017
    %v2019 = vmul.f32 %v1995, %v2017
    %v2020 = vmul.f32 %v2002, %v2017
    %v2021 = vmul.f32 %v2009, %v2017
    %v2022 = vadd.f32 %v1915, %v2018
    %v2023 = vadd.f32 %v1916, %v2019
    %v2024 = vadd.f32 %v1917, %v2020
    %v2025 = vadd.f32 %v1918, %v2021
    %2030 = vrot.lane.b32.xlu0 %v1968, 124
    %v2031 = vpop.permute.xlu0 %2030
    %2032 = vrot.lane.b32.xlu0 %v1971, 124
    %v2033 = vpop.permute.xlu0 %2032
    %2034 = vrot.lane.b32.xlu0 %v1976, 124
    %v2035 = vpop.permute.xlu0 %2034
    %2036 = vrot.lane.b32.xlu0 %v1979, 124
    %v2037 = vpop.permute.xlu0 %2036
    %v2042 = vmax.f32 %v2010, %v2031
    %v2043 = vmax.f32 %v2011, %v2033
    %v2044 = vmax.f32 %v2012, %v2035
    %v2045 = vmax.f32 %v2013, %v2037
    %v2046 = vlaneseq
    %v2047 = vshrl.u32 %v2046, 7
    %v2048 = vsub.s32 3, %v2047
    %v2049 = vrot.slane %v1751, %v2048
    %2051 = vrot.lane.b32.xlu0 %v2049, 4
    %v2052 = vpop.permute.xlu0 %2051
    %v2054 = vmul.f32 %v1988, %v2052
    %v2055 = vmul.f32 %v1995, %v2052
    %v2056 = vmul.f32 %v2002, %v2052
    %v2057 = vmul.f32 %v2009, %v2052
    %2062 = vrot.lane.b32.xlu0 %v2054, 124
    %v2063 = vpop.permute.xlu0 %2062
    %2064 = vrot.lane.b32.xlu0 %v2055, 124
    %v2065 = vpop.permute.xlu0 %2064
    %2066 = vrot.lane.b32.xlu0 %v2056, 124
    %v2067 = vpop.permute.xlu0 %2066
    %2068 = vrot.lane.b32.xlu0 %v2057, 124
    %v2069 = vpop.permute.xlu0 %2068
    %v2074 = vadd.f32 %v2022, %v2063
    %v2075 = vadd.f32 %v2023, %v2065
    %v2076 = vadd.f32 %v2024, %v2067
    %v2077 = vadd.f32 %v2025, %v2069
    %s2078 = scalar_lea.vmem [#allocation14], 8
    %v2079 = vld [vmem:[%s2078] sm:$0x3]
    %v2080 = vld [vmem:[%s2078 + $0x2] sm:$0x3]
    %v2083 = vcombine.low %v2079, %v2080
    %v2085 = vunpack.c.l.s4 1983009808
    %v2086 = vunpack.c.0.s8 %v2085
    %v2087 = vlaneseq
    %v2088 = vshrl.u32 %v2087, 7
    %v2089 = vsub.s32 %v2086, %v2088
    %v2090 = vrot.slane %v2083, %v2089
    %2092 = vmatprep.subr.bf16.mxu0 0
    %2093 = vmatpush1.bf16.xpose.msra.mxu0 %v2090
    %2094 = vmatprep.subr.bf16.mxu0 0
    %2095 = vmatpush1.bf16.xpose.msra.mxu0 0
    %2096 = vmatprep.subr.bf16.mxu0 0
    %2097 = vmatpush1.bf16.xpose.msra.mxu0 0
    %2098 = vmatprep.subr.bf16.mxu0 0
    %2099 = vmatpush1.bf16.xpose.msra.mxu0 0
    %2100 = vmatprep.subr.bf16.mxu0 0
    %2101 = vmatpush1.bf16.xpose.msra.mxu0 0
    %2102 = vmatprep.subr.bf16.mxu0 0
    %2103 = vmatpush1.bf16.xpose.msra.mxu0 0
    %2104 = vmatprep.subr.bf16.mxu0 0
    %2105 = vmatpush1.bf16.xpose.msra.mxu0 0
    %2106 = vmatprep.subr.bf16.mxu0 0
    %2107 = vmatpush1.bf16.xpose.msra.mxu0 0
    %2108 = vmatprep.subr.bf16.mxu0 0
    %2109 = vmatpush1.bf16.xpose.msra.mxu0 0
    %2110 = vmatprep.subr.bf16.mxu0 0
    %2111 = vmatpush1.bf16.xpose.msra.mxu0 0
    %2112 = vmatprep.subr.bf16.mxu0 0
    %2113 = vmatpush1.bf16.xpose.msra.mxu0 0
    %2114 = vmatprep.subr.bf16.mxu0 0
    %2115 = vmatpush1.bf16.xpose.msra.mxu0 0
    %2116 = vmatprep.subr.bf16.mxu0 0
    %2117 = vmatpush1.bf16.xpose.msra.mxu0 0
    %2118 = vmatprep.subr.bf16.mxu0 0
    %2119 = vmatpush1.bf16.xpose.msra.mxu0 0
    %2120 = vmatprep.subr.bf16.mxu0 0
    %2121 = vmatpush1.bf16.xpose.msra.mxu0 0
    %2122 = vmatprep.subr.bf16.mxu0 0
    %2123 = vmatpush1.bf16.xpose.msra.mxu0 0
    %2124 = vmatprep.mubr.bf16.mxu0 0
    %2125 = vmatmul.mubr.bf16.gmra.mrb[0].mxu0 %v1762
    %v2126 = vpop.f32.mrb[0].mxu0
    %v2127 = vadd.f32 0.0, %v2126
    %v2128 = vpop.f32.mrb[0].mxu0
    %v2129 = vpop.f32.mrb[0].mxu0
    %v2130 = vadd.f32 0.0, %v2129
    %v2131 = vpop.f32.mrb[0].mxu0
    %2132 = vmatprep.mubr.bf16.mxu0 0
    %2133 = vmatmul.mubr.bf16.gmra.mrb[0].mxu0 %v1763
    %v2134 = vpop.f32.mrb[0].mxu0
    %v2135 = vadd.f32 0.0, %v2134
    %v2136 = vpop.f32.mrb[0].mxu0
    %v2137 = vpop.f32.mrb[0].mxu0
    %v2138 = vadd.f32 0.0, %v2137
    %v2139 = vpop.f32.mrb[0].mxu0
    %2140 = vdwg.mxu0
    %v2141 = vsel %vm1826, %v2127, -inf
    %v2142 = vrot.slane %v2141, 4
    %v2143 = vmax.f32 %v2141, %v2142
    %v2144 = vrot.slane %v2143, 2
    %v2145 = vmax.f32 %v2143, %v2144
    %v2146 = vrot.slane %v2145, 1
    %v2147 = vmax.f32 %v2145, %v2146
    %v2148 = vsel %vm1826, %v2130, -inf
    %v2149 = vrot.slane %v2148, 4
    %v2150 = vmax.f32 %v2148, %v2149
    %v2151 = vrot.slane %v2150, 2
    %v2152 = vmax.f32 %v2150, %v2151
    %v2153 = vrot.slane %v2152, 1
    %v2154 = vmax.f32 %v2152, %v2153
    %v2155 = vsel %vm1826, %v2135, -inf
    %v2156 = vrot.slane %v2155, 4
    %v2157 = vmax.f32 %v2155, %v2156
    %v2158 = vrot.slane %v2157, 2
    %v2159 = vmax.f32 %v2157, %v2158
    %v2160 = vrot.slane %v2159, 1
    %v2161 = vmax.f32 %v2159, %v2160
    %v2162 = vsel %vm1826, %v2138, -inf
    %v2163 = vrot.slane %v2162, 4
    %v2164 = vmax.f32 %v2162, %v2163
    %v2165 = vrot.slane %v2164, 2
    %v2166 = vmax.f32 %v2164, %v2165
    %v2167 = vrot.slane %v2166, 1
    %v2168 = vmax.f32 %v2166, %v2167
    %v2169 = vmax.f32 %v2042, %v2127
    %v2170 = vmax.f32 %v2043, %v2130
    %v2171 = vmax.f32 %v2044, %v2135
    %v2172 = vmax.f32 %v2045, %v2138
    %v2173 = vlaneseq
    %v2174 = vshrl.u32 %v2173, 7
    %v2175 = vsub.s32 4, %v2174
    %v2176 = vrot.slane %v1751, %v2175
    %v2177 = vmul.f32 %v2147, %v2176
    %v2178 = vmul.f32 %v2154, %v2176
    %v2179 = vmul.f32 %v2161, %v2176
    %v2180 = vmul.f32 %v2168, %v2176
    %v2181 = vadd.f32 %v2074, %v2177
    %v2182 = vadd.f32 %v2075, %v2178
    %v2183 = vadd.f32 %v2076, %v2179
    %v2184 = vadd.f32 %v2077, %v2180
    %2189 = vrot.lane.b32.xlu0 %v2127, 124
    %v2190 = vpop.permute.xlu0 %2189
    %2191 = vrot.lane.b32.xlu0 %v2130, 124
    %v2192 = vpop.permute.xlu0 %2191
    %2193 = vrot.lane.b32.xlu0 %v2135, 124
    %v2194 = vpop.permute.xlu0 %2193
    %2195 = vrot.lane.b32.xlu0 %v2138, 124
    %v2196 = vpop.permute.xlu0 %2195
    %v2201 = vmax.f32 %v2169, %v2190
    %v2202 = vmax.f32 %v2170, %v2192
    %v2203 = vmax.f32 %v2171, %v2194
    %v2204 = vmax.f32 %v2172, %v2196
    %v2205 = vlaneseq
    %v2206 = vshrl.u32 %v2205, 7
    %v2207 = vsub.s32 5, %v2206
    %v2208 = vrot.slane %v1751, %v2207
    %2210 = vrot.lane.b32.xlu0 %v2208, 4
    %v2211 = vpop.permute.xlu0 %2210
    %v2213 = vmul.f32 %v2147, %v2211
    %v2214 = vmul.f32 %v2154, %v2211
    %v2215 = vmul.f32 %v2161, %v2211
    %v2216 = vmul.f32 %v2168, %v2211
    %2221 = vrot.lane.b32.xlu0 %v2213, 124
    %v2222 = vpop.permute.xlu0 %2221
    %2223 = vrot.lane.b32.xlu0 %v2214, 124
    %v2224 = vpop.permute.xlu0 %2223
    %2225 = vrot.lane.b32.xlu0 %v2215, 124
    %v2226 = vpop.permute.xlu0 %2225
    %2227 = vrot.lane.b32.xlu0 %v2216, 124
    %v2228 = vpop.permute.xlu0 %2227
    %v2233 = vadd.f32 %v2181, %v2222
    %v2234 = vadd.f32 %v2182, %v2224
    %v2235 = vadd.f32 %v2183, %v2226
    %v2236 = vadd.f32 %v2184, %v2228
    %s2237 = scalar_lea.vmem [#allocation14], 12
    %v2238 = vld [vmem:[%s2237] sm:$0x3]
    %v2239 = vld [vmem:[%s2237 + $0x2] sm:$0x3]
    %v2242 = vcombine.low %v2238, %v2239
    %v2244 = vunpack.c.l.s4 1983009808
    %v2245 = vunpack.c.0.s8 %v2244
    %v2246 = vlaneseq
    %v2247 = vshrl.u32 %v2246, 7
    %v2248 = vsub.s32 %v2245, %v2247
    %v2249 = vrot.slane %v2242, %v2248
    %2251 = vmatprep.subr.bf16.mxu0 0
    %2252 = vmatpush1.bf16.xpose.msra.mxu0 %v2249
    %2253 = vmatprep.subr.bf16.mxu0 0
    %2254 = vmatpush1.bf16.xpose.msra.mxu0 0
    %2255 = vmatprep.subr.bf16.mxu0 0
    %2256 = vmatpush1.bf16.xpose.msra.mxu0 0
    %2257 = vmatprep.subr.bf16.mxu0 0
    %2258 = vmatpush1.bf16.xpose.msra.mxu0 0
    %2259 = vmatprep.subr.bf16.mxu0 0
    %2260 = vmatpush1.bf16.xpose.msra.mxu0 0
    %2261 = vmatprep.subr.bf16.mxu0 0
    %2262 = vmatpush1.bf16.xpose.msra.mxu0 0
    %2263 = vmatprep.subr.bf16.mxu0 0
    %2264 = vmatpush1.bf16.xpose.msra.mxu0 0
    %2265 = vmatprep.subr.bf16.mxu0 0
    %2266 = vmatpush1.bf16.xpose.msra.mxu0 0
    %2267 = vmatprep.subr.bf16.mxu0 0
    %2268 = vmatpush1.bf16.xpose.msra.mxu0 0
    %2269 = vmatprep.subr.bf16.mxu0 0
    %2270 = vmatpush1.bf16.xpose.msra.mxu0 0
    %2271 = vmatprep.subr.bf16.mxu0 0
    %2272 = vmatpush1.bf16.xpose.msra.mxu0 0
    %2273 = vmatprep.subr.bf16.mxu0 0
    %2274 = vmatpush1.bf16.xpose.msra.mxu0 0
    %2275 = vmatprep.subr.bf16.mxu0 0
    %2276 = vmatpush1.bf16.xpose.msra.mxu0 0
    %2277 = vmatprep.subr.bf16.mxu0 0
    %2278 = vmatpush1.bf16.xpose.msra.mxu0 0
    %2279 = vmatprep.subr.bf16.mxu0 0
    %2280 = vmatpush1.bf16.xpose.msra.mxu0 0
    %2281 = vmatprep.subr.bf16.mxu0 0
    %2282 = vmatpush1.bf16.xpose.msra.mxu0 0
    %2283 = vmatprep.mubr.bf16.mxu0 0
    %2284 = vmatmul.mubr.bf16.gmra.mrb[0].mxu0 %v1762
    %v2285 = vpop.f32.mrb[0].mxu0
    %v2286 = vadd.f32 0.0, %v2285
    %v2287 = vpop.f32.mrb[0].mxu0
    %v2288 = vpop.f32.mrb[0].mxu0
    %v2289 = vadd.f32 0.0, %v2288
    %v2290 = vpop.f32.mrb[0].mxu0
    %2291 = vmatprep.mubr.bf16.mxu0 0
    %2292 = vmatmul.mubr.bf16.gmra.mrb[0].mxu0 %v1763
    %v2293 = vpop.f32.mrb[0].mxu0
    %v2294 = vadd.f32 0.0, %v2293
    %v2295 = vpop.f32.mrb[0].mxu0
    %v2296 = vpop.f32.mrb[0].mxu0
    %v2297 = vadd.f32 0.0, %v2296
    %v2298 = vpop.f32.mrb[0].mxu0
    %2299 = vdwg.mxu0
    %v2300 = vsel %vm1826, %v2286, -inf
    %v2301 = vrot.slane %v2300, 4
    %v2302 = vmax.f32 %v2300, %v2301
    %v2303 = vrot.slane %v2302, 2
    %v2304 = vmax.f32 %v2302, %v2303
    %v2305 = vrot.slane %v2304, 1
    %v2306 = vmax.f32 %v2304, %v2305
    %v2307 = vsel %vm1826, %v2289, -inf
    %v2308 = vrot.slane %v2307, 4
    %v2309 = vmax.f32 %v2307, %v2308
    %v2310 = vrot.slane %v2309, 2
    %v2311 = vmax.f32 %v2309, %v2310
    %v2312 = vrot.slane %v2311, 1
    %v2313 = vmax.f32 %v2311, %v2312
    %v2314 = vsel %vm1826, %v2294, -inf
    %v2315 = vrot.slane %v2314, 4
    %v2316 = vmax.f32 %v2314, %v2315
    %v2317 = vrot.slane %v2316, 2
    %v2318 = vmax.f32 %v2316, %v2317
    %v2319 = vrot.slane %v2318, 1
    %v2320 = vmax.f32 %v2318, %v2319
    %v2321 = vsel %vm1826, %v2297, -inf
    %v2322 = vrot.slane %v2321, 4
    %v2323 = vmax.f32 %v2321, %v2322
    %v2324 = vrot.slane %v2323, 2
    %v2325 = vmax.f32 %v2323, %v2324
    %v2326 = vrot.slane %v2325, 1
    %v2327 = vmax.f32 %v2325, %v2326
    %v2328 = vmax.f32 %v2201, %v2286
    %v2329 = vmax.f32 %v2202, %v2289
    %v2330 = vmax.f32 %v2203, %v2294
    %v2331 = vmax.f32 %v2204, %v2297
    %v2332 = vlaneseq
    %v2333 = vshrl.u32 %v2332, 7
    %v2334 = vsub.s32 6, %v2333
    %v2335 = vrot.slane %v1751, %v2334
    %v2336 = vmul.f32 %v2306, %v2335
    %v2337 = vmul.f32 %v2313, %v2335
    %v2338 = vmul.f32 %v2320, %v2335
    %v2339 = vmul.f32 %v2327, %v2335
    %v2340 = vadd.f32 %v2233, %v2336
    %v2341 = vadd.f32 %v2234, %v2337
    %v2342 = vadd.f32 %v2235, %v2338
    %v2343 = vadd.f32 %v2236, %v2339
    %2348 = vrot.lane.b32.xlu0 %v2286, 124
    %v2349 = vpop.permute.xlu0 %2348
    %2350 = vrot.lane.b32.xlu0 %v2289, 124
    %v2351 = vpop.permute.xlu0 %2350
    %2352 = vrot.lane.b32.xlu0 %v2294, 124
    %v2353 = vpop.permute.xlu0 %2352
    %2354 = vrot.lane.b32.xlu0 %v2297, 124
    %v2355 = vpop.permute.xlu0 %2354
    %v2360 = vmax.f32 %v2328, %v2349
    %v2361 = vmax.f32 %v2329, %v2351
    %v2362 = vmax.f32 %v2330, %v2353
    %v2363 = vmax.f32 %v2331, %v2355
    %v2364 = vlaneseq
    %v2365 = vshrl.u32 %v2364, 7
    %v2366 = vsub.s32 7, %v2365
    %v2367 = vrot.slane %v1751, %v2366
    %2369 = vrot.lane.b32.xlu0 %v2367, 4
    %v2370 = vpop.permute.xlu0 %2369
    %v2372 = vmul.f32 %v2306, %v2370
    %v2373 = vmul.f32 %v2313, %v2370
    %v2374 = vmul.f32 %v2320, %v2370
    %v2375 = vmul.f32 %v2327, %v2370
    %2380 = vrot.lane.b32.xlu0 %v2372, 124
    %v2381 = vpop.permute.xlu0 %2380
    %2382 = vrot.lane.b32.xlu0 %v2373, 124
    %v2383 = vpop.permute.xlu0 %2382
    %2384 = vrot.lane.b32.xlu0 %v2374, 124
    %v2385 = vpop.permute.xlu0 %2384
    %2386 = vrot.lane.b32.xlu0 %v2375, 124
    %v2387 = vpop.permute.xlu0 %2386
    %v2392 = vadd.f32 %v2340, %v2381
    %v2393 = vadd.f32 %v2341, %v2383
    %v2394 = vadd.f32 %v2342, %v2385
    %v2395 = vadd.f32 %v2343, %v2387
    %v2396 = vld [vmem:[#allocation3] sm:$0xff]
    %v2397 = vmul.f32 %v2360, %v2396
    %v2398 = vmul.f32 %v2361, %v2396
    %v2399 = vmul.f32 %v2362, %v2396
    %v2400 = vmul.f32 %v2363, %v2396
    %vm2401 = vcmask 31744
    %v2402 = vsel %vm2401, %v2397, 0.0
    %v2403 = vrot.slane %v2402, 4
    %v2404 = vadd.f32 %v2402, %v2403
    %v2405 = vrot.slane %v2404, 2
    %v2406 = vadd.f32 %v2404, %v2405
    %v2407 = vrot.slane %v2406, 1
    %v2408 = vadd.f32 %v2406, %v2407
    %v2409 = vsel %vm2401, %v2398, 0.0
    %v2410 = vrot.slane %v2409, 4
    %v2411 = vadd.f32 %v2409, %v2410
    %v2412 = vrot.slane %v2411, 2
    %v2413 = vadd.f32 %v2411, %v2412
    %v2414 = vrot.slane %v2413, 1
    %v2415 = vadd.f32 %v2413, %v2414
    %v2416 = vsel %vm2401, %v2399, 0.0
    %v2417 = vrot.slane %v2416, 4
    %v2418 = vadd.f32 %v2416, %v2417
    %v2419 = vrot.slane %v2418, 2
    %v2420 = vadd.f32 %v2418, %v2419
    %v2421 = vrot.slane %v2420, 1
    %v2422 = vadd.f32 %v2420, %v2421
    %v2423 = vsel %vm2401, %v2400, 0.0
    %v2424 = vrot.slane %v2423, 4
    %v2425 = vadd.f32 %v2423, %v2424
    %v2426 = vrot.slane %v2425, 2
    %v2427 = vadd.f32 %v2425, %v2426
    %v2428 = vrot.slane %v2427, 1
    %v2429 = vadd.f32 %v2427, %v2428
    %v2430 = vadd.f32 %v2408, %v2392
    %v2431 = vadd.f32 %v2415, %v2393
    %v2432 = vadd.f32 %v2422, %v2394
    %v2433 = vadd.f32 %v2429, %v2395
    %v2434 = vmul.f32 %v2430, 0.5
    %v2435 = vmul.f32 %v2431, 0.5
    %v2436 = vmul.f32 %v2432, 0.5
    %v2437 = vmul.f32 %v2433, 0.5
    %v2442 = vrot.slane %v2435, 7
    %vm2443 = vcmask 1041409
    %v2444 = vsel %vm2443, %v2442, %v2434
    %v2445 = vrot.slane %v2436, 6
    %vm2446 = vcmask 1042434
    %v2447 = vsel %vm2446, %v2445, %v2444
    %v2448 = vrot.slane %v2437, 5
    %vm2449 = vcmask 1043459
    %v2450 = vsel %vm2449, %v2448, %v2447
    %2452 = vst.msk [vmem:[#allocation20] sm:$0xf] %vm1745, %v2450
    %v2453 = vadd.f32 %v1740, %v2450
    %2454 = vst.msk [vmem:[#allocation22] sm:$0xf] %vm1745, %v2453
    // Predicated region
    $region82: #{tpu_custom_call.1} parent=1 // pred_check
      _
    $region83: #{tpu_custom_call.1} parent=1 // pred_check_branch
      %2456 = sbr.rel (0) target = $region85
    $region84: #{tpu_custom_call.1} parent=1 // pred_region
      %s2458 = ssub.s32 64, 64
      %2459 = vsyncadd [#allocation7], %s2458
      %s2461 = sshll.u32 [#allocation19], 4
      %s2462 = int_to_ptr.vmem [resolvable:$true] %s2461
      %2464 = dma.vmem_to_hbm [thread:$0]  %s2462, 64, %s11, [#allocation7]
    $region85: #{tpu_custom_call.1} parent=1 // pred_fallthru
      _
    // Predicated region
    $region86: #{tpu_custom_call.1} parent=1 // pred_check
      _
    $region87: #{tpu_custom_call.1} parent=1 // pred_check_branch
      %2466 = sbr.rel (0) target = $region89
    $region88: #{tpu_custom_call.1} parent=1 // pred_region
      %s2468 = ssub.s32 64, 64
      %2469 = vsyncadd [#allocation21], %s2468
      %s2471 = sshll.u32 [#allocation20], 4
      %s2472 = int_to_ptr.vmem [resolvable:$true] %s2471
      %2474 = dma.vmem_to_hbm [thread:$0]  %s2472, 64, %s12, [#allocation21]
    $region89: #{tpu_custom_call.1} parent=1 // pred_fallthru
      _
    // Predicated region
    $region90: #{tpu_custom_call.1} parent=1 // pred_check
      _
    $region91: #{tpu_custom_call.1} parent=1 // pred_check_branch
      %2476 = sbr.rel (0) target = $region93
    $region92: #{tpu_custom_call.1} parent=1 // pred_region
      %s2478 = ssub.s32 64, 64
      %2479 = vsyncadd [#allocation21], %s2478
      %s2481 = sshll.u32 [#allocation22], 4
      %s2482 = int_to_ptr.vmem [resolvable:$true] %s2481
      %2484 = dma.vmem_to_hbm [thread:$0]  %s2482, 64, %s13, [#allocation21]
    $region93: #{tpu_custom_call.1} parent=1 // pred_fallthru
      _
    // Predicated region
    $region94: #{tpu_custom_call.1} parent=1 // pred_check
      _
    $region95: #{tpu_custom_call.1} parent=1 // pred_check_branch
      %2486 = sbr.rel (0) target = $region97
    $region96: #{tpu_custom_call.1} parent=1 // pred_region
      %2487 = dma.done [#allocation7], 64
    $region97: #{tpu_custom_call.1} parent=1 // pred_fallthru
      _
    // Predicated region
    $region98: #{tpu_custom_call.1} parent=1 // pred_check
      _
    $region99: #{tpu_custom_call.1} parent=1 // pred_check_branch
      %2489 = sbr.rel (0) target = $region101
    $region100: #{tpu_custom_call.1} parent=1 // pred_region
      %2490 = dma.done [#allocation21], 64
    $region101: #{tpu_custom_call.1} parent=1 // pred_fallthru
      _
    // Predicated region
    $region102: #{tpu_custom_call.1} parent=1 // pred_check
      _
    $region103: #{tpu_custom_call.1} parent=1 // pred_check_branch
      %2492 = sbr.rel (0) target = $region105
    $region104: #{tpu_custom_call.1} parent=1 // pred_region
      %2493 = dma.done [#allocation21], 64
    $region105: #{tpu_custom_call.1} parent=1 // pred_fallthru
      _
    %2494 = vsyncpa [#allocation6], 1
    %2495 = vsyncpa [#allocation10], 1
    %2496 = vsyncpa [#allocation13], 1
    %2497 = vsyncpa [#allocation16], 1
    %2498 = vsyncpa [#allocation7], 1
    %2499 = vsyncpa [#allocation21], 1
    %2500 = vsyncpa [#allocation8], 1

</llo_original>
